<compile_context>
chip_gen: v7x
topology: tpu7x:2x2x1
jax: 0.10.0
libtpu: 0.0.40
codegen_flags: <defaults>
</compile_context>

<pallas_src>
import functools
import math

import jax
import jax.numpy as jnp
from jax.experimental import pallas as pl
from jax.experimental.pallas import tpu as pltpu  # noqa: F401  (kept for completeness)

# ----------------------------------------------------------------------------
# Config (small, deterministic)
# ----------------------------------------------------------------------------
CFG = dict(
    task_name="long_term_forecast",
    seq_len=16,
    pred_len=16,
    enc_in=4,
    c_out=4,
    d_model=32,
    n_heads=2,
    e_layers=1,
    dropout=0.0,
    down_sampling_window=2,
    down_sampling_layers=2,
    down_sampling_method="avg",
    global_topk=4,
    activation="relu",
)


def _nyquist_setup(cfg):
    D, w = cfg["d_model"], cfg["down_sampling_window"]
    freq_lens = [math.ceil((D // 2 + 1) / w ** i)
                 for i in range(cfg["down_sampling_layers"])]
    esr = math.sqrt(min(w, cfg["c_out"] / cfg["enc_in"]) / (w or 1.0))
    nyq = [int(f * (esr / 2.0)) for f in freq_lens]
    return freq_lens, nyq


FREQ_LENS, NYQ_IDX = _nyquist_setup(CFG)


# ----------------------------------------------------------------------------
# In-kernel helpers
# ----------------------------------------------------------------------------
def _ln_rows(x, g, b, eps=1e-5):
    """Row-wise layernorm over the last (lane) axis; x: (M, D), g/b: (1, D)."""
    mu = jnp.mean(x, axis=-1, keepdims=True)
    xc = x - mu
    var = jnp.mean(xc * xc, axis=-1, keepdims=True)
    return xc * jax.lax.rsqrt(var + eps) * g + b


# ----------------------------------------------------------------------------
# Fused embedding kernel: Linear(seq_len->d_model) + W_pos + LayerNorm,
# plus the AvgPool1d downsampling expressed as small pooling matmuls.
# ----------------------------------------------------------------------------
def _embed_kernel(*refs, nlayers):
    x_ref, w_ref, vecs_ref = refs[0], refs[1], refs[2]
    pool_refs = refs[3:3 + (nlayers - 1)]
    out_refs = refs[3 + (nlayers - 1):]
    vecs = vecs_ref[...]                              # (3, D): [b+W_pos, ln_g, ln_b]
    y = jnp.dot(x_ref[...], w_ref[...],
                preferred_element_type=jnp.float32) + vecs[0:1, :]
    y = _ln_rows(y, vecs[1:2, :], vecs[2:3, :])
    out_refs[0][...] = y
    cur = y
    for i in range(nlayers - 1):                      # AvgPool1d via pooling matmul
        cur = jnp.dot(cur, pool_refs[i][...], preferred_element_type=jnp.float32)
        out_refs[i + 1][...] = cur


def pallas_embed(x, params, cfg):
    """x: (B, C, L) -> list of (B, C, D_i) for every down-sampling scale."""
    B, C, L = x.shape
    D = params["emb_W"].shape[1]
    nlayers = cfg["down_sampling_layers"]
    w = cfg["down_sampling_window"]
    x2 = x.reshape(B * C, L)
    out_shapes = [jax.ShapeDtypeStruct((B * C, D), jnp.float32)]
    d = D
    for _ in range(nlayers - 1):
        d = d // w
        out_shapes.append(jax.ShapeDtypeStruct((B * C, d), jnp.float32))
    kernel = functools.partial(_embed_kernel, nlayers=nlayers)
    outs = pl.pallas_call(kernel, out_shape=tuple(out_shapes))(
        x2, params["emb_W"], params["embed_vecs"], *params["pool_mats"])
    return [o.reshape(B, C, o.shape[-1]) for o in outs]


# ----------------------------------------------------------------------------
# Fused complex sampling Linear (+ FrequencyProcessingLayer folded in).
#   FrequencyProcessingLayer reduces to a per-frequency complex scale s:
#   mixed = freq * weight * (lw*low_mask + (1-lw)*(1-low_mask)).
#   Complex matmul via packed weights Wtop=[Wr|Wi], Wbot=[-Wi|Wr].
# ----------------------------------------------------------------------------
def _complex_linear_kernel(xr_ref, xi_ref, sr_ref, si_ref, wt_ref, wb_ref,
                           b_ref, o_ref):
    xr = xr_ref[...]
    xi = xi_ref[...]
    sr = sr_ref[...]
    si = si_ref[...]
    yr = xr * sr - xi * si                     # frequency_processing (complex scale)
    yi = xr * si + xi * sr
    o_ref[...] = (jnp.dot(yr, wt_ref[...], preferred_element_type=jnp.float32)
                  + jnp.dot(yi, wb_ref[...], preferred_element_type=jnp.float32)
                  + b_ref[...])                # (M, 2D) = [real | imag]


def pallas_complex_linear(x_c, sr, si, sp):
    B, C, F = x_c.shape
    D2 = sp["wtop"].shape[1]
    D = D2 // 2
    xr = jnp.real(x_c).reshape(B * C, F).astype(jnp.float32)
    xi = jnp.imag(x_c).reshape(B * C, F).astype(jnp.float32)
    out = pl.pallas_call(
        _complex_linear_kernel,
        out_shape=jax.ShapeDtypeStruct((B * C, D2), jnp.float32),
    )(xr, xi, sr, si, sp["wtop"], sp["wbot"], sp["bbig"])
    return jax.lax.complex(out[:, :D], out[:, D:]).reshape(B, C, D)


# ----------------------------------------------------------------------------
# Mahalanobis probability kernel.
#   fused_diff = w_a*(amp_i-amp_j) + w_p*(ph_i-ph_j) = u_i - u_j with
#   u = w_a*amp + w_p*phase, so only (B,C,K) data enters the kernel.
#   u_col/u_row carry the two broadcast layouts (built free-of-charge in XLA)
#   so the kernel needs only unit-dim broadcasts (no relayouts).
# ----------------------------------------------------------------------------
def _maha_prob_kernel(u_col_ref, u_row_ref, adiag_ref, o_ref):
    diff = u_col_ref[...] - u_row_ref[...]          # (B, C, K, K)
    s = jnp.sum(diff * diff, axis=1)                # (B, K, K) sum over channels
    a = adiag_ref[...]                              # (1, K) = diag(A), column axis
    dist = s * (a * a)                              # == sum_c (A[d,d]*diff)^2
    inv = 1.0 / (dist + 1e-10)                      # reference: 1/(dist+1e-10)
    K = dist.shape[-1]
    rows = jax.lax.broadcasted_iota(jnp.int32, (K, K), 0)
    cols = jax.lax.broadcasted_iota(jnp.int32, (K, K), 1)
    eye = (rows == cols).astype(jnp.float32)
    off = 1.0 - eye
    inv = inv * off[None]
    mx = jnp.max(inv, axis=-1, keepdims=True)
    p = inv / mx
    o_ref[...] = (p * off[None] + eye[None]) * 0.99


def pallas_maha_prob(u, adiag):
    """u: (B, C, K) combined amp/phase term; adiag: (1, K) -> prob (B, K, K)."""
    B, C, K = u.shape
    return pl.pallas_call(
        _maha_prob_kernel,
        out_shape=jax.ShapeDtypeStruct((B, K, K), jnp.float32),
    )(u[:, :, :, None], u[:, :, None, :], adiag)


# ----------------------------------------------------------------------------
# Fully fused Transformer encoder layer kernel (no grid, no per-b/h loops).
#   qkv proj -> masked MHA (block-diag mask over B*C) -> O proj -> +res -> LN
#   -> FFN -> LN [-> final Encoder LN]
# ----------------------------------------------------------------------------
def _encoder_layer_kernel(x_ref, negmask_ref, wpack_ref, bqkv_ref, vecs_ref,
                          o_ref, *, n_heads, final_norm):
    M, D = x_ref.shape
    dh = D // n_heads
    scale = 1.0 / math.sqrt(dh)

    xf = x_ref[...]                                   # (M, D) f32
    vecs = vecs_ref[...]                              # (9, D) packed biases / LN
    neg = negmask_ref[...]                            # (M, M) additive mask
    # TODO(synk): FullAttention1 source unavailable; mask==0 -> -inf (DUET-style).

    x_bf = xf.astype(jnp.bfloat16)
    qkv = jnp.dot(x_bf, wpack_ref[:, 0:3 * D],
                  preferred_element_type=jnp.float32) + bqkv_ref[...]   # (M, 3D)
    qkv_b = qkv.astype(jnp.bfloat16)

    heads = []
    for h in range(n_heads):
        q = qkv_b[:, h * dh:(h + 1) * dh]                              # (M, dh)
        k = qkv_b[:, D + h * dh:D + (h + 1) * dh]
        v = qkv_b[:, 2 * D + h * dh:2 * D + (h + 1) * dh]
        # Contract on dh without materialising k.T; cross-(b) pairs are killed
        # by the block-diagonal additive mask, so one (M,M) score matrix per
        # head replaces BN tiny per-block matmuls.
        s = jax.lax.dot_general(q, k, (((1,), (1,)), ((), ())),
                                preferred_element_type=jnp.float32)
        s = s * scale + neg
        s = s - jnp.max(s, axis=-1, keepdims=True)
        e = jnp.exp(s)
        p = e * pl.reciprocal(jnp.sum(e, axis=-1, keepdims=True), approx=True)
        heads.append(jnp.dot(p.astype(jnp.bfloat16), v,
                             preferred_element_type=jnp.float32))       # (M, dh)

    attn = jnp.concatenate(heads, axis=-1).astype(jnp.bfloat16)         # (M, D)
    new_x = jnp.dot(attn, wpack_ref[:, 3 * D:4 * D],
                    preferred_element_type=jnp.float32) + vecs[0:1, :]
    xb = _ln_rows(xf + new_x, vecs[3:4, :], vecs[4:5, :])
    y = jnp.dot(xb.astype(jnp.bfloat16), wpack_ref[:, 4 * D:5 * D],
                preferred_element_type=jnp.float32) + vecs[1:2, :]
    y = jnp.maximum(y, 0.0)                           # activation == relu
    y = jnp.dot(y.astype(jnp.bfloat16), wpack_ref[:, 5 * D:6 * D],
                preferred_element_type=jnp.float32) + vecs[2:3, :]
    xb = _ln_rows(xb + y, vecs[5:6, :], vecs[6:7, :])
    if final_norm:
        xb = _ln_rows(xb, vecs[7:8, :], vecs[8:9, :])
    o_ref[...] = xb


def pallas_encoder_layer(x2, big_neg, lp, *, n_heads, final_norm):
    """x2: (BN*L, D) rows of all blocks; big_neg: (BN*L, BN*L) additive mask."""
    M, D = x2.shape
    kernel = functools.partial(_encoder_layer_kernel, n_heads=n_heads,
                               final_norm=final_norm)
    return pl.pallas_call(
        kernel, out_shape=jax.ShapeDtypeStruct((M, D), jnp.float32),
    )(x2, big_neg, lp["Wpack"], lp["bqkv"], lp["vecs"])


def freq_attention_encoder(x, mask2d, attn_params, n_heads):
    """Time-Series-Library Encoder([EncoderLayer(AttentionLayer(FullAttention1))])."""
    BN, L, D = x.shape
    keep = (mask2d > 0.0).astype(jnp.float32)                    # (L, L)
    big_keep = jnp.kron(jnp.eye(BN, dtype=jnp.float32), keep)    # block-diag (M, M)
    big_neg = jnp.where(big_keep > 0.0, 0.0, -1e9).astype(jnp.float32)
    x2 = x.reshape(BN * L, D)
    layers = attn_params["layers"]
    for li, lp in enumerate(layers):
        # TODO(synk): for e_layers > 1 the layers could be stacked and looped
        # inside one kernel; e_layers == 1 here so one call is already minimal.
        x2 = pallas_encoder_layer(x2, big_neg, lp, n_heads=n_heads,
                                  final_norm=(li == len(layers) - 1))
    return x2.reshape(BN, L, D)


# ----------------------------------------------------------------------------
# Fused output head kernel: fusion linear+LeakyReLU -> LN -> fc1 -> LeakyReLU
#                           -> fc2 -> ReLU -> output linear
# ----------------------------------------------------------------------------
def _head_kernel(x_ref, fw_ref, w1_ref, w2_ref, ow_ref, vecs_ref, ob_ref, o_ref):
    vecs = vecs_ref[...]                              # (5, D) packed biases / LN
    g = jnp.dot(x_ref[...], fw_ref[...],
                preferred_element_type=jnp.float32) + vecs[0:1, :]
    g = jnp.where(g >= 0.0, g, 0.01 * g)              # fusion LeakyReLU
    f = _ln_rows(g, vecs[1:2, :], vecs[2:3, :])       # layernorm1
    f = jnp.dot(f, w1_ref[...], preferred_element_type=jnp.float32) + vecs[3:4, :]
    f = jnp.where(f >= 0.0, f, 0.01 * f)              # fc LeakyReLU
    f = jnp.dot(f, w2_ref[...], preferred_element_type=jnp.float32) + vecs[4:5, :]
    f = jnp.maximum(f, 0.0)                           # output ReLU
    o_ref[...] = jnp.dot(f, ow_ref[...],
                         preferred_element_type=jnp.float32) + ob_ref[...]


def pallas_head(multi, p):
    """multi: (B, C, nlayers*D) -> (B, C, pred_len), one fused kernel."""
    B, C, Fdim = multi.shape
    P = p["out_b"].shape[1]
    out = pl.pallas_call(
        _head_kernel,
        out_shape=jax.ShapeDtypeStruct((B * C, P), jnp.float32),
    )(multi.reshape(B * C, Fdim), p["fusion_W"], p["fc1_W"], p["fc2_W"],
      p["out_W"], p["head_vecs"], p["out_b"])
    return out.reshape(B, C, P)


# ----------------------------------------------------------------------------
# JAX glue (RevIN, FFT, top-k selection, Gumbel sampling, complex math)
# ----------------------------------------------------------------------------
def revin_norm(x, weight, bias, eps=1e-5):
    mean = jnp.mean(x, axis=1, keepdims=True)
    stdev = jnp.sqrt(jnp.var(x, axis=1, keepdims=True) + eps)
    y = (x - mean) / stdev
    y = y * weight + bias
    return y, mean, stdev


def revin_denorm(x, mean, stdev, weight, bias, eps=1e-5):
    y = x - bias
    y = y / (weight + eps * eps)
    return y * stdev + mean


def freq_scale(params, i):
    """FrequencyProcessingLayer collapses to one complex per-frequency scale."""
    F = params["freq_wr"][i].shape[1]
    lw = jax.nn.sigmoid(params["freq_low"][i])
    m = jnp.where(jnp.arange(F) < NYQ_IDX[i], lw, 1.0 - lw).reshape(1, F)
    sr = (params["freq_wr"][i] * m).astype(jnp.float32)
    si = (params["freq_wi"][i] * m).astype(jnp.float32)
    return sr, si


def bernoulli_gumbel_rsample(p, key):
    l0 = jnp.log(p / (1.0 - p))
    l1 = jnp.log((1.0 - p) / p)
    logits = jnp.stack([l0, l1], axis=-1)
    g = jax.random.gumbel(key, logits.shape, dtype=jnp.float32)
    y = logits + g
    return (y[..., 0] > y[..., 1]).astype(jnp.float32)   # hard gumbel-softmax [..., 0]


def encoder_layer_module(x_c, ep, cfg, layer_num, gkey):
    B, C, L = x_c.shape                                   # L == d_model
    mag = jnp.abs(x_c)
    phase = jnp.angle(x_c)

    global_topk = cfg["global_topk"]
    lbc = cfg["down_sampling_layers"] - layer_num + 1
    lt = global_topk // lbc + 1
    K = global_topk + lbc * lt

    # cumulative_energy_dynamic (sorting / top-k glue)
    gm = jnp.sum(mag ** 2, axis=(0, 1))
    global_idx = jnp.argsort(-gm)[:global_topk]
    band_size = L // lbc
    local_idx = []
    for band in range(lbc):
        bs = band * band_size
        be = (band + 1) * band_size if band != lbc - 1 else L
        local_idx.append(jnp.argsort(-gm[bs:be])[:lt] + bs)
    key_idx = jnp.concatenate([global_idx] + local_idx)
    key_idx = jnp.broadcast_to(key_idx[None, None, :], (B, C, K))

    key_mag = jnp.take_along_axis(mag, key_idx, axis=-1)
    key_phase = jnp.take_along_axis(phase, key_idx, axis=-1)
    key_freq = key_mag * jnp.exp(1j * key_phase)

    # Mahalanobis mask: fused diff built inside the kernel from
    # u = w_amp*mag + w_phase*phase (identical to w_a*d_amp + w_p*d_phase).
    u = ep["w_amp"] * key_mag + ep["w_phase"] * key_phase           # (B, C, K)
    p = pallas_maha_prob(u, ep["adiag"])                            # (B, K, K)
    sample = bernoulli_gumbel_rsample(p, gkey)
    mask2d = jnp.mean(sample, axis=0)                               # (K, K)

    # construct_key_freq_relationship (complex glue; normalisers reduce to 1)
    fm = jnp.mean(jnp.abs(x_c), axis=-1, keepdims=True)
    freq = x_c / (fm / jnp.sum(fm, axis=-1, keepdims=True))
    kfm = jnp.mean(jnp.abs(key_freq), axis=-1, keepdims=True)
    kf = key_freq / (kfm / jnp.sum(kfm, axis=-1, keepdims=True))
    rel = kf[..., :, None] * freq[:, :, None, :]                    # (B, C, K, L) complex
    rel = 1.0 / (1.0 + jnp.exp(-rel))
    # TODO(synk): torch.sigmoid(complex).float() taken as real part of complex sigmoid.
    rel_real = jnp.real(rel).astype(jnp.float32).reshape(B * C, K, L)

    full = freq_attention_encoder(rel_real, mask2d, ep["attn"], cfg["n_heads"])
    full = full.reshape(B, C, K, L)
    wts = jax.nn.softmax(key_mag, axis=-1)
    full = jnp.sum(full * wts[..., None], axis=2)                   # (B, C, L)
    return full * jnp.exp(1j * phase)                               # torch.polar


def model_forward(params, x_enc, gumbel_key):
    cfg = CFG
    D = cfg["d_model"]
    z, mean, stdev = revin_norm(x_enc, params["revin_w"], params["revin_b"])
    x = jnp.transpose(z, (0, 2, 1))                                 # (B, C, L)
    data_list = pallas_embed(x, params, cfg)                        # all scales at once

    gkeys = jax.random.split(gumbel_key, cfg["down_sampling_layers"])
    feats = []
    for i, data in enumerate(data_list):
        freq = jnp.fft.rfft(data, axis=-1, norm="ortho")            # (B, C, F_i)
        sr, si = freq_scale(params, i)
        data_c = pallas_complex_linear(freq, sr, si, params["samp"][i])
        enc = encoder_layer_module(data_c, params["enc_layers"][i], cfg,
                                   i + 1, gkeys[i])
        feats.append(jnp.fft.irfft(enc, n=D, axis=-1, norm="ortho"))

    multi = jnp.concatenate(feats, axis=-1)                         # (B, C, nL*D)
    out = pallas_head(multi, params)                                # (B, C, P)
    out = jnp.transpose(out, (0, 2, 1))                             # (B, P, C)
    return revin_denorm(out, mean, stdev, params["revin_w"], params["revin_b"])


# ----------------------------------------------------------------------------
# Deterministic parameter init (weights pre-packed / pre-cast for the kernels)
# ----------------------------------------------------------------------------
def init_params(key, cfg):
    D, C, L, P = cfg["d_model"], cfg["enc_in"], cfg["seq_len"], cfg["pred_len"]
    nlayers = cfg["down_sampling_layers"]
    w = cfg["down_sampling_window"]
    keys = iter(jax.random.split(key, 512))
    nxt = lambda: next(keys)

    def lin(i, o):
        W = 0.05 * jax.random.normal(nxt(), (i, o), jnp.float32)
        b = 0.05 * jax.random.normal(nxt(), (1, o), jnp.float32)
        return W, b

    ones = lambda n: jnp.ones((1, n), jnp.float32)
    zeros = lambda n: jnp.zeros((1, n), jnp.float32)

    p = {
        "revin_w": jnp.ones((C,), jnp.float32),
        "revin_b": jnp.zeros((C,), jnp.float32),
    }

    # embedding + W_pos + LayerNorm (packed)
    emb_W, emb_b = lin(L, D)
    W_pos = jax.random.uniform(nxt(), (1, D), jnp.float32, -0.02, 0.02)
    p["emb_W"] = emb_W
    p["embed_vecs"] = jnp.concatenate([emb_b + W_pos, ones(D), zeros(D)], axis=0)

    # avg-pool downsampling as tiny pooling matmuls fused into the embed kernel
    pool_mats = []
    d_prev = D
    for _ in range(nlayers - 1):
        d_new = d_prev // w
        pm = jnp.repeat(jnp.eye(d_new, dtype=jnp.float32), w, axis=0) / float(w)
        pool_mats.append(pm)
        d_prev = d_new
    p["pool_mats"] = pool_mats

    # head: fusion -> LN1 -> fc -> output (biases packed)
    p["fusion_W"], fusion_b = lin(nlayers * D, D)
    p["fc1_W"], fc1_b = lin(D, D)
    p["fc2_W"], fc2_b = lin(D, D)
    p["out_W"], p["out_b"] = lin(D, P)
    p["head_vecs"] = jnp.concatenate([fusion_b, ones(D), zeros(D), fc1_b, fc2_b],
                                     axis=0)

    # frequency processing weights + complex sampling Linear (packed)
    p["freq_wr"], p["freq_wi"], p["freq_low"], p["samp"] = [], [], [], []
    for F in FREQ_LENS:
        p["freq_wr"].append(jnp.ones((1, F), jnp.float32))   # torch.ones cfloat
        p["freq_wi"].append(jnp.zeros((1, F), jnp.float32))
        p["freq_low"].append(jnp.float32(0.9))
        Wr, br = lin(F, D)
        Wi, bi = lin(F, D)
        p["samp"].append({
            "wtop": jnp.concatenate([Wr, Wi], axis=1),        # (F, 2D)
            "wbot": jnp.concatenate([-Wi, Wr], axis=1),       # (F, 2D)
            "bbig": jnp.concatenate([br, bi], axis=1),        # (1, 2D)
        })

    # per-scale EncoderLayerModules
    p["enc_layers"] = []
    for i in range(nlayers):
        lbc = nlayers - (i + 1) + 1
        lt = cfg["global_topk"] // lbc + 1
        K = cfg["global_topk"] + lbc * lt
        A = jax.random.normal(nxt(), (K, K), jnp.float32)
        ep = {
            "adiag": jnp.diagonal(A).reshape(1, K),
            "w_amp": jnp.float32(0.5),
            "w_phase": jnp.float32(0.5),
        }
        norm_g, norm_b = ones(D), zeros(D)
        layers = []
        for _ in range(cfg["e_layers"]):
            Wq, bq = lin(D, D)
            Wk, bk = lin(D, D)
            Wv, bv = lin(D, D)
            Wo, bo = lin(D, D)
            W1, b1 = lin(D, D)                                # d_ff = d_model
            W2, b2 = lin(D, D)
            layers.append({
                # one bf16 (D, 6D) weight DMA per layer
                "Wpack": jnp.concatenate([Wq, Wk, Wv, Wo, W1, W2],
                                         axis=1).astype(jnp.bfloat16),
                "bqkv": jnp.concatenate([bq, bk, bv], axis=1),          # (1, 3D)
                # (9, D): bo, b1, b2, ln1_g, ln1_b, ln2_g, ln2_b, norm_g, norm_b
                "vecs": jnp.concatenate([bo, b1, b2, ones(D), zeros(D),
                                         ones(D), zeros(D), norm_g, norm_b],
                                        axis=0),
            })
        ep["attn"] = {"layers": layers}
        p["enc_layers"].append(ep)
    return p


# ----------------------------------------------------------------------------
if __name__ == "__main__":
    root = jax.random.PRNGKey(0)
    k_param, k_data, k_gumbel = jax.random.split(root, 3)

    params = init_params(k_param, CFG)
    B = 2
    x_enc = jax.random.normal(k_data, (B, CFG["seq_len"], CFG["enc_in"]),
                              jnp.float32)
    # x_mark_enc / x_dec / x_mark_dec are unused by the PyTorch forward.

    fwd = jax.jit(model_forward)
    out = fwd(params, x_enc, k_gumbel)
    out = jax.block_until_ready(out)

    assert out.shape == (B, CFG["pred_len"], CFG["enc_in"]), out.shape
    assert bool(jnp.all(jnp.isfinite(out)))
    print("KERNEL_OK")
</pallas_src>

<mosaic_0001>
module attributes {stable_mosaic.version = 11 : i64} {
  func.func @_embed_kernel(%arg0: memref<8x16xf32, #tpu.memory_space<vmem>>, %arg1: memref<16x32xf32, #tpu.memory_space<vmem>>, %arg2: memref<3x32xf32, #tpu.memory_space<vmem>>, %arg3: memref<32x16xf32, #tpu.memory_space<vmem>>, %arg4: memref<8x32xf32, #tpu.memory_space<vmem>>, %arg5: memref<8x16xf32, #tpu.memory_space<vmem>>) attributes {dimension_semantics = [], scalar_prefetch = 0 : i64, scratch_operands = 0 : i64, tpu.core_type = #tpu.core_type<tc>} {
    %c0 = arith.constant 0 : index
    %c0_0 = arith.constant 0 : index
    %0 = vector.load %arg2[%c0, %c0_0] : memref<3x32xf32, #tpu.memory_space<vmem>>, vector<3x32xf32>
    %c0_1 = arith.constant 0 : index
    %c0_2 = arith.constant 0 : index
    %1 = vector.load %arg0[%c0_1, %c0_2] : memref<8x16xf32, #tpu.memory_space<vmem>>, vector<8x16xf32>
    %c0_3 = arith.constant 0 : index
    %c0_4 = arith.constant 0 : index
    %2 = vector.load %arg1[%c0_3, %c0_4] : memref<16x32xf32, #tpu.memory_space<vmem>>, vector<16x32xf32>
    %cst = arith.constant dense<0.000000e+00> : vector<8x32xf32>
    %3 = tpu.matmul %1, %2, %cst {dimension_numbers = #tpu.dot_dimension_numbers<[1], [0], [0], [1], [0, 0, 1, 1], [], []>} : vector<8x16xf32>, vector<16x32xf32>, vector<8x32xf32> -> vector<8x32xf32>
    %4 = vector.extract_strided_slice %0 {offsets = [0, 0], sizes = [1, 32], strides = [1, 1]} : vector<3x32xf32> to vector<1x32xf32>
    %5 = vector.broadcast %4 : vector<1x32xf32> to vector<8x32xf32>
    %6 = arith.addf %3, %5 : vector<8x32xf32>
    %7 = vector.extract_strided_slice %0 {offsets = [1, 0], sizes = [1, 32], strides = [1, 1]} : vector<3x32xf32> to vector<1x32xf32>
    %8 = vector.extract_strided_slice %0 {offsets = [2, 0], sizes = [1, 32], strides = [1, 1]} : vector<3x32xf32> to vector<1x32xf32>
    %cst_5 = arith.constant dense<0.000000e+00> : vector<8xf32>
    %9 = vector.multi_reduction <add>, %6, %cst_5 [1] : vector<8x32xf32> to vector<8xf32>
    %10 = vector.shape_cast %9 : vector<8xf32> to vector<8x1xf32>
    %cst_6 = arith.constant 3.200000e+01 : f32
    %11 = vector.broadcast %cst_6 : f32 to vector<8x1xf32>
    %12 = arith.divf %10, %11 : vector<8x1xf32>
    %13 = vector.broadcast %12 : vector<8x1xf32> to vector<8x32xf32>
    %14 = arith.subf %6, %13 : vector<8x32xf32>
    %15 = arith.mulf %14, %14 : vector<8x32xf32>
    %cst_7 = arith.constant dense<0.000000e+00> : vector<8xf32>
    %16 = vector.multi_reduction <add>, %15, %cst_7 [1] : vector<8x32xf32> to vector<8xf32>
    %17 = vector.shape_cast %16 : vector<8xf32> to vector<8x1xf32>
    %cst_8 = arith.constant 3.200000e+01 : f32
    %18 = vector.broadcast %cst_8 : f32 to vector<8x1xf32>
    %19 = arith.divf %17, %18 : vector<8x1xf32>
    %cst_9 = arith.constant 9.99999974E-6 : f32
    %20 = vector.broadcast %cst_9 : f32 to vector<8x1xf32>
    %21 = arith.addf %19, %20 : vector<8x1xf32>
    %22 = math.rsqrt %21 : vector<8x1xf32>
    %23 = vector.broadcast %22 : vector<8x1xf32> to vector<8x32xf32>
    %24 = arith.mulf %14, %23 : vector<8x32xf32>
    %25 = vector.broadcast %7 : vector<1x32xf32> to vector<8x32xf32>
    %26 = arith.mulf %24, %25 : vector<8x32xf32>
    %27 = vector.broadcast %8 : vector<1x32xf32> to vector<8x32xf32>
    %28 = arith.addf %26, %27 : vector<8x32xf32>
    %c0_10 = arith.constant 0 : index
    %c0_11 = arith.constant 0 : index
    %29 = vector.load %arg4[%c0_10, %c0_11] : memref<8x32xf32, #tpu.memory_space<vmem>>, vector<8x32xf32>
    tpu.vector_store %arg4[%c0_10, %c0_11], %28 {strides = array<i32>} : memref<8x32xf32, #tpu.memory_space<vmem>>, vector<8x32xf32>,
    %c0_12 = arith.constant 0 : index
    %c0_13 = arith.constant 0 : index
    %30 = vector.load %arg3[%c0_12, %c0_13] : memref<32x16xf32, #tpu.memory_space<vmem>>, vector<32x16xf32>
    %cst_14 = arith.constant dense<0.000000e+00> : vector<8x16xf32>
    %31 = tpu.matmul %28, %30, %cst_14 {dimension_numbers = #tpu.dot_dimension_numbers<[1], [0], [0], [1], [0, 0, 1, 1], [], []>} : vector<8x32xf32>, vector<32x16xf32>, vector<8x16xf32> -> vector<8x16xf32>
    %c0_15 = arith.constant 0 : index
    %c0_16 = arith.constant 0 : index
    %32 = vector.load %arg5[%c0_15, %c0_16] : memref<8x16xf32, #tpu.memory_space<vmem>>, vector<8x16xf32>
    tpu.vector_store %arg5[%c0_15, %c0_16], %31 {strides = array<i32>} : memref<8x16xf32, #tpu.memory_space<vmem>>, vector<8x16xf32>,
    return
  }
}

module attributes {stable_mosaic.version = 11 : i64} {
  func.func @_complex_linear_kernel(%arg0: memref<8x17xf32, #tpu.memory_space<vmem>>, %arg1: memref<8x17xf32, #tpu.memory_space<vmem>>, %arg2: memref<1x17xf32, #tpu.memory_space<vmem>>, %arg3: memref<1x17xf32, #tpu.memory_space<vmem>>, %arg4: memref<17x64xf32, #tpu.memory_space<vmem>>, %arg5: memref<17x64xf32, #tpu.memory_space<vmem>>, %arg6: memref<1x64xf32, #tpu.memory_space<vmem>>, %arg7: memref<8x64xf32, #tpu.memory_space<vmem>>) attributes {dimension_semantics = [], scalar_prefetch = 0 : i64, scratch_operands = 0 : i64, tpu.core_type = #tpu.core_type<tc>} {
    %c0 = arith.constant 0 : index
    %c0_0 = arith.constant 0 : index
    %0 = vector.load %arg0[%c0, %c0_0] : memref<8x17xf32, #tpu.memory_space<vmem>>, vector<8x17xf32>
    %c0_1 = arith.constant 0 : index
    %c0_2 = arith.constant 0 : index
    %1 = vector.load %arg1[%c0_1, %c0_2] : memref<8x17xf32, #tpu.memory_space<vmem>>, vector<8x17xf32>
    %c0_3 = arith.constant 0 : index
    %c0_4 = arith.constant 0 : index
    %2 = vector.load %arg2[%c0_3, %c0_4] : memref<1x17xf32, #tpu.memory_space<vmem>>, vector<1x17xf32>
    %c0_5 = arith.constant 0 : index
    %c0_6 = arith.constant 0 : index
    %3 = vector.load %arg3[%c0_5, %c0_6] : memref<1x17xf32, #tpu.memory_space<vmem>>, vector<1x17xf32>
    %4 = vector.broadcast %2 : vector<1x17xf32> to vector<8x17xf32>
    %5 = arith.mulf %0, %4 : vector<8x17xf32>
    %6 = vector.broadcast %3 : vector<1x17xf32> to vector<8x17xf32>
    %7 = arith.mulf %1, %6 : vector<8x17xf32>
    %8 = arith.subf %5, %7 : vector<8x17xf32>
    %9 = vector.broadcast %3 : vector<1x17xf32> to vector<8x17xf32>
    %10 = arith.mulf %0, %9 : vector<8x17xf32>
    %11 = vector.broadcast %2 : vector<1x17xf32> to vector<8x17xf32>
    %12 = arith.mulf %1, %11 : vector<8x17xf32>
    %13 = arith.addf %10, %12 : vector<8x17xf32>
    %c0_7 = arith.constant 0 : index
    %c0_8 = arith.constant 0 : index
    %14 = vector.load %arg4[%c0_7, %c0_8] : memref<17x64xf32, #tpu.memory_space<vmem>>, vector<17x64xf32>
    %cst = arith.constant dense<0.000000e+00> : vector<8x64xf32>
    %15 = tpu.matmul %8, %14, %cst {dimension_numbers = #tpu.dot_dimension_numbers<[1], [0], [0], [1], [0, 0, 1, 1], [], []>} : vector<8x17xf32>, vector<17x64xf32>, vector<8x64xf32> -> vector<8x64xf32>
    %c0_9 = arith.constant 0 : index
    %c0_10 = arith.constant 0 : index
    %16 = vector.load %arg5[%c0_9, %c0_10] : memref<17x64xf32, #tpu.memory_space<vmem>>, vector<17x64xf32>
    %cst_11 = arith.constant dense<0.000000e+00> : vector<8x64xf32>
    %17 = tpu.matmul %13, %16, %cst_11 {dimension_numbers = #tpu.dot_dimension_numbers<[1], [0], [0], [1], [0, 0, 1, 1], [], []>} : vector<8x17xf32>, vector<17x64xf32>, vector<8x64xf32> -> vector<8x64xf32>
    %18 = arith.addf %15, %17 : vector<8x64xf32>
    %c0_12 = arith.constant 0 : index
    %c0_13 = arith.constant 0 : index
    %19 = vector.load %arg6[%c0_12, %c0_13] : memref<1x64xf32, #tpu.memory_space<vmem>>, vector<1x64xf32>
    %20 = vector.broadcast %19 : vector<1x64xf32> to vector<8x64xf32>
    %21 = arith.addf %18, %20 : vector<8x64xf32>
    %c0_14 = arith.constant 0 : index
    %c0_15 = arith.constant 0 : index
    %22 = vector.load %arg7[%c0_14, %c0_15] : memref<8x64xf32, #tpu.memory_space<vmem>>, vector<8x64xf32>
    tpu.vector_store %arg7[%c0_14, %c0_15], %21 {strides = array<i32>} : memref<8x64xf32, #tpu.memory_space<vmem>>, vector<8x64xf32>,
    return
  }
}

module attributes {stable_mosaic.version = 11 : i64} {
  func.func @_complex_linear_kernel(%arg0: memref<8x9xf32, #tpu.memory_space<vmem>>, %arg1: memref<8x9xf32, #tpu.memory_space<vmem>>, %arg2: memref<1x9xf32, #tpu.memory_space<vmem>>, %arg3: memref<1x9xf32, #tpu.memory_space<vmem>>, %arg4: memref<9x64xf32, #tpu.memory_space<vmem>>, %arg5: memref<9x64xf32, #tpu.memory_space<vmem>>, %arg6: memref<1x64xf32, #tpu.memory_space<vmem>>, %arg7: memref<8x64xf32, #tpu.memory_space<vmem>>) attributes {dimension_semantics = [], scalar_prefetch = 0 : i64, scratch_operands = 0 : i64, tpu.core_type = #tpu.core_type<tc>} {
    %c0 = arith.constant 0 : index
    %c0_0 = arith.constant 0 : index
    %0 = vector.load %arg0[%c0, %c0_0] : memref<8x9xf32, #tpu.memory_space<vmem>>, vector<8x9xf32>
    %c0_1 = arith.constant 0 : index
    %c0_2 = arith.constant 0 : index
    %1 = vector.load %arg1[%c0_1, %c0_2] : memref<8x9xf32, #tpu.memory_space<vmem>>, vector<8x9xf32>
    %c0_3 = arith.constant 0 : index
    %c0_4 = arith.constant 0 : index
    %2 = vector.load %arg2[%c0_3, %c0_4] : memref<1x9xf32, #tpu.memory_space<vmem>>, vector<1x9xf32>
    %c0_5 = arith.constant 0 : index
    %c0_6 = arith.constant 0 : index
    %3 = vector.load %arg3[%c0_5, %c0_6] : memref<1x9xf32, #tpu.memory_space<vmem>>, vector<1x9xf32>
    %4 = vector.broadcast %2 : vector<1x9xf32> to vector<8x9xf32>
    %5 = arith.mulf %0, %4 : vector<8x9xf32>
    %6 = vector.broadcast %3 : vector<1x9xf32> to vector<8x9xf32>
    %7 = arith.mulf %1, %6 : vector<8x9xf32>
    %8 = arith.subf %5, %7 : vector<8x9xf32>
    %9 = vector.broadcast %3 : vector<1x9xf32> to vector<8x9xf32>
    %10 = arith.mulf %0, %9 : vector<8x9xf32>
    %11 = vector.broadcast %2 : vector<1x9xf32> to vector<8x9xf32>
    %12 = arith.mulf %1, %11 : vector<8x9xf32>
    %13 = arith.addf %10, %12 : vector<8x9xf32>
    %c0_7 = arith.constant 0 : index
    %c0_8 = arith.constant 0 : index
    %14 = vector.load %arg4[%c0_7, %c0_8] : memref<9x64xf32, #tpu.memory_space<vmem>>, vector<9x64xf32>
    %cst = arith.constant dense<0.000000e+00> : vector<8x64xf32>
    %15 = tpu.matmul %8, %14, %cst {dimension_numbers = #tpu.dot_dimension_numbers<[1], [0], [0], [1], [0, 0, 1, 1], [], []>} : vector<8x9xf32>, vector<9x64xf32>, vector<8x64xf32> -> vector<8x64xf32>
    %c0_9 = arith.constant 0 : index
    %c0_10 = arith.constant 0 : index
    %16 = vector.load %arg5[%c0_9, %c0_10] : memref<9x64xf32, #tpu.memory_space<vmem>>, vector<9x64xf32>
    %cst_11 = arith.constant dense<0.000000e+00> : vector<8x64xf32>
    %17 = tpu.matmul %13, %16, %cst_11 {dimension_numbers = #tpu.dot_dimension_numbers<[1], [0], [0], [1], [0, 0, 1, 1], [], []>} : vector<8x9xf32>, vector<9x64xf32>, vector<8x64xf32> -> vector<8x64xf32>
    %18 = arith.addf %15, %17 : vector<8x64xf32>
    %c0_12 = arith.constant 0 : index
    %c0_13 = arith.constant 0 : index
    %19 = vector.load %arg6[%c0_12, %c0_13] : memref<1x64xf32, #tpu.memory_space<vmem>>, vector<1x64xf32>
    %20 = vector.broadcast %19 : vector<1x64xf32> to vector<8x64xf32>
    %21 = arith.addf %18, %20 : vector<8x64xf32>
    %c0_14 = arith.constant 0 : index
    %c0_15 = arith.constant 0 : index
    %22 = vector.load %arg7[%c0_14, %c0_15] : memref<8x64xf32, #tpu.memory_space<vmem>>, vector<8x64xf32>
    tpu.vector_store %arg7[%c0_14, %c0_15], %21 {strides = array<i32>} : memref<8x64xf32, #tpu.memory_space<vmem>>, vector<8x64xf32>,
    return
  }
}

module attributes {stable_mosaic.version = 11 : i64} {
  func.func @_maha_prob_kernel(%arg0: memref<2x4x10x1xf32, #tpu.memory_space<vmem>>, %arg1: memref<2x4x1x10xf32, #tpu.memory_space<vmem>>, %arg2: memref<1x10xf32, #tpu.memory_space<vmem>>, %arg3: memref<2x10x10xf32, #tpu.memory_space<vmem>>) attributes {dimension_semantics = [], scalar_prefetch = 0 : i64, scratch_operands = 0 : i64, tpu.core_type = #tpu.core_type<tc>} {
    %c0 = arith.constant 0 : index
    %c0_0 = arith.constant 0 : index
    %c0_1 = arith.constant 0 : index
    %c0_2 = arith.constant 0 : index
    %0 = vector.load %arg0[%c0, %c0_0, %c0_1, %c0_2] : memref<2x4x10x1xf32, #tpu.memory_space<vmem>>, vector<2x4x10x1xf32>
    %c0_3 = arith.constant 0 : index
    %c0_4 = arith.constant 0 : index
    %c0_5 = arith.constant 0 : index
    %c0_6 = arith.constant 0 : index
    %1 = vector.load %arg1[%c0_3, %c0_4, %c0_5, %c0_6] : memref<2x4x1x10xf32, #tpu.memory_space<vmem>>, vector<2x4x1x10xf32>
    %2 = vector.broadcast %0 : vector<2x4x10x1xf32> to vector<2x4x10x10xf32>
    %3 = vector.broadcast %1 : vector<2x4x1x10xf32> to vector<2x4x10x10xf32>
    %4 = arith.subf %2, %3 : vector<2x4x10x10xf32>
    %5 = arith.mulf %4, %4 : vector<2x4x10x10xf32>
    %cst = arith.constant dense<0.000000e+00> : vector<2x10x10xf32>
    %6 = vector.multi_reduction <add>, %5, %cst [1] : vector<2x4x10x10xf32> to vector<2x10x10xf32>
    %c0_7 = arith.constant 0 : index
    %c0_8 = arith.constant 0 : index
    %7 = vector.load %arg2[%c0_7, %c0_8] : memref<1x10xf32, #tpu.memory_space<vmem>>, vector<1x10xf32>
    %8 = arith.mulf %7, %7 : vector<1x10xf32>
    %9 = vector.shape_cast %8 : vector<1x10xf32> to vector<1x1x10xf32>
    %10 = vector.broadcast %9 : vector<1x1x10xf32> to vector<2x10x10xf32>
    %11 = arith.mulf %6, %10 : vector<2x10x10xf32>
    %cst_9 = arith.constant 1.000000e-10 : f32
    %12 = vector.broadcast %cst_9 : f32 to vector<2x10x10xf32>
    %13 = arith.addf %11, %12 : vector<2x10x10xf32>
    %cst_10 = arith.constant 1.000000e+00 : f32
    %14 = vector.broadcast %cst_10 : f32 to vector<2x10x10xf32>
    %15 = arith.divf %14, %13 : vector<2x10x10xf32>
    %16 = tpu.iota {dimensions = array<i32: 0>} : vector<10x10xi32>
    %17 = tpu.iota {dimensions = array<i32: 1>} : vector<10x10xi32>
    %18 = arith.cmpi eq, %16, %17 : vector<10x10xi32>
    %19 = arith.extui %18 : vector<10x10xi1> to vector<10x10xi32>
    %20 = arith.sitofp %19 : vector<10x10xi32> to vector<10x10xf32>
    %cst_11 = arith.constant 1.000000e+00 : f32
    %21 = vector.broadcast %cst_11 : f32 to vector<10x10xf32>
    %22 = arith.subf %21, %20 : vector<10x10xf32>
    %23 = vector.shape_cast %22 : vector<10x10xf32> to vector<1x10x10xf32>
    %24 = vector.broadcast %23 : vector<1x10x10xf32> to vector<2x10x10xf32>
    %25 = arith.mulf %15, %24 : vector<2x10x10xf32>
    %cst_12 = arith.constant dense<0xFF800000> : vector<2x10xf32>
    %26 = vector.multi_reduction <maximumf>, %25, %cst_12 [2] : vector<2x10x10xf32> to vector<2x10xf32>
    %27 = vector.shape_cast %26 : vector<2x10xf32> to vector<2x10x1xf32>
    %28 = vector.broadcast %27 : vector<2x10x1xf32> to vector<2x10x10xf32>
    %29 = arith.divf %25, %28 : vector<2x10x10xf32>
    %30 = vector.shape_cast %22 : vector<10x10xf32> to vector<1x10x10xf32>
    %31 = vector.broadcast %30 : vector<1x10x10xf32> to vector<2x10x10xf32>
    %32 = arith.mulf %29, %31 : vector<2x10x10xf32>
    %33 = vector.shape_cast %20 : vector<10x10xf32> to vector<1x10x10xf32>
    %34 = vector.broadcast %33 : vector<1x10x10xf32> to vector<2x10x10xf32>
    %35 = arith.addf %32, %34 : vector<2x10x10xf32>
    %cst_13 = arith.constant 9.900000e-01 : f32
    %36 = vector.broadcast %cst_13 : f32 to vector<2x10x10xf32>
    %37 = arith.mulf %35, %36 : vector<2x10x10xf32>
    %c0_14 = arith.constant 0 : index
    %c0_15 = arith.constant 0 : index
    %c0_16 = arith.constant 0 : index
    %38 = vector.load %arg3[%c0_14, %c0_15, %c0_16] : memref<2x10x10xf32, #tpu.memory_space<vmem>>, vector<2x10x10xf32>
    tpu.vector_store %arg3[%c0_14, %c0_15, %c0_16], %37 {strides = array<i32>} : memref<2x10x10xf32, #tpu.memory_space<vmem>>, vector<2x10x10xf32>,
    return
  }
}

module attributes {stable_mosaic.version = 11 : i64} {
  func.func @_encoder_layer_kernel(%arg0: memref<80x32xf32, #tpu.memory_space<vmem>>, %arg1: memref<80x80xf32, #tpu.memory_space<vmem>>, %arg2: memref<32x192xbf16, #tpu.memory_space<vmem>>, %arg3: memref<1x96xf32, #tpu.memory_space<vmem>>, %arg4: memref<9x32xf32, #tpu.memory_space<vmem>>, %arg5: memref<80x32xf32, #tpu.memory_space<vmem>>) attributes {dimension_semantics = [], scalar_prefetch = 0 : i64, scratch_operands = 0 : i64, tpu.core_type = #tpu.core_type<tc>} {
    %c0 = arith.constant 0 : index
    %c0_0 = arith.constant 0 : index
    %0 = vector.load %arg0[%c0, %c0_0] : memref<80x32xf32, #tpu.memory_space<vmem>>, vector<80x32xf32>
    %c0_1 = arith.constant 0 : index
    %c0_2 = arith.constant 0 : index
    %1 = vector.load %arg4[%c0_1, %c0_2] : memref<9x32xf32, #tpu.memory_space<vmem>>, vector<9x32xf32>
    %c0_3 = arith.constant 0 : index
    %c0_4 = arith.constant 0 : index
    %2 = vector.load %arg1[%c0_3, %c0_4] : memref<80x80xf32, #tpu.memory_space<vmem>>, vector<80x80xf32>
    %3 = arith.truncf %0 : vector<80x32xf32> to vector<80x32xbf16>
    %c0_5 = arith.constant 0 : index
    %c0_6 = arith.constant 0 : index
    %4 = vector.load %arg2[%c0_5, %c0_6] : memref<32x192xbf16, #tpu.memory_space<vmem>>, vector<32x96xbf16>
    %cst = arith.constant dense<0.000000e+00> : vector<80x96xf32>
    %5 = tpu.matmul %3, %4, %cst {dimension_numbers = #tpu.dot_dimension_numbers<[1], [0], [0], [1], [0, 0, 1, 1], [], []>} : vector<80x32xbf16>, vector<32x96xbf16>, vector<80x96xf32> -> vector<80x96xf32>
    %c0_7 = arith.constant 0 : index
    %c0_8 = arith.constant 0 : index
    %6 = vector.load %arg3[%c0_7, %c0_8] : memref<1x96xf32, #tpu.memory_space<vmem>>, vector<1x96xf32>
    %7 = vector.broadcast %6 : vector<1x96xf32> to vector<80x96xf32>
    %8 = arith.addf %5, %7 : vector<80x96xf32>
    %9 = arith.truncf %8 : vector<80x96xf32> to vector<80x96xbf16>
    %10 = vector.extract_strided_slice %9 {offsets = [0, 0], sizes = [80, 16], strides = [1, 1]} : vector<80x96xbf16> to vector<80x16xbf16>
    %11 = vector.extract_strided_slice %9 {offsets = [0, 32], sizes = [80, 16], strides = [1, 1]} : vector<80x96xbf16> to vector<80x16xbf16>
    %12 = vector.extract_strided_slice %9 {offsets = [0, 64], sizes = [80, 16], strides = [1, 1]} : vector<80x96xbf16> to vector<80x16xbf16>
    %cst_9 = arith.constant dense<0.000000e+00> : vector<80x80xf32>
    %13 = tpu.matmul %10, %11, %cst_9 {dimension_numbers = #tpu.dot_dimension_numbers<[1], [1], [0], [0], [0, 0, 1, 0], [], []>} : vector<80x16xbf16>, vector<80x16xbf16>, vector<80x80xf32> -> vector<80x80xf32>
    %cst_10 = arith.constant 2.500000e-01 : f32
    %14 = vector.broadcast %cst_10 : f32 to vector<80x80xf32>
    %15 = arith.mulf %13, %14 : vector<80x80xf32>
    %16 = arith.addf %15, %2 : vector<80x80xf32>
    %cst_11 = arith.constant dense<0xFF800000> : vector<80xf32>
    %17 = vector.multi_reduction <maximumf>, %16, %cst_11 [1] : vector<80x80xf32> to vector<80xf32>
    %18 = vector.shape_cast %17 : vector<80xf32> to vector<80x1xf32>
    %19 = vector.broadcast %18 : vector<80x1xf32> to vector<80x80xf32>
    %20 = arith.subf %16, %19 : vector<80x80xf32>
    %21 = math.exp %20 : vector<80x80xf32>
    %cst_12 = arith.constant dense<0.000000e+00> : vector<80xf32>
    %22 = vector.multi_reduction <add>, %21, %cst_12 [1] : vector<80x80xf32> to vector<80xf32>
    %23 = vector.shape_cast %22 : vector<80xf32> to vector<80x1xf32>
    %24 = tpu.reciprocal %23 {approx = true} : vector<80x1xf32> -> vector<80x1xf32>
    %25 = vector.broadcast %24 : vector<80x1xf32> to vector<80x80xf32>
    %26 = arith.mulf %21, %25 : vector<80x80xf32>
    %27 = arith.truncf %26 : vector<80x80xf32> to vector<80x80xbf16>
    %cst_13 = arith.constant dense<0.000000e+00> : vector<80x16xf32>
    %28 = tpu.matmul %27, %12, %cst_13 {dimension_numbers = #tpu.dot_dimension_numbers<[1], [0], [0], [1], [0, 0, 1, 1], [], []>} : vector<80x80xbf16>, vector<80x16xbf16>, vector<80x16xf32> -> vector<80x16xf32>
    %29 = vector.extract_strided_slice %9 {offsets = [0, 16], sizes = [80, 16], strides = [1, 1]} : vector<80x96xbf16> to vector<80x16xbf16>
    %30 = vector.extract_strided_slice %9 {offsets = [0, 48], sizes = [80, 16], strides = [1, 1]} : vector<80x96xbf16> to vector<80x16xbf16>
    %31 = vector.extract_strided_slice %9 {offsets = [0, 80], sizes = [80, 16], strides = [1, 1]} : vector<80x96xbf16> to vector<80x16xbf16>
    %cst_14 = arith.constant dense<0.000000e+00> : vector<80x80xf32>
    %32 = tpu.matmul %29, %30, %cst_14 {dimension_numbers = #tpu.dot_dimension_numbers<[1], [1], [0], [0], [0, 0, 1, 0], [], []>} : vector<80x16xbf16>, vector<80x16xbf16>, vector<80x80xf32> -> vector<80x80xf32>
    %cst_15 = arith.constant 2.500000e-01 : f32
    %33 = vector.broadcast %cst_15 : f32 to vector<80x80xf32>
    %34 = arith.mulf %32, %33 : vector<80x80xf32>
    %35 = arith.addf %34, %2 : vector<80x80xf32>
    %cst_16 = arith.constant dense<0xFF800000> : vector<80xf32>
    %36 = vector.multi_reduction <maximumf>, %35, %cst_16 [1] : vector<80x80xf32> to vector<80xf32>
    %37 = vector.shape_cast %36 : vector<80xf32> to vector<80x1xf32>
    %38 = vector.broadcast %37 : vector<80x1xf32> to vector<80x80xf32>
    %39 = arith.subf %35, %38 : vector<80x80xf32>
    %40 = math.exp %39 : vector<80x80xf32>
    %cst_17 = arith.constant dense<0.000000e+00> : vector<80xf32>
    %41 = vector.multi_reduction <add>, %40, %cst_17 [1] : vector<80x80xf32> to vector<80xf32>
    %42 = vector.shape_cast %41 : vector<80xf32> to vector<80x1xf32>
    %43 = tpu.reciprocal %42 {approx = true} : vector<80x1xf32> -> vector<80x1xf32>
    %44 = vector.broadcast %43 : vector<80x1xf32> to vector<80x80xf32>
    %45 = arith.mulf %40, %44 : vector<80x80xf32>
    %46 = arith.truncf %45 : vector<80x80xf32> to vector<80x80xbf16>
    %cst_18 = arith.constant dense<0.000000e+00> : vector<80x16xf32>
    %47 = tpu.matmul %46, %31, %cst_18 {dimension_numbers = #tpu.dot_dimension_numbers<[1], [0], [0], [1], [0, 0, 1, 1], [], []>} : vector<80x80xbf16>, vector<80x16xbf16>, vector<80x16xf32> -> vector<80x16xf32>
    %48 = tpu.concatenate %28, %47 in 1 : vector<80x16xf32>, vector<80x16xf32> -> vector<80x32xf32>
    %49 = arith.truncf %48 : vector<80x32xf32> to vector<80x32xbf16>
    %c0_19 = arith.constant 0 : index
    %c96 = arith.constant 96 : index
    %50 = vector.load %arg2[%c0_19, %c96] : memref<32x192xbf16, #tpu.memory_space<vmem>>, vector<32x32xbf16>
    %cst_20 = arith.constant dense<0.000000e+00> : vector<80x32xf32>
    %51 = tpu.matmul %49, %50, %cst_20 {dimension_numbers = #tpu.dot_dimension_numbers<[1], [0], [0], [1], [0, 0, 1, 1], [], []>} : vector<80x32xbf16>, vector<32x32xbf16>, vector<80x32xf32> -> vector<80x32xf32>
    %52 = vector.extract_strided_slice %1 {offsets = [0, 0], sizes = [1, 32], strides = [1, 1]} : vector<9x32xf32> to vector<1x32xf32>
    %53 = vector.broadcast %52 : vector<1x32xf32> to vector<80x32xf32>
    %54 = arith.addf %51, %53 : vector<80x32xf32>
    %55 = arith.addf %0, %54 : vector<80x32xf32>
    %56 = vector.extract_strided_slice %1 {offsets = [3, 0], sizes = [1, 32], strides = [1, 1]} : vector<9x32xf32> to vector<1x32xf32>
    %57 = vector.extract_strided_slice %1 {offsets = [4, 0], sizes = [1, 32], strides = [1, 1]} : vector<9x32xf32> to vector<1x32xf32>
    %cst_21 = arith.constant dense<0.000000e+00> : vector<80xf32>
    %58 = vector.multi_reduction <add>, %55, %cst_21 [1] : vector<80x32xf32> to vector<80xf32>
    %59 = vector.shape_cast %58 : vector<80xf32> to vector<80x1xf32>
    %cst_22 = arith.constant 3.200000e+01 : f32
    %60 = vector.broadcast %cst_22 : f32 to vector<80x1xf32>
    %61 = arith.divf %59, %60 : vector<80x1xf32>
    %62 = vector.broadcast %61 : vector<80x1xf32> to vector<80x32xf32>
    %63 = arith.subf %55, %62 : vector<80x32xf32>
    %64 = arith.mulf %63, %63 : vector<80x32xf32>
    %cst_23 = arith.constant dense<0.000000e+00> : vector<80xf32>
    %65 = vector.multi_reduction <add>, %64, %cst_23 [1] : vector<80x32xf32> to vector<80xf32>
    %66 = vector.shape_cast %65 : vector<80xf32> to vector<80x1xf32>
    %cst_24 = arith.constant 3.200000e+01 : f32
    %67 = vector.broadcast %cst_24 : f32 to vector<80x1xf32>
    %68 = arith.divf %66, %67 : vector<80x1xf32>
    %cst_25 = arith.constant 9.99999974E-6 : f32
    %69 = vector.broadcast %cst_25 : f32 to vector<80x1xf32>
    %70 = arith.addf %68, %69 : vector<80x1xf32>
    %71 = math.rsqrt %70 : vector<80x1xf32>
    %72 = vector.broadcast %71 : vector<80x1xf32> to vector<80x32xf32>
    %73 = arith.mulf %63, %72 : vector<80x32xf32>
    %74 = vector.broadcast %56 : vector<1x32xf32> to vector<80x32xf32>
    %75 = arith.mulf %73, %74 : vector<80x32xf32>
    %76 = vector.broadcast %57 : vector<1x32xf32> to vector<80x32xf32>
    %77 = arith.addf %75, %76 : vector<80x32xf32>
    %78 = arith.truncf %77 : vector<80x32xf32> to vector<80x32xbf16>
    %c0_26 = arith.constant 0 : index
    %c128 = arith.constant 128 : index
    %79 = vector.load %arg2[%c0_26, %c128] : memref<32x192xbf16, #tpu.memory_space<vmem>>, vector<32x32xbf16>
    %cst_27 = arith.constant dense<0.000000e+00> : vector<80x32xf32>
    %80 = tpu.matmul %78, %79, %cst_27 {dimension_numbers = #tpu.dot_dimension_numbers<[1], [0], [0], [1], [0, 0, 1, 1], [], []>} : vector<80x32xbf16>, vector<32x32xbf16>, vector<80x32xf32> -> vector<80x32xf32>
    %81 = vector.extract_strided_slice %1 {offsets = [1, 0], sizes = [1, 32], strides = [1, 1]} : vector<9x32xf32> to vector<1x32xf32>
    %82 = vector.broadcast %81 : vector<1x32xf32> to vector<80x32xf32>
    %83 = arith.addf %80, %82 : vector<80x32xf32>
    %cst_28 = arith.constant 0.000000e+00 : f32
    %84 = vector.broadcast %cst_28 : f32 to vector<80x32xf32>
    %85 = arith.maximumf %83, %84 : vector<80x32xf32>
    %86 = arith.truncf %85 : vector<80x32xf32> to vector<80x32xbf16>
    %c0_29 = arith.constant 0 : index
    %c160 = arith.constant 160 : index
    %87 = vector.load %arg2[%c0_29, %c160] : memref<32x192xbf16, #tpu.memory_space<vmem>>, vector<32x32xbf16>
    %cst_30 = arith.constant dense<0.000000e+00> : vector<80x32xf32>
    %88 = tpu.matmul %86, %87, %cst_30 {dimension_numbers = #tpu.dot_dimension_numbers<[1], [0], [0], [1], [0, 0, 1, 1], [], []>} : vector<80x32xbf16>, vector<32x32xbf16>, vector<80x32xf32> -> vector<80x32xf32>
    %89 = vector.extract_strided_slice %1 {offsets = [2, 0], sizes = [1, 32], strides = [1, 1]} : vector<9x32xf32> to vector<1x32xf32>
    %90 = vector.broadcast %89 : vector<1x32xf32> to vector<80x32xf32>
    %91 = arith.addf %88, %90 : vector<80x32xf32>
    %92 = arith.addf %77, %91 : vector<80x32xf32>
    %93 = vector.extract_strided_slice %1 {offsets = [5, 0], sizes = [1, 32], strides = [1, 1]} : vector<9x32xf32> to vector<1x32xf32>
    %94 = vector.extract_strided_slice %1 {offsets = [6, 0], sizes = [1, 32], strides = [1, 1]} : vector<9x32xf32> to vector<1x32xf32>
    %cst_31 = arith.constant dense<0.000000e+00> : vector<80xf32>
    %95 = vector.multi_reduction <add>, %92, %cst_31 [1] : vector<80x32xf32> to vector<80xf32>
    %96 = vector.shape_cast %95 : vector<80xf32> to vector<80x1xf32>
    %cst_32 = arith.constant 3.200000e+01 : f32
    %97 = vector.broadcast %cst_32 : f32 to vector<80x1xf32>
    %98 = arith.divf %96, %97 : vector<80x1xf32>
    %99 = vector.broadcast %98 : vector<80x1xf32> to vector<80x32xf32>
    %100 = arith.subf %92, %99 : vector<80x32xf32>
    %101 = arith.mulf %100, %100 : vector<80x32xf32>
    %cst_33 = arith.constant dense<0.000000e+00> : vector<80xf32>
    %102 = vector.multi_reduction <add>, %101, %cst_33 [1] : vector<80x32xf32> to vector<80xf32>
    %103 = vector.shape_cast %102 : vector<80xf32> to vector<80x1xf32>
    %cst_34 = arith.constant 3.200000e+01 : f32
    %104 = vector.broadcast %cst_34 : f32 to vector<80x1xf32>
    %105 = arith.divf %103, %104 : vector<80x1xf32>
    %cst_35 = arith.constant 9.99999974E-6 : f32
    %106 = vector.broadcast %cst_35 : f32 to vector<80x1xf32>
    %107 = arith.addf %105, %106 : vector<80x1xf32>
    %108 = math.rsqrt %107 : vector<80x1xf32>
    %109 = vector.broadcast %108 : vector<80x1xf32> to vector<80x32xf32>
    %110 = arith.mulf %100, %109 : vector<80x32xf32>
    %111 = vector.broadcast %93 : vector<1x32xf32> to vector<80x32xf32>
    %112 = arith.mulf %110, %111 : vector<80x32xf32>
    %113 = vector.broadcast %94 : vector<1x32xf32> to vector<80x32xf32>
    %114 = arith.addf %112, %113 : vector<80x32xf32>
    %115 = vector.extract_strided_slice %1 {offsets = [7, 0], sizes = [1, 32], strides = [1, 1]} : vector<9x32xf32> to vector<1x32xf32>
    %116 = vector.extract_strided_slice %1 {offsets = [8, 0], sizes = [1, 32], strides = [1, 1]} : vector<9x32xf32> to vector<1x32xf32>
    %cst_36 = arith.constant dense<0.000000e+00> : vector<80xf32>
    %117 = vector.multi_reduction <add>, %114, %cst_36 [1] : vector<80x32xf32> to vector<80xf32>
    %118 = vector.shape_cast %117 : vector<80xf32> to vector<80x1xf32>
    %cst_37 = arith.constant 3.200000e+01 : f32
    %119 = vector.broadcast %cst_37 : f32 to vector<80x1xf32>
    %120 = arith.divf %118, %119 : vector<80x1xf32>
    %121 = vector.broadcast %120 : vector<80x1xf32> to vector<80x32xf32>
    %122 = arith.subf %114, %121 : vector<80x32xf32>
    %123 = arith.mulf %122, %122 : vector<80x32xf32>
    %cst_38 = arith.constant dense<0.000000e+00> : vector<80xf32>
    %124 = vector.multi_reduction <add>, %123, %cst_38 [1] : vector<80x32xf32> to vector<80xf32>
    %125 = vector.shape_cast %124 : vector<80xf32> to vector<80x1xf32>
    %cst_39 = arith.constant 3.200000e+01 : f32
    %126 = vector.broadcast %cst_39 : f32 to vector<80x1xf32>
    %127 = arith.divf %125, %126 : vector<80x1xf32>
    %cst_40 = arith.constant 9.99999974E-6 : f32
    %128 = vector.broadcast %cst_40 : f32 to vector<80x1xf32>
    %129 = arith.addf %127, %128 : vector<80x1xf32>
    %130 = math.rsqrt %129 : vector<80x1xf32>
    %131 = vector.broadcast %130 : vector<80x1xf32> to vector<80x32xf32>
    %132 = arith.mulf %122, %131 : vector<80x32xf32>
    %133 = vector.broadcast %115 : vector<1x32xf32> to vector<80x32xf32>
    %134 = arith.mulf %132, %133 : vector<80x32xf32>
    %135 = vector.broadcast %116 : vector<1x32xf32> to vector<80x32xf32>
    %136 = arith.addf %134, %135 : vector<80x32xf32>
    %c0_41 = arith.constant 0 : index
    %c0_42 = arith.constant 0 : index
    %137 = vector.load %arg5[%c0_41, %c0_42] : memref<80x32xf32, #tpu.memory_space<vmem>>, vector<80x32xf32>
    tpu.vector_store %arg5[%c0_41, %c0_42], %136 {strides = array<i32>} : memref<80x32xf32, #tpu.memory_space<vmem>>, vector<80x32xf32>,
    return
  }
}

module attributes {stable_mosaic.version = 11 : i64} {
  func.func @_maha_prob_kernel(%arg0: memref<2x4x9x1xf32, #tpu.memory_space<vmem>>, %arg1: memref<2x4x1x9xf32, #tpu.memory_space<vmem>>, %arg2: memref<1x9xf32, #tpu.memory_space<vmem>>, %arg3: memref<2x9x9xf32, #tpu.memory_space<vmem>>) attributes {dimension_semantics = [], scalar_prefetch = 0 : i64, scratch_operands = 0 : i64, tpu.core_type = #tpu.core_type<tc>} {
    %c0 = arith.constant 0 : index
    %c0_0 = arith.constant 0 : index
    %c0_1 = arith.constant 0 : index
    %c0_2 = arith.constant 0 : index
    %0 = vector.load %arg0[%c0, %c0_0, %c0_1, %c0_2] : memref<2x4x9x1xf32, #tpu.memory_space<vmem>>, vector<2x4x9x1xf32>
    %c0_3 = arith.constant 0 : index
    %c0_4 = arith.constant 0 : index
    %c0_5 = arith.constant 0 : index
    %c0_6 = arith.constant 0 : index
    %1 = vector.load %arg1[%c0_3, %c0_4, %c0_5, %c0_6] : memref<2x4x1x9xf32, #tpu.memory_space<vmem>>, vector<2x4x1x9xf32>
    %2 = vector.broadcast %0 : vector<2x4x9x1xf32> to vector<2x4x9x9xf32>
    %3 = vector.broadcast %1 : vector<2x4x1x9xf32> to vector<2x4x9x9xf32>
    %4 = arith.subf %2, %3 : vector<2x4x9x9xf32>
    %5 = arith.mulf %4, %4 : vector<2x4x9x9xf32>
    %cst = arith.constant dense<0.000000e+00> : vector<2x9x9xf32>
    %6 = vector.multi_reduction <add>, %5, %cst [1] : vector<2x4x9x9xf32> to vector<2x9x9xf32>
    %c0_7 = arith.constant 0 : index
    %c0_8 = arith.constant 0 : index
    %7 = vector.load %arg2[%c0_7, %c0_8] : memref<1x9xf32, #tpu.memory_space<vmem>>, vector<1x9xf32>
    %8 = arith.mulf %7, %7 : vector<1x9xf32>
    %9 = vector.shape_cast %8 : vector<1x9xf32> to vector<1x1x9xf32>
    %10 = vector.broadcast %9 : vector<1x1x9xf32> to vector<2x9x9xf32>
    %11 = arith.mulf %6, %10 : vector<2x9x9xf32>
    %cst_9 = arith.constant 1.000000e-10 : f32
    %12 = vector.broadcast %cst_9 : f32 to vector<2x9x9xf32>
    %13 = arith.addf %11, %12 : vector<2x9x9xf32>
    %cst_10 = arith.constant 1.000000e+00 : f32
    %14 = vector.broadcast %cst_10 : f32 to vector<2x9x9xf32>
    %15 = arith.divf %14, %13 : vector<2x9x9xf32>
    %16 = tpu.iota {dimensions = array<i32: 0>} : vector<9x9xi32>
    %17 = tpu.iota {dimensions = array<i32: 1>} : vector<9x9xi32>
    %18 = arith.cmpi eq, %16, %17 : vector<9x9xi32>
    %19 = arith.extui %18 : vector<9x9xi1> to vector<9x9xi32>
    %20 = arith.sitofp %19 : vector<9x9xi32> to vector<9x9xf32>
    %cst_11 = arith.constant 1.000000e+00 : f32
    %21 = vector.broadcast %cst_11 : f32 to vector<9x9xf32>
    %22 = arith.subf %21, %20 : vector<9x9xf32>
    %23 = vector.shape_cast %22 : vector<9x9xf32> to vector<1x9x9xf32>
    %24 = vector.broadcast %23 : vector<1x9x9xf32> to vector<2x9x9xf32>
    %25 = arith.mulf %15, %24 : vector<2x9x9xf32>
    %cst_12 = arith.constant dense<0xFF800000> : vector<2x9xf32>
    %26 = vector.multi_reduction <maximumf>, %25, %cst_12 [2] : vector<2x9x9xf32> to vector<2x9xf32>
    %27 = vector.shape_cast %26 : vector<2x9xf32> to vector<2x9x1xf32>
    %28 = vector.broadcast %27 : vector<2x9x1xf32> to vector<2x9x9xf32>
    %29 = arith.divf %25, %28 : vector<2x9x9xf32>
    %30 = vector.shape_cast %22 : vector<9x9xf32> to vector<1x9x9xf32>
    %31 = vector.broadcast %30 : vector<1x9x9xf32> to vector<2x9x9xf32>
    %32 = arith.mulf %29, %31 : vector<2x9x9xf32>
    %33 = vector.shape_cast %20 : vector<9x9xf32> to vector<1x9x9xf32>
    %34 = vector.broadcast %33 : vector<1x9x9xf32> to vector<2x9x9xf32>
    %35 = arith.addf %32, %34 : vector<2x9x9xf32>
    %cst_13 = arith.constant 9.900000e-01 : f32
    %36 = vector.broadcast %cst_13 : f32 to vector<2x9x9xf32>
    %37 = arith.mulf %35, %36 : vector<2x9x9xf32>
    %c0_14 = arith.constant 0 : index
    %c0_15 = arith.constant 0 : index
    %c0_16 = arith.constant 0 : index
    %38 = vector.load %arg3[%c0_14, %c0_15, %c0_16] : memref<2x9x9xf32, #tpu.memory_space<vmem>>, vector<2x9x9xf32>
    tpu.vector_store %arg3[%c0_14, %c0_15, %c0_16], %37 {strides = array<i32>} : memref<2x9x9xf32, #tpu.memory_space<vmem>>, vector<2x9x9xf32>,
    return
  }
}

module attributes {stable_mosaic.version = 11 : i64} {
  func.func @_encoder_layer_kernel(%arg0: memref<72x32xf32, #tpu.memory_space<vmem>>, %arg1: memref<72x72xf32, #tpu.memory_space<vmem>>, %arg2: memref<32x192xbf16, #tpu.memory_space<vmem>>, %arg3: memref<1x96xf32, #tpu.memory_space<vmem>>, %arg4: memref<9x32xf32, #tpu.memory_space<vmem>>, %arg5: memref<72x32xf32, #tpu.memory_space<vmem>>) attributes {dimension_semantics = [], scalar_prefetch = 0 : i64, scratch_operands = 0 : i64, tpu.core_type = #tpu.core_type<tc>} {
    %c0 = arith.constant 0 : index
    %c0_0 = arith.constant 0 : index
    %0 = vector.load %arg0[%c0, %c0_0] : memref<72x32xf32, #tpu.memory_space<vmem>>, vector<72x32xf32>
    %c0_1 = arith.constant 0 : index
    %c0_2 = arith.constant 0 : index
    %1 = vector.load %arg4[%c0_1, %c0_2] : memref<9x32xf32, #tpu.memory_space<vmem>>, vector<9x32xf32>
    %c0_3 = arith.constant 0 : index
    %c0_4 = arith.constant 0 : index
    %2 = vector.load %arg1[%c0_3, %c0_4] : memref<72x72xf32, #tpu.memory_space<vmem>>, vector<72x72xf32>
    %3 = arith.truncf %0 : vector<72x32xf32> to vector<72x32xbf16>
    %c0_5 = arith.constant 0 : index
    %c0_6 = arith.constant 0 : index
    %4 = vector.load %arg2[%c0_5, %c0_6] : memref<32x192xbf16, #tpu.memory_space<vmem>>, vector<32x96xbf16>
    %cst = arith.constant dense<0.000000e+00> : vector<72x96xf32>
    %5 = tpu.matmul %3, %4, %cst {dimension_numbers = #tpu.dot_dimension_numbers<[1], [0], [0], [1], [0, 0, 1, 1], [], []>} : vector<72x32xbf16>, vector<32x96xbf16>, vector<72x96xf32> -> vector<72x96xf32>
    %c0_7 = arith.constant 0 : index
    %c0_8 = arith.constant 0 : index
    %6 = vector.load %arg3[%c0_7, %c0_8] : memref<1x96xf32, #tpu.memory_space<vmem>>, vector<1x96xf32>
    %7 = vector.broadcast %6 : vector<1x96xf32> to vector<72x96xf32>
    %8 = arith.addf %5, %7 : vector<72x96xf32>
    %9 = arith.truncf %8 : vector<72x96xf32> to vector<72x96xbf16>
    %10 = vector.extract_strided_slice %9 {offsets = [0, 0], sizes = [72, 16], strides = [1, 1]} : vector<72x96xbf16> to vector<72x16xbf16>
    %11 = vector.extract_strided_slice %9 {offsets = [0, 32], sizes = [72, 16], strides = [1, 1]} : vector<72x96xbf16> to vector<72x16xbf16>
    %12 = vector.extract_strided_slice %9 {offsets = [0, 64], sizes = [72, 16], strides = [1, 1]} : vector<72x96xbf16> to vector<72x16xbf16>
    %cst_9 = arith.constant dense<0.000000e+00> : vector<72x72xf32>
    %13 = tpu.matmul %10, %11, %cst_9 {dimension_numbers = #tpu.dot_dimension_numbers<[1], [1], [0], [0], [0, 0, 1, 0], [], []>} : vector<72x16xbf16>, vector<72x16xbf16>, vector<72x72xf32> -> vector<72x72xf32>
    %cst_10 = arith.constant 2.500000e-01 : f32
    %14 = vector.broadcast %cst_10 : f32 to vector<72x72xf32>
    %15 = arith.mulf %13, %14 : vector<72x72xf32>
    %16 = arith.addf %15, %2 : vector<72x72xf32>
    %cst_11 = arith.constant dense<0xFF800000> : vector<72xf32>
    %17 = vector.multi_reduction <maximumf>, %16, %cst_11 [1] : vector<72x72xf32> to vector<72xf32>
    %18 = vector.shape_cast %17 : vector<72xf32> to vector<72x1xf32>
    %19 = vector.broadcast %18 : vector<72x1xf32> to vector<72x72xf32>
    %20 = arith.subf %16, %19 : vector<72x72xf32>
    %21 = math.exp %20 : vector<72x72xf32>
    %cst_12 = arith.constant dense<0.000000e+00> : vector<72xf32>
    %22 = vector.multi_reduction <add>, %21, %cst_12 [1] : vector<72x72xf32> to vector<72xf32>
    %23 = vector.shape_cast %22 : vector<72xf32> to vector<72x1xf32>
    %24 = tpu.reciprocal %23 {approx = true} : vector<72x1xf32> -> vector<72x1xf32>
    %25 = vector.broadcast %24 : vector<72x1xf32> to vector<72x72xf32>
    %26 = arith.mulf %21, %25 : vector<72x72xf32>
    %27 = arith.truncf %26 : vector<72x72xf32> to vector<72x72xbf16>
    %cst_13 = arith.constant dense<0.000000e+00> : vector<72x16xf32>
    %28 = tpu.matmul %27, %12, %cst_13 {dimension_numbers = #tpu.dot_dimension_numbers<[1], [0], [0], [1], [0, 0, 1, 1], [], []>} : vector<72x72xbf16>, vector<72x16xbf16>, vector<72x16xf32> -> vector<72x16xf32>
    %29 = vector.extract_strided_slice %9 {offsets = [0, 16], sizes = [72, 16], strides = [1, 1]} : vector<72x96xbf16> to vector<72x16xbf16>
    %30 = vector.extract_strided_slice %9 {offsets = [0, 48], sizes = [72, 16], strides = [1, 1]} : vector<72x96xbf16> to vector<72x16xbf16>
    %31 = vector.extract_strided_slice %9 {offsets = [0, 80], sizes = [72, 16], strides = [1, 1]} : vector<72x96xbf16> to vector<72x16xbf16>
    %cst_14 = arith.constant dense<0.000000e+00> : vector<72x72xf32>
    %32 = tpu.matmul %29, %30, %cst_14 {dimension_numbers = #tpu.dot_dimension_numbers<[1], [1], [0], [0], [0, 0, 1, 0], [], []>} : vector<72x16xbf16>, vector<72x16xbf16>, vector<72x72xf32> -> vector<72x72xf32>
    %cst_15 = arith.constant 2.500000e-01 : f32
    %33 = vector.broadcast %cst_15 : f32 to vector<72x72xf32>
    %34 = arith.mulf %32, %33 : vector<72x72xf32>
    %35 = arith.addf %34, %2 : vector<72x72xf32>
    %cst_16 = arith.constant dense<0xFF800000> : vector<72xf32>
    %36 = vector.multi_reduction <maximumf>, %35, %cst_16 [1] : vector<72x72xf32> to vector<72xf32>
    %37 = vector.shape_cast %36 : vector<72xf32> to vector<72x1xf32>
    %38 = vector.broadcast %37 : vector<72x1xf32> to vector<72x72xf32>
    %39 = arith.subf %35, %38 : vector<72x72xf32>
    %40 = math.exp %39 : vector<72x72xf32>
    %cst_17 = arith.constant dense<0.000000e+00> : vector<72xf32>
    %41 = vector.multi_reduction <add>, %40, %cst_17 [1] : vector<72x72xf32> to vector<72xf32>
    %42 = vector.shape_cast %41 : vector<72xf32> to vector<72x1xf32>
    %43 = tpu.reciprocal %42 {approx = true} : vector<72x1xf32> -> vector<72x1xf32>
    %44 = vector.broadcast %43 : vector<72x1xf32> to vector<72x72xf32>
    %45 = arith.mulf %40, %44 : vector<72x72xf32>
    %46 = arith.truncf %45 : vector<72x72xf32> to vector<72x72xbf16>
    %cst_18 = arith.constant dense<0.000000e+00> : vector<72x16xf32>
    %47 = tpu.matmul %46, %31, %cst_18 {dimension_numbers = #tpu.dot_dimension_numbers<[1], [0], [0], [1], [0, 0, 1, 1], [], []>} : vector<72x72xbf16>, vector<72x16xbf16>, vector<72x16xf32> -> vector<72x16xf32>
    %48 = tpu.concatenate %28, %47 in 1 : vector<72x16xf32>, vector<72x16xf32> -> vector<72x32xf32>
    %49 = arith.truncf %48 : vector<72x32xf32> to vector<72x32xbf16>
    %c0_19 = arith.constant 0 : index
    %c96 = arith.constant 96 : index
    %50 = vector.load %arg2[%c0_19, %c96] : memref<32x192xbf16, #tpu.memory_space<vmem>>, vector<32x32xbf16>
    %cst_20 = arith.constant dense<0.000000e+00> : vector<72x32xf32>
    %51 = tpu.matmul %49, %50, %cst_20 {dimension_numbers = #tpu.dot_dimension_numbers<[1], [0], [0], [1], [0, 0, 1, 1], [], []>} : vector<72x32xbf16>, vector<32x32xbf16>, vector<72x32xf32> -> vector<72x32xf32>
    %52 = vector.extract_strided_slice %1 {offsets = [0, 0], sizes = [1, 32], strides = [1, 1]} : vector<9x32xf32> to vector<1x32xf32>
    %53 = vector.broadcast %52 : vector<1x32xf32> to vector<72x32xf32>
    %54 = arith.addf %51, %53 : vector<72x32xf32>
    %55 = arith.addf %0, %54 : vector<72x32xf32>
    %56 = vector.extract_strided_slice %1 {offsets = [3, 0], sizes = [1, 32], strides = [1, 1]} : vector<9x32xf32> to vector<1x32xf32>
    %57 = vector.extract_strided_slice %1 {offsets = [4, 0], sizes = [1, 32], strides = [1, 1]} : vector<9x32xf32> to vector<1x32xf32>
    %cst_21 = arith.constant dense<0.000000e+00> : vector<72xf32>
    %58 = vector.multi_reduction <add>, %55, %cst_21 [1] : vector<72x32xf32> to vector<72xf32>
    %59 = vector.shape_cast %58 : vector<72xf32> to vector<72x1xf32>
    %cst_22 = arith.constant 3.200000e+01 : f32
    %60 = vector.broadcast %cst_22 : f32 to vector<72x1xf32>
    %61 = arith.divf %59, %60 : vector<72x1xf32>
    %62 = vector.broadcast %61 : vector<72x1xf32> to vector<72x32xf32>
    %63 = arith.subf %55, %62 : vector<72x32xf32>
    %64 = arith.mulf %63, %63 : vector<72x32xf32>
    %cst_23 = arith.constant dense<0.000000e+00> : vector<72xf32>
    %65 = vector.multi_reduction <add>, %64, %cst_23 [1] : vector<72x32xf32> to vector<72xf32>
    %66 = vector.shape_cast %65 : vector<72xf32> to vector<72x1xf32>
    %cst_24 = arith.constant 3.200000e+01 : f32
    %67 = vector.broadcast %cst_24 : f32 to vector<72x1xf32>
    %68 = arith.divf %66, %67 : vector<72x1xf32>
    %cst_25 = arith.constant 9.99999974E-6 : f32
    %69 = vector.broadcast %cst_25 : f32 to vector<72x1xf32>
    %70 = arith.addf %68, %69 : vector<72x1xf32>
    %71 = math.rsqrt %70 : vector<72x1xf32>
    %72 = vector.broadcast %71 : vector<72x1xf32> to vector<72x32xf32>
    %73 = arith.mulf %63, %72 : vector<72x32xf32>
    %74 = vector.broadcast %56 : vector<1x32xf32> to vector<72x32xf32>
    %75 = arith.mulf %73, %74 : vector<72x32xf32>
    %76 = vector.broadcast %57 : vector<1x32xf32> to vector<72x32xf32>
    %77 = arith.addf %75, %76 : vector<72x32xf32>
    %78 = arith.truncf %77 : vector<72x32xf32> to vector<72x32xbf16>
    %c0_26 = arith.constant 0 : index
    %c128 = arith.constant 128 : index
    %79 = vector.load %arg2[%c0_26, %c128] : memref<32x192xbf16, #tpu.memory_space<vmem>>, vector<32x32xbf16>
    %cst_27 = arith.constant dense<0.000000e+00> : vector<72x32xf32>
    %80 = tpu.matmul %78, %79, %cst_27 {dimension_numbers = #tpu.dot_dimension_numbers<[1], [0], [0], [1], [0, 0, 1, 1], [], []>} : vector<72x32xbf16>, vector<32x32xbf16>, vector<72x32xf32> -> vector<72x32xf32>
    %81 = vector.extract_strided_slice %1 {offsets = [1, 0], sizes = [1, 32], strides = [1, 1]} : vector<9x32xf32> to vector<1x32xf32>
    %82 = vector.broadcast %81 : vector<1x32xf32> to vector<72x32xf32>
    %83 = arith.addf %80, %82 : vector<72x32xf32>
    %cst_28 = arith.constant 0.000000e+00 : f32
    %84 = vector.broadcast %cst_28 : f32 to vector<72x32xf32>
    %85 = arith.maximumf %83, %84 : vector<72x32xf32>
    %86 = arith.truncf %85 : vector<72x32xf32> to vector<72x32xbf16>
    %c0_29 = arith.constant 0 : index
    %c160 = arith.constant 160 : index
    %87 = vector.load %arg2[%c0_29, %c160] : memref<32x192xbf16, #tpu.memory_space<vmem>>, vector<32x32xbf16>
    %cst_30 = arith.constant dense<0.000000e+00> : vector<72x32xf32>
    %88 = tpu.matmul %86, %87, %cst_30 {dimension_numbers = #tpu.dot_dimension_numbers<[1], [0], [0], [1], [0, 0, 1, 1], [], []>} : vector<72x32xbf16>, vector<32x32xbf16>, vector<72x32xf32> -> vector<72x32xf32>
    %89 = vector.extract_strided_slice %1 {offsets = [2, 0], sizes = [1, 32], strides = [1, 1]} : vector<9x32xf32> to vector<1x32xf32>
    %90 = vector.broadcast %89 : vector<1x32xf32> to vector<72x32xf32>
    %91 = arith.addf %88, %90 : vector<72x32xf32>
    %92 = arith.addf %77, %91 : vector<72x32xf32>
    %93 = vector.extract_strided_slice %1 {offsets = [5, 0], sizes = [1, 32], strides = [1, 1]} : vector<9x32xf32> to vector<1x32xf32>
    %94 = vector.extract_strided_slice %1 {offsets = [6, 0], sizes = [1, 32], strides = [1, 1]} : vector<9x32xf32> to vector<1x32xf32>
    %cst_31 = arith.constant dense<0.000000e+00> : vector<72xf32>
    %95 = vector.multi_reduction <add>, %92, %cst_31 [1] : vector<72x32xf32> to vector<72xf32>
    %96 = vector.shape_cast %95 : vector<72xf32> to vector<72x1xf32>
    %cst_32 = arith.constant 3.200000e+01 : f32
    %97 = vector.broadcast %cst_32 : f32 to vector<72x1xf32>
    %98 = arith.divf %96, %97 : vector<72x1xf32>
    %99 = vector.broadcast %98 : vector<72x1xf32> to vector<72x32xf32>
    %100 = arith.subf %92, %99 : vector<72x32xf32>
    %101 = arith.mulf %100, %100 : vector<72x32xf32>
    %cst_33 = arith.constant dense<0.000000e+00> : vector<72xf32>
    %102 = vector.multi_reduction <add>, %101, %cst_33 [1] : vector<72x32xf32> to vector<72xf32>
    %103 = vector.shape_cast %102 : vector<72xf32> to vector<72x1xf32>
    %cst_34 = arith.constant 3.200000e+01 : f32
    %104 = vector.broadcast %cst_34 : f32 to vector<72x1xf32>
    %105 = arith.divf %103, %104 : vector<72x1xf32>
    %cst_35 = arith.constant 9.99999974E-6 : f32
    %106 = vector.broadcast %cst_35 : f32 to vector<72x1xf32>
    %107 = arith.addf %105, %106 : vector<72x1xf32>
    %108 = math.rsqrt %107 : vector<72x1xf32>
    %109 = vector.broadcast %108 : vector<72x1xf32> to vector<72x32xf32>
    %110 = arith.mulf %100, %109 : vector<72x32xf32>
    %111 = vector.broadcast %93 : vector<1x32xf32> to vector<72x32xf32>
    %112 = arith.mulf %110, %111 : vector<72x32xf32>
    %113 = vector.broadcast %94 : vector<1x32xf32> to vector<72x32xf32>
    %114 = arith.addf %112, %113 : vector<72x32xf32>
    %115 = vector.extract_strided_slice %1 {offsets = [7, 0], sizes = [1, 32], strides = [1, 1]} : vector<9x32xf32> to vector<1x32xf32>
    %116 = vector.extract_strided_slice %1 {offsets = [8, 0], sizes = [1, 32], strides = [1, 1]} : vector<9x32xf32> to vector<1x32xf32>
    %cst_36 = arith.constant dense<0.000000e+00> : vector<72xf32>
    %117 = vector.multi_reduction <add>, %114, %cst_36 [1] : vector<72x32xf32> to vector<72xf32>
    %118 = vector.shape_cast %117 : vector<72xf32> to vector<72x1xf32>
    %cst_37 = arith.constant 3.200000e+01 : f32
    %119 = vector.broadcast %cst_37 : f32 to vector<72x1xf32>
    %120 = arith.divf %118, %119 : vector<72x1xf32>
    %121 = vector.broadcast %120 : vector<72x1xf32> to vector<72x32xf32>
    %122 = arith.subf %114, %121 : vector<72x32xf32>
    %123 = arith.mulf %122, %122 : vector<72x32xf32>
    %cst_38 = arith.constant dense<0.000000e+00> : vector<72xf32>
    %124 = vector.multi_reduction <add>, %123, %cst_38 [1] : vector<72x32xf32> to vector<72xf32>
    %125 = vector.shape_cast %124 : vector<72xf32> to vector<72x1xf32>
    %cst_39 = arith.constant 3.200000e+01 : f32
    %126 = vector.broadcast %cst_39 : f32 to vector<72x1xf32>
    %127 = arith.divf %125, %126 : vector<72x1xf32>
    %cst_40 = arith.constant 9.99999974E-6 : f32
    %128 = vector.broadcast %cst_40 : f32 to vector<72x1xf32>
    %129 = arith.addf %127, %128 : vector<72x1xf32>
    %130 = math.rsqrt %129 : vector<72x1xf32>
    %131 = vector.broadcast %130 : vector<72x1xf32> to vector<72x32xf32>
    %132 = arith.mulf %122, %131 : vector<72x32xf32>
    %133 = vector.broadcast %115 : vector<1x32xf32> to vector<72x32xf32>
    %134 = arith.mulf %132, %133 : vector<72x32xf32>
    %135 = vector.broadcast %116 : vector<1x32xf32> to vector<72x32xf32>
    %136 = arith.addf %134, %135 : vector<72x32xf32>
    %c0_41 = arith.constant 0 : index
    %c0_42 = arith.constant 0 : index
    %137 = vector.load %arg5[%c0_41, %c0_42] : memref<72x32xf32, #tpu.memory_space<vmem>>, vector<72x32xf32>
    tpu.vector_store %arg5[%c0_41, %c0_42], %136 {strides = array<i32>} : memref<72x32xf32, #tpu.memory_space<vmem>>, vector<72x32xf32>,
    return
  }
}

module attributes {stable_mosaic.version = 11 : i64} {
  func.func @_head_kernel(%arg0: memref<8x64xf32, #tpu.memory_space<vmem>>, %arg1: memref<64x32xf32, #tpu.memory_space<vmem>>, %arg2: memref<32x32xf32, #tpu.memory_space<vmem>>, %arg3: memref<32x32xf32, #tpu.memory_space<vmem>>, %arg4: memref<32x16xf32, #tpu.memory_space<vmem>>, %arg5: memref<5x32xf32, #tpu.memory_space<vmem>>, %arg6: memref<1x16xf32, #tpu.memory_space<vmem>>, %arg7: memref<8x16xf32, #tpu.memory_space<vmem>>) attributes {dimension_semantics = [], scalar_prefetch = 0 : i64, scratch_operands = 0 : i64, tpu.core_type = #tpu.core_type<tc>} {
    %c0 = arith.constant 0 : index
    %c0_0 = arith.constant 0 : index
    %0 = vector.load %arg5[%c0, %c0_0] : memref<5x32xf32, #tpu.memory_space<vmem>>, vector<5x32xf32>
    %c0_1 = arith.constant 0 : index
    %c0_2 = arith.constant 0 : index
    %1 = vector.load %arg0[%c0_1, %c0_2] : memref<8x64xf32, #tpu.memory_space<vmem>>, vector<8x64xf32>
    %c0_3 = arith.constant 0 : index
    %c0_4 = arith.constant 0 : index
    %2 = vector.load %arg1[%c0_3, %c0_4] : memref<64x32xf32, #tpu.memory_space<vmem>>, vector<64x32xf32>
    %cst = arith.constant dense<0.000000e+00> : vector<8x32xf32>
    %3 = tpu.matmul %1, %2, %cst {dimension_numbers = #tpu.dot_dimension_numbers<[1], [0], [0], [1], [0, 0, 1, 1], [], []>} : vector<8x64xf32>, vector<64x32xf32>, vector<8x32xf32> -> vector<8x32xf32>
    %4 = vector.extract_strided_slice %0 {offsets = [0, 0], sizes = [1, 32], strides = [1, 1]} : vector<5x32xf32> to vector<1x32xf32>
    %5 = vector.broadcast %4 : vector<1x32xf32> to vector<8x32xf32>
    %6 = arith.addf %3, %5 : vector<8x32xf32>
    %cst_5 = arith.constant 0.000000e+00 : f32
    %7 = vector.broadcast %cst_5 : f32 to vector<8x32xf32>
    %8 = arith.cmpf oge, %6, %7 : vector<8x32xf32>
    %cst_6 = arith.constant 0.00999999977 : f32
    %9 = vector.broadcast %cst_6 : f32 to vector<8x32xf32>
    %10 = arith.mulf %9, %6 : vector<8x32xf32>
    %11 = arith.select %8, %6, %10 : vector<8x32xi1>, vector<8x32xf32>
    %12 = vector.extract_strided_slice %0 {offsets = [1, 0], sizes = [1, 32], strides = [1, 1]} : vector<5x32xf32> to vector<1x32xf32>
    %13 = vector.extract_strided_slice %0 {offsets = [2, 0], sizes = [1, 32], strides = [1, 1]} : vector<5x32xf32> to vector<1x32xf32>
    %cst_7 = arith.constant dense<0.000000e+00> : vector<8xf32>
    %14 = vector.multi_reduction <add>, %11, %cst_7 [1] : vector<8x32xf32> to vector<8xf32>
    %15 = vector.shape_cast %14 : vector<8xf32> to vector<8x1xf32>
    %cst_8 = arith.constant 3.200000e+01 : f32
    %16 = vector.broadcast %cst_8 : f32 to vector<8x1xf32>
    %17 = arith.divf %15, %16 : vector<8x1xf32>
    %18 = vector.broadcast %17 : vector<8x1xf32> to vector<8x32xf32>
    %19 = arith.subf %11, %18 : vector<8x32xf32>
    %20 = arith.mulf %19, %19 : vector<8x32xf32>
    %cst_9 = arith.constant dense<0.000000e+00> : vector<8xf32>
    %21 = vector.multi_reduction <add>, %20, %cst_9 [1] : vector<8x32xf32> to vector<8xf32>
    %22 = vector.shape_cast %21 : vector<8xf32> to vector<8x1xf32>
    %cst_10 = arith.constant 3.200000e+01 : f32
    %23 = vector.broadcast %cst_10 : f32 to vector<8x1xf32>
    %24 = arith.divf %22, %23 : vector<8x1xf32>
    %cst_11 = arith.constant 9.99999974E-6 : f32
    %25 = vector.broadcast %cst_11 : f32 to vector<8x1xf32>
    %26 = arith.addf %24, %25 : vector<8x1xf32>
    %27 = math.rsqrt %26 : vector<8x1xf32>
    %28 = vector.broadcast %27 : vector<8x1xf32> to vector<8x32xf32>
    %29 = arith.mulf %19, %28 : vector<8x32xf32>
    %30 = vector.broadcast %12 : vector<1x32xf32> to vector<8x32xf32>
    %31 = arith.mulf %29, %30 : vector<8x32xf32>
    %32 = vector.broadcast %13 : vector<1x32xf32> to vector<8x32xf32>
    %33 = arith.addf %31, %32 : vector<8x32xf32>
    %c0_12 = arith.constant 0 : index
    %c0_13 = arith.constant 0 : index
    %34 = vector.load %arg2[%c0_12, %c0_13] : memref<32x32xf32, #tpu.memory_space<vmem>>, vector<32x32xf32>
    %cst_14 = arith.constant dense<0.000000e+00> : vector<8x32xf32>
    %35 = tpu.matmul %33, %34, %cst_14 {dimension_numbers = #tpu.dot_dimension_numbers<[1], [0], [0], [1], [0, 0, 1, 1], [], []>} : vector<8x32xf32>, vector<32x32xf32>, vector<8x32xf32> -> vector<8x32xf32>
    %36 = vector.extract_strided_slice %0 {offsets = [3, 0], sizes = [1, 32], strides = [1, 1]} : vector<5x32xf32> to vector<1x32xf32>
    %37 = vector.broadcast %36 : vector<1x32xf32> to vector<8x32xf32>
    %38 = arith.addf %35, %37 : vector<8x32xf32>
    %cst_15 = arith.constant 0.000000e+00 : f32
    %39 = vector.broadcast %cst_15 : f32 to vector<8x32xf32>
    %40 = arith.cmpf oge, %38, %39 : vector<8x32xf32>
    %cst_16 = arith.constant 0.00999999977 : f32
    %41 = vector.broadcast %cst_16 : f32 to vector<8x32xf32>
    %42 = arith.mulf %41, %38 : vector<8x32xf32>
    %43 = arith.select %40, %38, %42 : vector<8x32xi1>, vector<8x32xf32>
    %c0_17 = arith.constant 0 : index
    %c0_18 = arith.constant 0 : index
    %44 = vector.load %arg3[%c0_17, %c0_18] : memref<32x32xf32, #tpu.memory_space<vmem>>, vector<32x32xf32>
    %cst_19 = arith.constant dense<0.000000e+00> : vector<8x32xf32>
    %45 = tpu.matmul %43, %44, %cst_19 {dimension_numbers = #tpu.dot_dimension_numbers<[1], [0], [0], [1], [0, 0, 1, 1], [], []>} : vector<8x32xf32>, vector<32x32xf32>, vector<8x32xf32> -> vector<8x32xf32>
    %46 = vector.extract_strided_slice %0 {offsets = [4, 0], sizes = [1, 32], strides = [1, 1]} : vector<5x32xf32> to vector<1x32xf32>
    %47 = vector.broadcast %46 : vector<1x32xf32> to vector<8x32xf32>
    %48 = arith.addf %45, %47 : vector<8x32xf32>
    %cst_20 = arith.constant 0.000000e+00 : f32
    %49 = vector.broadcast %cst_20 : f32 to vector<8x32xf32>
    %50 = arith.maximumf %48, %49 : vector<8x32xf32>
    %c0_21 = arith.constant 0 : index
    %c0_22 = arith.constant 0 : index
    %51 = vector.load %arg4[%c0_21, %c0_22] : memref<32x16xf32, #tpu.memory_space<vmem>>, vector<32x16xf32>
    %cst_23 = arith.constant dense<0.000000e+00> : vector<8x16xf32>
    %52 = tpu.matmul %50, %51, %cst_23 {dimension_numbers = #tpu.dot_dimension_numbers<[1], [0], [0], [1], [0, 0, 1, 1], [], []>} : vector<8x32xf32>, vector<32x16xf32>, vector<8x16xf32> -> vector<8x16xf32>
    %c0_24 = arith.constant 0 : index
    %c0_25 = arith.constant 0 : index
    %53 = vector.load %arg6[%c0_24, %c0_25] : memref<1x16xf32, #tpu.memory_space<vmem>>, vector<1x16xf32>
    %54 = vector.broadcast %53 : vector<1x16xf32> to vector<8x16xf32>
    %55 = arith.addf %52, %54 : vector<8x16xf32>
    %c0_26 = arith.constant 0 : index
    %c0_27 = arith.constant 0 : index
    %56 = vector.load %arg7[%c0_26, %c0_27] : memref<8x16xf32, #tpu.memory_space<vmem>>, vector<8x16xf32>
    tpu.vector_store %arg7[%c0_26, %c0_27], %55 {strides = array<i32>} : memref<8x16xf32, #tpu.memory_space<vmem>>, vector<8x16xf32>,
    return
  }
}

</mosaic_0001>

<llo_original>
// kernel: model_forward.11
$region0: #{model_forward.11}
  #allocation0 [shape = 'u32[]', space=smem, size = 0x4, offset = 0x4, fixed_abs, tag = 'smem constant byte address 0x4 - core index']
  #allocation1 [shape = 'u32[144,128]{1,0:T(1,128)}', space=vmem, size = 0x12000, scoped, tag = 'internal scratch']
  %s0 = inlined_call_operand.vmem [shape: f32[8,17], index: 0, kind: input, shape index: {}]
  %s1 = inlined_call_operand.vmem [shape: f32[8,17], index: 1, kind: input, shape index: {}]
  %s2 = inlined_call_operand.vmem [shape: f32[1,17], index: 2, kind: input, shape index: {}]
  %s3 = inlined_call_operand.vmem [shape: f32[1,17], index: 3, kind: input, shape index: {}]
  %s4 = inlined_call_operand.vmem [shape: f32[17,64], index: 4, kind: input, shape index: {}]
  %s5 = inlined_call_operand.vmem [shape: f32[17,64], index: 5, kind: input, shape index: {}]
  %s6 = inlined_call_operand.vmem [shape: f32[1,64], index: 6, kind: input, shape index: {}]
  %s7 = inlined_call_operand.vmem [shape: f32[8,64], index: 7, kind: output, shape index: {}]
  %s8 = sld [smem:[#allocation0]]
  $region38: #{model_forward.11} parent=0
    _
  %s10 = ssub.s32 1, %s8
  %s11 = scalar_select 0, %s10, %s8
  // Predicated region
  $region2: #{model_forward.11} parent=0 // pred_check
    _
  $region3: #{model_forward.11} parent=0 // pred_check_branch
    %13 = sbr.rel (0) target = $region5
  $region4: #{model_forward.11} parent=0 // pred_region
    _
  $region5: #{model_forward.11} parent=0 // pred_fallthru
    _
  // Predicated region
  $region6: #{model_forward.11} parent=0 // pred_check
    _
  $region7: #{model_forward.11} parent=0 // pred_check_branch
    %15 = sbr.rel (0) target = $region9
  $region8: #{model_forward.11} parent=0 // pred_region
    _
  $region9: #{model_forward.11} parent=0 // pred_fallthru
    _
  // Predicated region
  $region10: #{model_forward.11} parent=0 // pred_check
    _
  $region11: #{model_forward.11} parent=0 // pred_check_branch
    %17 = sbr.rel (0) target = $region13
  $region12: #{model_forward.11} parent=0 // pred_region
    _
  $region13: #{model_forward.11} parent=0 // pred_fallthru
    _
  // Predicated region
  $region14: #{model_forward.11} parent=0 // pred_check
    _
  $region15: #{model_forward.11} parent=0 // pred_check_branch
    %19 = sbr.rel (0) target = $region17
  $region16: #{model_forward.11} parent=0 // pred_region
    _
  $region17: #{model_forward.11} parent=0 // pred_fallthru
    _
  // Predicated region
  $region18: #{model_forward.11} parent=0 // pred_check
    _
  $region19: #{model_forward.11} parent=0 // pred_check_branch
    %21 = sbr.rel (0) target = $region21
  $region20: #{model_forward.11} parent=0 // pred_region
    _
  $region21: #{model_forward.11} parent=0 // pred_fallthru
    _
  // Predicated region
  $region22: #{model_forward.11} parent=0 // pred_check
    _
  $region23: #{model_forward.11} parent=0 // pred_check_branch
    %23 = sbr.rel (0) target = $region25
  $region24: #{model_forward.11} parent=0 // pred_region
    _
  $region25: #{model_forward.11} parent=0 // pred_fallthru
    _
  // Predicated region
  $region26: #{model_forward.11} parent=0 // pred_check
    _
  $region27: #{model_forward.11} parent=0 // pred_check_branch
    %25 = sbr.rel (0) target = $region29
  $region28: #{model_forward.11} parent=0 // pred_region
    _
  $region29: #{model_forward.11} parent=0 // pred_fallthru
    _
  %v26 = vld [vmem:[%s0] sm:$0xff]
  %v27 = vld [vmem:[%s1] sm:$0xff]
  %v28 = vld [vmem:[%s2] sm:$0x1]
  %v29 = vld [vmem:[%s3] sm:$0x1]
  %v31 = vlaneseq
  %v32 = vshrl.u32 %v31, 7
  %v33 = vsub.s32 0, %v32
  %v34 = vrot.slane %v28, %v33
  %v36 = vmul.f32 %v26, %v34
  %v38 = vlaneseq
  %v39 = vshrl.u32 %v38, 7
  %v40 = vsub.s32 0, %v39
  %v41 = vrot.slane %v29, %v40
  %v43 = vmul.f32 %v27, %v41
  %v44 = vsub.f32 %v36, %v43
  %v45 = vmul.f32 %v26, %v41
  %v46 = vmul.f32 %v27, %v34
  %v47 = vadd.f32 %v45, %v46
  %v48 = vld [vmem:[%s4] sm:$0xff]
  %v49 = vld [vmem:[%s4 + $0x8] sm:$0xff]
  %v50 = vld [vmem:[%s4 + $0x10] sm:$0x1]
  %v51 = vld [vmem:[%s5] sm:$0xff]
  %v52 = vld [vmem:[%s5 + $0x8] sm:$0xff]
  %v53 = vld [vmem:[%s5 + $0x10] sm:$0x1]
  %vm54 = vcmask 138240
  %v56 = vsel %vm54, %v47, 0
  %vm58 = vcmask 1040384
  %v60 = vsel %vm58, %v53, 0
  %62 = vmatprep.subr.mxu0 0.0
  %63 = vmatpush1.msra.mxu0 %v51
  %64 = vmatprep.subr.mxu0 0.0
  %65 = vmatpush1.msra.mxu0 %v52
  %66 = vmatprep.subr.mxu0 0.0
  %67 = vmatpush1.msra.mxu0 %v60
  %68 = vmatprep.subr.mxu0 0.0
  %69 = vmatpush1.msra.mxu0 0.0
  %70 = vmatprep.subr.mxu0 0.0
  %71 = vmatpush1.msra.mxu0 0.0
  %72 = vmatprep.subr.mxu0 0.0
  %73 = vmatpush1.msra.mxu0 0.0
  %74 = vmatprep.subr.mxu0 0.0
  %75 = vmatpush1.msra.mxu0 0.0
  %76 = vmatprep.subr.mxu0 0.0
  %77 = vmatpush1.msra.mxu0 0.0
  %78 = vmatprep.subr.mxu0 0.0
  %79 = vmatpush1.msra.mxu0 0.0
  %80 = vmatprep.subr.mxu0 0.0
  %81 = vmatpush1.msra.mxu0 0.0
  %82 = vmatprep.subr.mxu0 0.0
  %83 = vmatpush1.msra.mxu0 0.0
  %84 = vmatprep.subr.mxu0 0.0
  %85 = vmatpush1.msra.mxu0 0.0
  %86 = vmatprep.subr.mxu0 0.0
  %87 = vmatpush1.msra.mxu0 0.0
  %88 = vmatprep.subr.mxu0 0.0
  %89 = vmatpush1.msra.mxu0 0.0
  %90 = vmatprep.subr.mxu0 0.0
  %91 = vmatpush1.msra.mxu0 0.0
  %92 = vmatprep.subr.mxu0 0.0
  %93 = vmatpush1.msra.mxu0 0.0
  %94 = vmatprep.subr.mxu0 0.0
  %95 = vmatpush1.msra.mxu0 0.0
  %96 = vmatprep.subr.mxu0 0.0
  %97 = vmatpush1.msra.mxu0 0.0
  %98 = vmatprep.subr.mxu0 0.0
  %99 = vmatpush1.msra.mxu0 0.0
  %100 = vmatprep.subr.mxu0 0.0
  %101 = vmatpush1.msra.mxu0 0.0
  %102 = vmatprep.subr.mxu0 0.0
  %103 = vmatpush1.msra.mxu0 0.0
  %104 = vmatprep.subr.mxu0 0.0
  %105 = vmatpush1.msra.mxu0 0.0
  %106 = vmatprep.subr.mxu0 0.0
  %107 = vmatpush1.msra.mxu0 0.0
  %108 = vmatprep.subr.mxu0 0.0
  %109 = vmatpush1.msra.mxu0 0.0
  %110 = vmatprep.subr.mxu0 0.0
  %111 = vmatpush1.msra.mxu0 0.0
  %112 = vmatprep.subr.mxu0 0.0
  %113 = vmatpush1.msra.mxu0 0.0
  %114 = vmatprep.subr.mxu0 0.0
  %115 = vmatpush1.msra.mxu0 0.0
  %116 = vmatprep.subr.mxu0 0.0
  %117 = vmatpush1.msra.mxu0 0.0
  %118 = vmatprep.subr.mxu0 0.0
  %119 = vmatpush1.msra.mxu0 0.0
  %120 = vmatprep.subr.mxu0 0.0
  %121 = vmatpush1.msra.mxu0 0.0
  %122 = vmatprep.subr.mxu0 0.0
  %123 = vmatpush1.msra.mxu0 0.0
  %124 = vmatprep.subr.mxu0 0.0
  %125 = vmatpush1.msra.mxu0 0.0
  %126 = vmatprep.mubr.f32.mxu0 0.0
  %127 = vmatmul.mubr.f32.gmra.mrb[0].mxu0 %v56
  %v128 = vpop.f32.mrb[0].mxu0
  %v129 = vadd.f32 0.0, %v128
  %v130 = vpop.f32.mrb[0].mxu0
  %131 = vdwg.mxu0
  %v133 = vsel %vm54, %v44, 0
  %v136 = vsel %vm58, %v50, 0
  %138 = vmatprep.subr.mxu0 0.0
  %139 = vmatpush1.msra.mxu0 %v48
  %140 = vmatprep.subr.mxu0 0.0
  %141 = vmatpush1.msra.mxu0 %v49
  %142 = vmatprep.subr.mxu0 0.0
  %143 = vmatpush1.msra.mxu0 %v136
  %144 = vmatprep.subr.mxu0 0.0
  %145 = vmatpush1.msra.mxu0 0.0
  %146 = vmatprep.subr.mxu0 0.0
  %147 = vmatpush1.msra.mxu0 0.0
  %148 = vmatprep.subr.mxu0 0.0
  %149 = vmatpush1.msra.mxu0 0.0
  %150 = vmatprep.subr.mxu0 0.0
  %151 = vmatpush1.msra.mxu0 0.0
  %152 = vmatprep.subr.mxu0 0.0
  %153 = vmatpush1.msra.mxu0 0.0
  %154 = vmatprep.subr.mxu0 0.0
  %155 = vmatpush1.msra.mxu0 0.0
  %156 = vmatprep.subr.mxu0 0.0
  %157 = vmatpush1.msra.mxu0 0.0
  %158 = vmatprep.subr.mxu0 0.0
  %159 = vmatpush1.msra.mxu0 0.0
  %160 = vmatprep.subr.mxu0 0.0
  %161 = vmatpush1.msra.mxu0 0.0
  %162 = vmatprep.subr.mxu0 0.0
  %163 = vmatpush1.msra.mxu0 0.0
  %164 = vmatprep.subr.mxu0 0.0
  %165 = vmatpush1.msra.mxu0 0.0
  %166 = vmatprep.subr.mxu0 0.0
  %167 = vmatpush1.msra.mxu0 0.0
  %168 = vmatprep.subr.mxu0 0.0
  %169 = vmatpush1.msra.mxu0 0.0
  %170 = vmatprep.subr.mxu0 0.0
  %171 = vmatpush1.msra.mxu0 0.0
  %172 = vmatprep.subr.mxu0 0.0
  %173 = vmatpush1.msra.mxu0 0.0
  %174 = vmatprep.subr.mxu0 0.0
  %175 = vmatpush1.msra.mxu0 0.0
  %176 = vmatprep.subr.mxu0 0.0
  %177 = vmatpush1.msra.mxu0 0.0
  %178 = vmatprep.subr.mxu0 0.0
  %179 = vmatpush1.msra.mxu0 0.0
  %180 = vmatprep.subr.mxu0 0.0
  %181 = vmatpush1.msra.mxu0 0.0
  %182 = vmatprep.subr.mxu0 0.0
  %183 = vmatpush1.msra.mxu0 0.0
  %184 = vmatprep.subr.mxu0 0.0
  %185 = vmatpush1.msra.mxu0 0.0
  %186 = vmatprep.subr.mxu0 0.0
  %187 = vmatpush1.msra.mxu0 0.0
  %188 = vmatprep.subr.mxu0 0.0
  %189 = vmatpush1.msra.mxu0 0.0
  %190 = vmatprep.subr.mxu0 0.0
  %191 = vmatpush1.msra.mxu0 0.0
  %192 = vmatprep.subr.mxu0 0.0
  %193 = vmatpush1.msra.mxu0 0.0
  %194 = vmatprep.subr.mxu0 0.0
  %195 = vmatpush1.msra.mxu0 0.0
  %196 = vmatprep.subr.mxu0 0.0
  %197 = vmatpush1.msra.mxu0 0.0
  %198 = vmatprep.subr.mxu0 0.0
  %199 = vmatpush1.msra.mxu0 0.0
  %200 = vmatprep.subr.mxu0 0.0
  %201 = vmatpush1.msra.mxu0 0.0
  %202 = vmatprep.mubr.f32.mxu0 0.0
  %203 = vmatmul.mubr.f32.gmra.mrb[0].mxu0 %v133
  %v204 = vpop.f32.mrb[0].mxu0
  %v205 = vadd.f32 %v129, %v204
  %v206 = vpop.f32.mrb[0].mxu0
  %207 = vdwg.mxu0
  %v208 = vld [vmem:[%s6] sm:$0x1]
  %v210 = vlaneseq
  %v211 = vshrl.u32 %v210, 7
  %v212 = vsub.s32 0, %v211
  %v213 = vrot.slane %v208, %v212
  %v215 = vadd.f32 %v205, %v213
  %vm216 = vcmask 523264
  %217 = vst.msk [vmem:[%s7] sm:$0xff] %vm216, %v215
  // Predicated region
  $region30: #{model_forward.11} parent=0 // pred_check
    _
  $region31: #{model_forward.11} parent=0 // pred_check_branch
    %219 = sbr.rel (0) target = $region33
  $region32: #{model_forward.11} parent=0 // pred_region
    _
  $region33: #{model_forward.11} parent=0 // pred_fallthru
    _
  // Predicated region
  $region34: #{model_forward.11} parent=0 // pred_check
    _
  $region35: #{model_forward.11} parent=0 // pred_check_branch
    %221 = sbr.rel (0) target = $region37
  $region36: #{model_forward.11} parent=0 // pred_region
    _
  $region37: #{model_forward.11} parent=0 // pred_fallthru
    _

// kernel: model_forward.10
$region0: #{model_forward.10}
  #allocation0 [shape = 'u32[]', space=smem, size = 0x4, offset = 0x4, fixed_abs, tag = 'smem constant byte address 0x4 - core index']
  #allocation1 [shape = 'u32[144,128]{1,0:T(1,128)}', space=vmem, size = 0x12000, scoped, tag = 'internal scratch']
  %s0 = inlined_call_operand.vmem [shape: f32[8,16], index: 0, kind: input, shape index: {}]
  %s1 = inlined_call_operand.vmem [shape: f32[16,32], index: 1, kind: input, shape index: {}]
  %s2 = inlined_call_operand.vmem [shape: f32[3,32], index: 2, kind: input, shape index: {}]
  %s3 = inlined_call_operand.vmem [shape: f32[32,16], index: 3, kind: input, shape index: {}]
  %s4 = inlined_call_operand.vmem [shape: f32[8,32], index: 4, kind: output, shape index: {0}]
  %s5 = inlined_call_operand.vmem [shape: f32[8,16], index: 5, kind: output, shape index: {1}]
  %6 = xla_tuple %s4, %s5
  %s7 = sld [smem:[#allocation0]]
  $region34: #{model_forward.10} parent=0
    _
  %s9 = ssub.s32 1, %s7
  %s10 = scalar_select 0, %s9, %s7
  // Predicated region
  $region2: #{model_forward.10} parent=0 // pred_check
    _
  $region3: #{model_forward.10} parent=0 // pred_check_branch
    %12 = sbr.rel (0) target = $region5
  $region4: #{model_forward.10} parent=0 // pred_region
    _
  $region5: #{model_forward.10} parent=0 // pred_fallthru
    _
  // Predicated region
  $region6: #{model_forward.10} parent=0 // pred_check
    _
  $region7: #{model_forward.10} parent=0 // pred_check_branch
    %14 = sbr.rel (0) target = $region9
  $region8: #{model_forward.10} parent=0 // pred_region
    _
  $region9: #{model_forward.10} parent=0 // pred_fallthru
    _
  // Predicated region
  $region10: #{model_forward.10} parent=0 // pred_check
    _
  $region11: #{model_forward.10} parent=0 // pred_check_branch
    %16 = sbr.rel (0) target = $region13
  $region12: #{model_forward.10} parent=0 // pred_region
    _
  $region13: #{model_forward.10} parent=0 // pred_fallthru
    _
  // Predicated region
  $region14: #{model_forward.10} parent=0 // pred_check
    _
  $region15: #{model_forward.10} parent=0 // pred_check_branch
    %18 = sbr.rel (0) target = $region17
  $region16: #{model_forward.10} parent=0 // pred_region
    _
  $region17: #{model_forward.10} parent=0 // pred_fallthru
    _
  %v19 = vld [vmem:[%s2] sm:$0x7]
  %v20 = vld [vmem:[%s0] sm:$0xff]
  %v21 = vld [vmem:[%s1] sm:$0xff]
  %v22 = vld [vmem:[%s1 + $0x8] sm:$0xff]
  %v23 = vlaneseq
  %v24 = vshrl.u32 %v23, 7
  %v25 = vsub.s32 0, %v24
  %v26 = vrot.slane %v19, %v25
  %vm27 = vcmask 130048
  %v29 = vsel %vm27, %v20, 0
  %31 = vmatprep.subr.mxu0 0.0
  %32 = vmatpush1.msra.mxu0 %v21
  %33 = vmatprep.subr.mxu0 0.0
  %34 = vmatpush1.msra.mxu0 %v22
  %35 = vmatprep.subr.mxu0 0.0
  %36 = vmatpush1.msra.mxu0 0.0
  %37 = vmatprep.subr.mxu0 0.0
  %38 = vmatpush1.msra.mxu0 0.0
  %39 = vmatprep.subr.mxu0 0.0
  %40 = vmatpush1.msra.mxu0 0.0
  %41 = vmatprep.subr.mxu0 0.0
  %42 = vmatpush1.msra.mxu0 0.0
  %43 = vmatprep.subr.mxu0 0.0
  %44 = vmatpush1.msra.mxu0 0.0
  %45 = vmatprep.subr.mxu0 0.0
  %46 = vmatpush1.msra.mxu0 0.0
  %47 = vmatprep.subr.mxu0 0.0
  %48 = vmatpush1.msra.mxu0 0.0
  %49 = vmatprep.subr.mxu0 0.0
  %50 = vmatpush1.msra.mxu0 0.0
  %51 = vmatprep.subr.mxu0 0.0
  %52 = vmatpush1.msra.mxu0 0.0
  %53 = vmatprep.subr.mxu0 0.0
  %54 = vmatpush1.msra.mxu0 0.0
  %55 = vmatprep.subr.mxu0 0.0
  %56 = vmatpush1.msra.mxu0 0.0
  %57 = vmatprep.subr.mxu0 0.0
  %58 = vmatpush1.msra.mxu0 0.0
  %59 = vmatprep.subr.mxu0 0.0
  %60 = vmatpush1.msra.mxu0 0.0
  %61 = vmatprep.subr.mxu0 0.0
  %62 = vmatpush1.msra.mxu0 0.0
  %63 = vmatprep.subr.mxu0 0.0
  %64 = vmatpush1.msra.mxu0 0.0
  %65 = vmatprep.subr.mxu0 0.0
  %66 = vmatpush1.msra.mxu0 0.0
  %67 = vmatprep.subr.mxu0 0.0
  %68 = vmatpush1.msra.mxu0 0.0
  %69 = vmatprep.subr.mxu0 0.0
  %70 = vmatpush1.msra.mxu0 0.0
  %71 = vmatprep.subr.mxu0 0.0
  %72 = vmatpush1.msra.mxu0 0.0
  %73 = vmatprep.subr.mxu0 0.0
  %74 = vmatpush1.msra.mxu0 0.0
  %75 = vmatprep.subr.mxu0 0.0
  %76 = vmatpush1.msra.mxu0 0.0
  %77 = vmatprep.subr.mxu0 0.0
  %78 = vmatpush1.msra.mxu0 0.0
  %79 = vmatprep.subr.mxu0 0.0
  %80 = vmatpush1.msra.mxu0 0.0
  %81 = vmatprep.subr.mxu0 0.0
  %82 = vmatpush1.msra.mxu0 0.0
  %83 = vmatprep.subr.mxu0 0.0
  %84 = vmatpush1.msra.mxu0 0.0
  %85 = vmatprep.subr.mxu0 0.0
  %86 = vmatpush1.msra.mxu0 0.0
  %87 = vmatprep.subr.mxu0 0.0
  %88 = vmatpush1.msra.mxu0 0.0
  %89 = vmatprep.subr.mxu0 0.0
  %90 = vmatpush1.msra.mxu0 0.0
  %91 = vmatprep.subr.mxu0 0.0
  %92 = vmatpush1.msra.mxu0 0.0
  %93 = vmatprep.subr.mxu0 0.0
  %94 = vmatpush1.msra.mxu0 0.0
  %95 = vmatprep.mubr.f32.mxu0 0.0
  %96 = vmatmul.mubr.f32.gmra.mrb[0].mxu0 %v29
  %v97 = vpop.f32.mrb[0].mxu0
  %v98 = vadd.f32 %v26, %v97
  %v99 = vpop.f32.mrb[0].mxu0
  %100 = vdwg.mxu0
  %vm101 = vcmask 261120
  %v102 = vsel %vm101, %v98, 0.0
  %103 = vadd.xlane.f32.xlu0 %v102
  %v104 = vpop.xlane.xlu0 %103
  %v105 = vrcp.pop 32.0
  %v106 = vmul.f32 %v104, %v105
  %v107 = vsub.f32 %v98, %v106
  %v108 = vmul.f32 %v107, %v107
  %v109 = vsel %vm101, %v108, 0.0
  %110 = vadd.xlane.f32.xlu0 %v109
  %v111 = vpop.xlane.xlu0 %110
  %v112 = vmul.f32 %v111, %v105
  %v113 = vadd.f32 %v112, 1e-05
  %v114 = vrsqrt.pop %v113
  %v115 = vmul.f32 %v107, %v114
  %v116 = vlaneseq
  %v117 = vshrl.u32 %v116, 7
  %v118 = vsub.s32 1, %v117
  %v119 = vrot.slane %v19, %v118
  %v120 = vmul.f32 %v115, %v119
  %v121 = vlaneseq
  %v122 = vshrl.u32 %v121, 7
  %v123 = vsub.s32 2, %v122
  %v124 = vrot.slane %v19, %v123
  %v125 = vadd.f32 %v120, %v124
  %126 = vst.msk [vmem:[%s4] sm:$0xff] %vm101, %v125
  %v127 = vld [vmem:[%s3] sm:$0xff]
  %v128 = vld [vmem:[%s3 + $0x8] sm:$0xff]
  %v129 = vld [vmem:[%s3 + $0x10] sm:$0xff]
  %v130 = vld [vmem:[%s3 + $0x18] sm:$0xff]
  %v132 = vsel %vm101, %v125, 0
  %134 = vmatprep.subr.mxu0 0.0
  %135 = vmatpush1.msra.mxu0 %v127
  %136 = vmatprep.subr.mxu0 0.0
  %137 = vmatpush1.msra.mxu0 %v128
  %138 = vmatprep.subr.mxu0 0.0
  %139 = vmatpush1.msra.mxu0 %v129
  %140 = vmatprep.subr.mxu0 0.0
  %141 = vmatpush1.msra.mxu0 %v130
  %142 = vmatprep.subr.mxu0 0.0
  %143 = vmatpush1.msra.mxu0 0.0
  %144 = vmatprep.subr.mxu0 0.0
  %145 = vmatpush1.msra.mxu0 0.0
  %146 = vmatprep.subr.mxu0 0.0
  %147 = vmatpush1.msra.mxu0 0.0
  %148 = vmatprep.subr.mxu0 0.0
  %149 = vmatpush1.msra.mxu0 0.0
  %150 = vmatprep.subr.mxu0 0.0
  %151 = vmatpush1.msra.mxu0 0.0
  %152 = vmatprep.subr.mxu0 0.0
  %153 = vmatpush1.msra.mxu0 0.0
  %154 = vmatprep.subr.mxu0 0.0
  %155 = vmatpush1.msra.mxu0 0.0
  %156 = vmatprep.subr.mxu0 0.0
  %157 = vmatpush1.msra.mxu0 0.0
  %158 = vmatprep.subr.mxu0 0.0
  %159 = vmatpush1.msra.mxu0 0.0
  %160 = vmatprep.subr.mxu0 0.0
  %161 = vmatpush1.msra.mxu0 0.0
  %162 = vmatprep.subr.mxu0 0.0
  %163 = vmatpush1.msra.mxu0 0.0
  %164 = vmatprep.subr.mxu0 0.0
  %165 = vmatpush1.msra.mxu0 0.0
  %166 = vmatprep.subr.mxu0 0.0
  %167 = vmatpush1.msra.mxu0 0.0
  %168 = vmatprep.subr.mxu0 0.0
  %169 = vmatpush1.msra.mxu0 0.0
  %170 = vmatprep.subr.mxu0 0.0
  %171 = vmatpush1.msra.mxu0 0.0
  %172 = vmatprep.subr.mxu0 0.0
  %173 = vmatpush1.msra.mxu0 0.0
  %174 = vmatprep.subr.mxu0 0.0
  %175 = vmatpush1.msra.mxu0 0.0
  %176 = vmatprep.subr.mxu0 0.0
  %177 = vmatpush1.msra.mxu0 0.0
  %178 = vmatprep.subr.mxu0 0.0
  %179 = vmatpush1.msra.mxu0 0.0
  %180 = vmatprep.subr.mxu0 0.0
  %181 = vmatpush1.msra.mxu0 0.0
  %182 = vmatprep.subr.mxu0 0.0
  %183 = vmatpush1.msra.mxu0 0.0
  %184 = vmatprep.subr.mxu0 0.0
  %185 = vmatpush1.msra.mxu0 0.0
  %186 = vmatprep.subr.mxu0 0.0
  %187 = vmatpush1.msra.mxu0 0.0
  %188 = vmatprep.subr.mxu0 0.0
  %189 = vmatpush1.msra.mxu0 0.0
  %190 = vmatprep.subr.mxu0 0.0
  %191 = vmatpush1.msra.mxu0 0.0
  %192 = vmatprep.subr.mxu0 0.0
  %193 = vmatpush1.msra.mxu0 0.0
  %194 = vmatprep.subr.mxu0 0.0
  %195 = vmatpush1.msra.mxu0 0.0
  %196 = vmatprep.subr.mxu0 0.0
  %197 = vmatpush1.msra.mxu0 0.0
  %198 = vmatprep.mubr.f32.mxu0 0.0
  %199 = vmatmul.mubr.f32.gmra.mrb[0].mxu0 %v132
  %v200 = vpop.f32.mrb[0].mxu0
  %v201 = vadd.f32 0.0, %v200
  %v202 = vpop.f32.mrb[0].mxu0
  %203 = vdwg.mxu0
  %204 = vst.msk [vmem:[%s5] sm:$0xff] %vm27, %v201
  // Predicated region
  $region18: #{model_forward.10} parent=0 // pred_check
    _
  $region19: #{model_forward.10} parent=0 // pred_check_branch
    %206 = sbr.rel (0) target = $region21
  $region20: #{model_forward.10} parent=0 // pred_region
    _
  $region21: #{model_forward.10} parent=0 // pred_fallthru
    _
  // Predicated region
  $region22: #{model_forward.10} parent=0 // pred_check
    _
  $region23: #{model_forward.10} parent=0 // pred_check_branch
    %208 = sbr.rel (0) target = $region25
  $region24: #{model_forward.10} parent=0 // pred_region
    _
  $region25: #{model_forward.10} parent=0 // pred_fallthru
    _
  // Predicated region
  $region26: #{model_forward.10} parent=0 // pred_check
    _
  $region27: #{model_forward.10} parent=0 // pred_check_branch
    %210 = sbr.rel (0) target = $region29
  $region28: #{model_forward.10} parent=0 // pred_region
    _
  $region29: #{model_forward.10} parent=0 // pred_fallthru
    _
  // Predicated region
  $region30: #{model_forward.10} parent=0 // pred_check
    _
  $region31: #{model_forward.10} parent=0 // pred_check_branch
    %212 = sbr.rel (0) target = $region33
  $region32: #{model_forward.10} parent=0 // pred_region
    _
  $region33: #{model_forward.10} parent=0 // pred_fallthru
    _

// kernel: neg.18
$region0: #{neg.18}
  #allocation0 [shape = 's32[1]{0}', space=sflag, size = 0x4, scoped, tag = 'scoped memory for neg.18']
  %s0 = inlined_call_operand.vmem [shape: f32[32], index: 0, kind: input, shape index: {}]
  %s1 = inlined_call_operand.vmem [shape: f32[32], index: 1, kind: output, shape index: {}]
  %v2 = vld [vmem:[%s0] sm:$0x1]
  %3 = xla_tuple %v2
  %4 = xla_tuple %3
  %v5 = vxor.u32 %v2, 2147483648
  %6 = xla_tuple %v5
  %7 = vst [vmem:[%s1] sm:$0x1] %v5

// kernel: model_forward.14
$region0: #{model_forward.14}
  #allocation0 [shape = 'u32[]', space=smem, size = 0x4, offset = 0x4, fixed_abs, tag = 'smem constant byte address 0x4 - core index']
  #allocation1 [shape = 'u32[144,128]{1,0:T(1,128)}', space=vmem, size = 0x12000, scoped, tag = 'internal scratch']
  %s0 = inlined_call_operand.vmem [shape: f32[8,9], index: 0, kind: input, shape index: {}]
  %s1 = inlined_call_operand.vmem [shape: f32[8,9], index: 1, kind: input, shape index: {}]
  %s2 = inlined_call_operand.vmem [shape: f32[1,9], index: 2, kind: input, shape index: {}]
  %s3 = inlined_call_operand.vmem [shape: f32[1,9], index: 3, kind: input, shape index: {}]
  %s4 = inlined_call_operand.vmem [shape: f32[9,64], index: 4, kind: input, shape index: {}]
  %s5 = inlined_call_operand.vmem [shape: f32[9,64], index: 5, kind: input, shape index: {}]
  %s6 = inlined_call_operand.vmem [shape: f32[1,64], index: 6, kind: input, shape index: {}]
  %s7 = inlined_call_operand.vmem [shape: f32[8,64], index: 7, kind: output, shape index: {}]
  %s8 = sld [smem:[#allocation0]]
  $region38: #{model_forward.14} parent=0
    _
  %s10 = ssub.s32 1, %s8
  %s11 = scalar_select 0, %s10, %s8
  // Predicated region
  $region2: #{model_forward.14} parent=0 // pred_check
    _
  $region3: #{model_forward.14} parent=0 // pred_check_branch
    %13 = sbr.rel (0) target = $region5
  $region4: #{model_forward.14} parent=0 // pred_region
    _
  $region5: #{model_forward.14} parent=0 // pred_fallthru
    _
  // Predicated region
  $region6: #{model_forward.14} parent=0 // pred_check
    _
  $region7: #{model_forward.14} parent=0 // pred_check_branch
    %15 = sbr.rel (0) target = $region9
  $region8: #{model_forward.14} parent=0 // pred_region
    _
  $region9: #{model_forward.14} parent=0 // pred_fallthru
    _
  // Predicated region
  $region10: #{model_forward.14} parent=0 // pred_check
    _
  $region11: #{model_forward.14} parent=0 // pred_check_branch
    %17 = sbr.rel (0) target = $region13
  $region12: #{model_forward.14} parent=0 // pred_region
    _
  $region13: #{model_forward.14} parent=0 // pred_fallthru
    _
  // Predicated region
  $region14: #{model_forward.14} parent=0 // pred_check
    _
  $region15: #{model_forward.14} parent=0 // pred_check_branch
    %19 = sbr.rel (0) target = $region17
  $region16: #{model_forward.14} parent=0 // pred_region
    _
  $region17: #{model_forward.14} parent=0 // pred_fallthru
    _
  // Predicated region
  $region18: #{model_forward.14} parent=0 // pred_check
    _
  $region19: #{model_forward.14} parent=0 // pred_check_branch
    %21 = sbr.rel (0) target = $region21
  $region20: #{model_forward.14} parent=0 // pred_region
    _
  $region21: #{model_forward.14} parent=0 // pred_fallthru
    _
  // Predicated region
  $region22: #{model_forward.14} parent=0 // pred_check
    _
  $region23: #{model_forward.14} parent=0 // pred_check_branch
    %23 = sbr.rel (0) target = $region25
  $region24: #{model_forward.14} parent=0 // pred_region
    _
  $region25: #{model_forward.14} parent=0 // pred_fallthru
    _
  // Predicated region
  $region26: #{model_forward.14} parent=0 // pred_check
    _
  $region27: #{model_forward.14} parent=0 // pred_check_branch
    %25 = sbr.rel (0) target = $region29
  $region28: #{model_forward.14} parent=0 // pred_region
    _
  $region29: #{model_forward.14} parent=0 // pred_fallthru
    _
  %v26 = vld [vmem:[%s0] sm:$0xff]
  %v27 = vld [vmem:[%s1] sm:$0xff]
  %v28 = vld [vmem:[%s2] sm:$0x1]
  %v29 = vld [vmem:[%s3] sm:$0x1]
  %v31 = vlaneseq
  %v32 = vshrl.u32 %v31, 7
  %v33 = vsub.s32 0, %v32
  %v34 = vrot.slane %v28, %v33
  %v36 = vmul.f32 %v26, %v34
  %v38 = vlaneseq
  %v39 = vshrl.u32 %v38, 7
  %v40 = vsub.s32 0, %v39
  %v41 = vrot.slane %v29, %v40
  %v43 = vmul.f32 %v27, %v41
  %v44 = vsub.f32 %v36, %v43
  %v45 = vmul.f32 %v26, %v41
  %v46 = vmul.f32 %v27, %v34
  %v47 = vadd.f32 %v45, %v46
  %v48 = vld [vmem:[%s4] sm:$0xff]
  %v49 = vld [vmem:[%s4 + $0x8] sm:$0x1]
  %v50 = vld [vmem:[%s5] sm:$0xff]
  %v51 = vld [vmem:[%s5 + $0x8] sm:$0x1]
  %vm52 = vcmask 72704
  %v54 = vsel %vm52, %v47, 0
  %vm56 = vcmask 1040384
  %v58 = vsel %vm56, %v51, 0
  %60 = vmatprep.subr.mxu0 0.0
  %61 = vmatpush1.msra.mxu0 %v50
  %62 = vmatprep.subr.mxu0 0.0
  %63 = vmatpush1.msra.mxu0 %v58
  %64 = vmatprep.subr.mxu0 0.0
  %65 = vmatpush1.msra.mxu0 0.0
  %66 = vmatprep.subr.mxu0 0.0
  %67 = vmatpush1.msra.mxu0 0.0
  %68 = vmatprep.subr.mxu0 0.0
  %69 = vmatpush1.msra.mxu0 0.0
  %70 = vmatprep.subr.mxu0 0.0
  %71 = vmatpush1.msra.mxu0 0.0
  %72 = vmatprep.subr.mxu0 0.0
  %73 = vmatpush1.msra.mxu0 0.0
  %74 = vmatprep.subr.mxu0 0.0
  %75 = vmatpush1.msra.mxu0 0.0
  %76 = vmatprep.subr.mxu0 0.0
  %77 = vmatpush1.msra.mxu0 0.0
  %78 = vmatprep.subr.mxu0 0.0
  %79 = vmatpush1.msra.mxu0 0.0
  %80 = vmatprep.subr.mxu0 0.0
  %81 = vmatpush1.msra.mxu0 0.0
  %82 = vmatprep.subr.mxu0 0.0
  %83 = vmatpush1.msra.mxu0 0.0
  %84 = vmatprep.subr.mxu0 0.0
  %85 = vmatpush1.msra.mxu0 0.0
  %86 = vmatprep.subr.mxu0 0.0
  %87 = vmatpush1.msra.mxu0 0.0
  %88 = vmatprep.subr.mxu0 0.0
  %89 = vmatpush1.msra.mxu0 0.0
  %90 = vmatprep.subr.mxu0 0.0
  %91 = vmatpush1.msra.mxu0 0.0
  %92 = vmatprep.subr.mxu0 0.0
  %93 = vmatpush1.msra.mxu0 0.0
  %94 = vmatprep.subr.mxu0 0.0
  %95 = vmatpush1.msra.mxu0 0.0
  %96 = vmatprep.subr.mxu0 0.0
  %97 = vmatpush1.msra.mxu0 0.0
  %98 = vmatprep.subr.mxu0 0.0
  %99 = vmatpush1.msra.mxu0 0.0
  %100 = vmatprep.subr.mxu0 0.0
  %101 = vmatpush1.msra.mxu0 0.0
  %102 = vmatprep.subr.mxu0 0.0
  %103 = vmatpush1.msra.mxu0 0.0
  %104 = vmatprep.subr.mxu0 0.0
  %105 = vmatpush1.msra.mxu0 0.0
  %106 = vmatprep.subr.mxu0 0.0
  %107 = vmatpush1.msra.mxu0 0.0
  %108 = vmatprep.subr.mxu0 0.0
  %109 = vmatpush1.msra.mxu0 0.0
  %110 = vmatprep.subr.mxu0 0.0
  %111 = vmatpush1.msra.mxu0 0.0
  %112 = vmatprep.subr.mxu0 0.0
  %113 = vmatpush1.msra.mxu0 0.0
  %114 = vmatprep.subr.mxu0 0.0
  %115 = vmatpush1.msra.mxu0 0.0
  %116 = vmatprep.subr.mxu0 0.0
  %117 = vmatpush1.msra.mxu0 0.0
  %118 = vmatprep.subr.mxu0 0.0
  %119 = vmatpush1.msra.mxu0 0.0
  %120 = vmatprep.subr.mxu0 0.0
  %121 = vmatpush1.msra.mxu0 0.0
  %122 = vmatprep.subr.mxu0 0.0
  %123 = vmatpush1.msra.mxu0 0.0
  %124 = vmatprep.mubr.f32.mxu0 0.0
  %125 = vmatmul.mubr.f32.gmra.mrb[0].mxu0 %v54
  %v126 = vpop.f32.mrb[0].mxu0
  %v127 = vadd.f32 0.0, %v126
  %v128 = vpop.f32.mrb[0].mxu0
  %129 = vdwg.mxu0
  %v131 = vsel %vm52, %v44, 0
  %v134 = vsel %vm56, %v49, 0
  %136 = vmatprep.subr.mxu0 0.0
  %137 = vmatpush1.msra.mxu0 %v48
  %138 = vmatprep.subr.mxu0 0.0
  %139 = vmatpush1.msra.mxu0 %v134
  %140 = vmatprep.subr.mxu0 0.0
  %141 = vmatpush1.msra.mxu0 0.0
  %142 = vmatprep.subr.mxu0 0.0
  %143 = vmatpush1.msra.mxu0 0.0
  %144 = vmatprep.subr.mxu0 0.0
  %145 = vmatpush1.msra.mxu0 0.0
  %146 = vmatprep.subr.mxu0 0.0
  %147 = vmatpush1.msra.mxu0 0.0
  %148 = vmatprep.subr.mxu0 0.0
  %149 = vmatpush1.msra.mxu0 0.0
  %150 = vmatprep.subr.mxu0 0.0
  %151 = vmatpush1.msra.mxu0 0.0
  %152 = vmatprep.subr.mxu0 0.0
  %153 = vmatpush1.msra.mxu0 0.0
  %154 = vmatprep.subr.mxu0 0.0
  %155 = vmatpush1.msra.mxu0 0.0
  %156 = vmatprep.subr.mxu0 0.0
  %157 = vmatpush1.msra.mxu0 0.0
  %158 = vmatprep.subr.mxu0 0.0
  %159 = vmatpush1.msra.mxu0 0.0
  %160 = vmatprep.subr.mxu0 0.0
  %161 = vmatpush1.msra.mxu0 0.0
  %162 = vmatprep.subr.mxu0 0.0
  %163 = vmatpush1.msra.mxu0 0.0
  %164 = vmatprep.subr.mxu0 0.0
  %165 = vmatpush1.msra.mxu0 0.0
  %166 = vmatprep.subr.mxu0 0.0
  %167 = vmatpush1.msra.mxu0 0.0
  %168 = vmatprep.subr.mxu0 0.0
  %169 = vmatpush1.msra.mxu0 0.0
  %170 = vmatprep.subr.mxu0 0.0
  %171 = vmatpush1.msra.mxu0 0.0
  %172 = vmatprep.subr.mxu0 0.0
  %173 = vmatpush1.msra.mxu0 0.0
  %174 = vmatprep.subr.mxu0 0.0
  %175 = vmatpush1.msra.mxu0 0.0
  %176 = vmatprep.subr.mxu0 0.0
  %177 = vmatpush1.msra.mxu0 0.0
  %178 = vmatprep.subr.mxu0 0.0
  %179 = vmatpush1.msra.mxu0 0.0
  %180 = vmatprep.subr.mxu0 0.0
  %181 = vmatpush1.msra.mxu0 0.0
  %182 = vmatprep.subr.mxu0 0.0
  %183 = vmatpush1.msra.mxu0 0.0
  %184 = vmatprep.subr.mxu0 0.0
  %185 = vmatpush1.msra.mxu0 0.0
  %186 = vmatprep.subr.mxu0 0.0
  %187 = vmatpush1.msra.mxu0 0.0
  %188 = vmatprep.subr.mxu0 0.0
  %189 = vmatpush1.msra.mxu0 0.0
  %190 = vmatprep.subr.mxu0 0.0
  %191 = vmatpush1.msra.mxu0 0.0
  %192 = vmatprep.subr.mxu0 0.0
  %193 = vmatpush1.msra.mxu0 0.0
  %194 = vmatprep.subr.mxu0 0.0
  %195 = vmatpush1.msra.mxu0 0.0
  %196 = vmatprep.subr.mxu0 0.0
  %197 = vmatpush1.msra.mxu0 0.0
  %198 = vmatprep.subr.mxu0 0.0
  %199 = vmatpush1.msra.mxu0 0.0
  %200 = vmatprep.mubr.f32.mxu0 0.0
  %201 = vmatmul.mubr.f32.gmra.mrb[0].mxu0 %v131
  %v202 = vpop.f32.mrb[0].mxu0
  %v203 = vadd.f32 %v127, %v202
  %v204 = vpop.f32.mrb[0].mxu0
  %205 = vdwg.mxu0
  %v206 = vld [vmem:[%s6] sm:$0x1]
  %v208 = vlaneseq
  %v209 = vshrl.u32 %v208, 7
  %v210 = vsub.s32 0, %v209
  %v211 = vrot.slane %v206, %v210
  %v213 = vadd.f32 %v203, %v211
  %vm214 = vcmask 523264
  %215 = vst.msk [vmem:[%s7] sm:$0xff] %vm214, %v213
  // Predicated region
  $region30: #{model_forward.14} parent=0 // pred_check
    _
  $region31: #{model_forward.14} parent=0 // pred_check_branch
    %217 = sbr.rel (0) target = $region33
  $region32: #{model_forward.14} parent=0 // pred_region
    _
  $region33: #{model_forward.14} parent=0 // pred_fallthru
    _
  // Predicated region
  $region34: #{model_forward.14} parent=0 // pred_check
    _
  $region35: #{model_forward.14} parent=0 // pred_check_branch
    %219 = sbr.rel (0) target = $region37
  $region36: #{model_forward.14} parent=0 // pred_region
    _
  $region37: #{model_forward.14} parent=0 // pred_fallthru
    _

// kernel: model_forward.12
$region0: #{model_forward.12}
  #allocation0 [shape = 'u32[]', space=smem, size = 0x4, offset = 0x4, fixed_abs, tag = 'smem constant byte address 0x4 - core index']
  #allocation1 [shape = 'u32[144,128]{1,0:T(1,128)}', space=vmem, size = 0x12000, scoped, tag = 'internal scratch']
  %s0 = inlined_call_operand.vmem [shape: f32[2,4,10,1], index: 0, kind: input, shape index: {}]
  %s1 = inlined_call_operand.vmem [shape: f32[2,4,1,10], index: 1, kind: input, shape index: {}]
  %s2 = inlined_call_operand.vmem [shape: f32[1,10], index: 2, kind: input, shape index: {}]
  %s3 = inlined_call_operand.vmem [shape: f32[2,10,10], index: 3, kind: output, shape index: {}]
  %s4 = sld [smem:[#allocation0]]
  $region22: #{model_forward.12} parent=0
    _
  %s6 = ssub.s32 1, %s4
  %s7 = scalar_select 0, %s6, %s4
  // Predicated region
  $region2: #{model_forward.12} parent=0 // pred_check
    _
  $region3: #{model_forward.12} parent=0 // pred_check_branch
    %9 = sbr.rel (0) target = $region5
  $region4: #{model_forward.12} parent=0 // pred_region
    _
  $region5: #{model_forward.12} parent=0 // pred_fallthru
    _
  // Predicated region
  $region6: #{model_forward.12} parent=0 // pred_check
    _
  $region7: #{model_forward.12} parent=0 // pred_check_branch
    %11 = sbr.rel (0) target = $region9
  $region8: #{model_forward.12} parent=0 // pred_region
    _
  $region9: #{model_forward.12} parent=0 // pred_fallthru
    _
  // Predicated region
  $region10: #{model_forward.12} parent=0 // pred_check
    _
  $region11: #{model_forward.12} parent=0 // pred_check_branch
    %13 = sbr.rel (0) target = $region13
  $region12: #{model_forward.12} parent=0 // pred_region
    _
  $region13: #{model_forward.12} parent=0 // pred_fallthru
    _
  %v14 = vld [vmem:[%s0] sm:$0xff]
  %v15 = vld [vmem:[%s0 + $0x8] sm:$0x3]
  %v16 = vld [vmem:[%s0 + $0x10] sm:$0xff]
  %v17 = vld [vmem:[%s0 + $0x18] sm:$0x3]
  %v18 = vld [vmem:[%s0 + $0x20] sm:$0xff]
  %v19 = vld [vmem:[%s0 + $0x28] sm:$0x3]
  %v20 = vld [vmem:[%s0 + $0x30] sm:$0xff]
  %v21 = vld [vmem:[%s0 + $0x38] sm:$0x3]
  %v22 = vld [vmem:[%s0 + $0x40] sm:$0xff]
  %v23 = vld [vmem:[%s0 + $0x48] sm:$0x3]
  %v24 = vld [vmem:[%s0 + $0x50] sm:$0xff]
  %v25 = vld [vmem:[%s0 + $0x58] sm:$0x3]
  %v26 = vld [vmem:[%s0 + $0x60] sm:$0xff]
  %v27 = vld [vmem:[%s0 + $0x68] sm:$0x3]
  %v28 = vld [vmem:[%s0 + $0x70] sm:$0xff]
  %v29 = vld [vmem:[%s0 + $0x78] sm:$0x3]
  %v30 = vld [vmem:[%s1] sm:$0x1]
  %v31 = vld [vmem:[%s1 + $0x1] sm:$0x1]
  %v32 = vld [vmem:[%s1 + $0x2] sm:$0x1]
  %v33 = vld [vmem:[%s1 + $0x3] sm:$0x1]
  %v34 = vld [vmem:[%s1 + $0x4] sm:$0x1]
  %v35 = vld [vmem:[%s1 + $0x5] sm:$0x1]
  %v36 = vld [vmem:[%s1 + $0x6] sm:$0x1]
  %v37 = vld [vmem:[%s1 + $0x7] sm:$0x1]
  %39 = vset.pattern.permute.xlu0 0
  %40 = vperm.xlu0 %39, %v14
  %v41 = vpop.permute.xlu0 %40
  %44 = vset.pattern.permute.xlu0 0
  %45 = vperm.xlu0 %44, %v15
  %v46 = vpop.permute.xlu0 %45
  %49 = vset.pattern.permute.xlu0 0
  %50 = vperm.xlu0 %49, %v16
  %v51 = vpop.permute.xlu0 %50
  %54 = vset.pattern.permute.xlu0 0
  %55 = vperm.xlu0 %54, %v17
  %v56 = vpop.permute.xlu0 %55
  %59 = vset.pattern.permute.xlu0 0
  %60 = vperm.xlu0 %59, %v18
  %v61 = vpop.permute.xlu0 %60
  %64 = vset.pattern.permute.xlu0 0
  %65 = vperm.xlu0 %64, %v19
  %v66 = vpop.permute.xlu0 %65
  %69 = vset.pattern.permute.xlu0 0
  %70 = vperm.xlu0 %69, %v20
  %v71 = vpop.permute.xlu0 %70
  %74 = vset.pattern.permute.xlu0 0
  %75 = vperm.xlu0 %74, %v21
  %v76 = vpop.permute.xlu0 %75
  %79 = vset.pattern.permute.xlu0 0
  %80 = vperm.xlu0 %79, %v22
  %v81 = vpop.permute.xlu0 %80
  %84 = vset.pattern.permute.xlu0 0
  %85 = vperm.xlu0 %84, %v23
  %v86 = vpop.permute.xlu0 %85
  %89 = vset.pattern.permute.xlu0 0
  %90 = vperm.xlu0 %89, %v24
  %v91 = vpop.permute.xlu0 %90
  %94 = vset.pattern.permute.xlu0 0
  %95 = vperm.xlu0 %94, %v25
  %v96 = vpop.permute.xlu0 %95
  %99 = vset.pattern.permute.xlu0 0
  %100 = vperm.xlu0 %99, %v26
  %v101 = vpop.permute.xlu0 %100
  %104 = vset.pattern.permute.xlu0 0
  %105 = vperm.xlu0 %104, %v27
  %v106 = vpop.permute.xlu0 %105
  %109 = vset.pattern.permute.xlu0 0
  %110 = vperm.xlu0 %109, %v28
  %v111 = vpop.permute.xlu0 %110
  %114 = vset.pattern.permute.xlu0 0
  %115 = vperm.xlu0 %114, %v29
  %v116 = vpop.permute.xlu0 %115
  %v126 = vlaneseq
  %v127 = vshrl.u32 %v126, 7
  %v128 = vsub.s32 0, %v127
  %v129 = vrot.slane %v30, %v128
  %v130 = vlaneseq
  %v131 = vshrl.u32 %v130, 7
  %v132 = vsub.s32 0, %v131
  %v133 = vrot.slane %v31, %v132
  %v134 = vlaneseq
  %v135 = vshrl.u32 %v134, 7
  %v136 = vsub.s32 0, %v135
  %v137 = vrot.slane %v32, %v136
  %v138 = vlaneseq
  %v139 = vshrl.u32 %v138, 7
  %v140 = vsub.s32 0, %v139
  %v141 = vrot.slane %v33, %v140
  %v142 = vlaneseq
  %v143 = vshrl.u32 %v142, 7
  %v144 = vsub.s32 0, %v143
  %v145 = vrot.slane %v34, %v144
  %v146 = vlaneseq
  %v147 = vshrl.u32 %v146, 7
  %v148 = vsub.s32 0, %v147
  %v149 = vrot.slane %v35, %v148
  %v150 = vlaneseq
  %v151 = vshrl.u32 %v150, 7
  %v152 = vsub.s32 0, %v151
  %v153 = vrot.slane %v36, %v152
  %v154 = vlaneseq
  %v155 = vshrl.u32 %v154, 7
  %v156 = vsub.s32 0, %v155
  %v157 = vrot.slane %v37, %v156
  %v166 = vsub.f32 %v41, %v129
  %v167 = vsub.f32 %v46, %v129
  %v168 = vsub.f32 %v51, %v133
  %v169 = vsub.f32 %v56, %v133
  %v170 = vsub.f32 %v61, %v137
  %v171 = vsub.f32 %v66, %v137
  %v172 = vsub.f32 %v71, %v141
  %v173 = vsub.f32 %v76, %v141
  %v174 = vsub.f32 %v81, %v145
  %v175 = vsub.f32 %v86, %v145
  %v176 = vsub.f32 %v91, %v149
  %v177 = vsub.f32 %v96, %v149
  %v178 = vsub.f32 %v101, %v153
  %v179 = vsub.f32 %v106, %v153
  %v180 = vsub.f32 %v111, %v157
  %v181 = vsub.f32 %v116, %v157
  %v182 = vmul.f32 %v166, %v166
  %v183 = vmul.f32 %v167, %v167
  %v184 = vmul.f32 %v168, %v168
  %v185 = vmul.f32 %v169, %v169
  %v186 = vmul.f32 %v170, %v170
  %v187 = vmul.f32 %v171, %v171
  %v188 = vmul.f32 %v172, %v172
  %v189 = vmul.f32 %v173, %v173
  %v190 = vmul.f32 %v174, %v174
  %v191 = vmul.f32 %v175, %v175
  %v192 = vmul.f32 %v176, %v176
  %v193 = vmul.f32 %v177, %v177
  %v194 = vmul.f32 %v178, %v178
  %v195 = vmul.f32 %v179, %v179
  %v196 = vmul.f32 %v180, %v180
  %v197 = vmul.f32 %v181, %v181
  %vm198 = vcmask 80896
  %v199 = vsel %vm198, %v182, 0.0
  %v200 = vsel %vm198, %v184, 0.0
  %v201 = vadd.f32 %v199, %v200
  %v202 = vsel %vm198, %v186, 0.0
  %v203 = vadd.f32 %v201, %v202
  %v204 = vsel %vm198, %v188, 0.0
  %v205 = vadd.f32 %v203, %v204
  %vm206 = vcmask 74752
  %v207 = vsel %vm206, %v183, 0.0
  %v208 = vsel %vm206, %v185, 0.0
  %v209 = vadd.f32 %v207, %v208
  %v210 = vsel %vm206, %v187, 0.0
  %v211 = vadd.f32 %v209, %v210
  %v212 = vsel %vm206, %v189, 0.0
  %v213 = vadd.f32 %v211, %v212
  %v214 = vsel %vm198, %v190, 0.0
  %v215 = vsel %vm198, %v192, 0.0
  %v216 = vadd.f32 %v214, %v215
  %v217 = vsel %vm198, %v194, 0.0
  %v218 = vadd.f32 %v216, %v217
  %v219 = vsel %vm198, %v196, 0.0
  %v220 = vadd.f32 %v218, %v219
  %v221 = vsel %vm206, %v191, 0.0
  %v222 = vsel %vm206, %v193, 0.0
  %v223 = vadd.f32 %v221, %v222
  %v224 = vsel %vm206, %v195, 0.0
  %v225 = vadd.f32 %v223, %v224
  %v226 = vsel %vm206, %v197, 0.0
  %v227 = vadd.f32 %v225, %v226
  %v228 = vld [vmem:[%s2] sm:$0x1]
  %v229 = vmul.f32 %v228, %v228
  %v231 = vlaneseq
  %v232 = vshrl.u32 %v231, 7
  %v233 = vsub.s32 0, %v232
  %v234 = vrot.slane %v229, %v233
  %v236 = vmul.f32 %v205, %v234
  %v237 = vmul.f32 %v213, %v234
  %v238 = vmul.f32 %v220, %v234
  %v239 = vmul.f32 %v227, %v234
  %v240 = vadd.f32 %v236, 1e-10
  %v241 = vadd.f32 %v237, 1e-10
  %v242 = vadd.f32 %v238, 1e-10
  %v243 = vadd.f32 %v239, 1e-10
  %v244 = vrcp.pop %v240
  %v245 = vmul.f32 1.0, %v244
  %v246 = vrcp.pop %v241
  %v247 = vmul.f32 1.0, %v246
  %v248 = vrcp.pop %v242
  %v249 = vmul.f32 1.0, %v248
  %v250 = vrcp.pop %v243
  %v251 = vmul.f32 1.0, %v250
  %v252 = vlaneseq
  %v253 = vshrl.u32 %v252, 7
  %v254 = vadd.s32 %v253, 8
  %v255 = vlaneseq
  %v256 = vand.u32 %v255, 127
  %vm257 = vcmp.eq.s32.totalorder %v253, %v256
  %vm258 = vcmp.eq.s32.totalorder %v254, %v256
  %v259 = vsel %vm257, 1, 0
  %v260 = vsel %vm258, 1, 0
  %v261 = vcvt.s32.f32 %v259
  %v262 = vcvt.s32.f32 %v260
  %v263 = vsub.f32 1.0, %v261
  %v264 = vsub.f32 1.0, %v262
  %v265 = vmul.f32 %v245, %v263
  %v266 = vmul.f32 %v247, %v264
  %v267 = vmul.f32 %v249, %v263
  %v268 = vmul.f32 %v251, %v264
  %v269 = vsel %vm198, %v265, -inf
  %270 = vmax.xlane.f32.xlu0 %v269
  %v271 = vpop.xlane.xlu0 %270
  %v272 = vsel %vm206, %v266, -inf
  %273 = vmax.xlane.f32.xlu0 %v272
  %v274 = vpop.xlane.xlu0 %273
  %v275 = vsel %vm198, %v267, -inf
  %276 = vmax.xlane.f32.xlu0 %v275
  %v277 = vpop.xlane.xlu0 %276
  %v278 = vsel %vm206, %v268, -inf
  %279 = vmax.xlane.f32.xlu0 %v278
  %v280 = vpop.xlane.xlu0 %279
  %v281 = vrcp.pop %v271
  %v282 = vmul.f32 %v265, %v281
  %v283 = vrcp.pop %v274
  %v284 = vmul.f32 %v266, %v283
  %v285 = vrcp.pop %v277
  %v286 = vmul.f32 %v267, %v285
  %v287 = vrcp.pop %v280
  %v288 = vmul.f32 %v268, %v287
  %v289 = vmul.f32 %v282, %v263
  %v290 = vmul.f32 %v284, %v264
  %v291 = vmul.f32 %v286, %v263
  %v292 = vmul.f32 %v288, %v264
  %v293 = vadd.f32 %v289, %v261
  %v294 = vadd.f32 %v290, %v262
  %v295 = vadd.f32 %v291, %v261
  %v296 = vadd.f32 %v292, %v262
  %v297 = vmul.f32 %v293, 0.99
  %v298 = vmul.f32 %v294, 0.99
  %v299 = vmul.f32 %v295, 0.99
  %v300 = vmul.f32 %v296, 0.99
  %301 = vst.msk [vmem:[%s3] sm:$0xff] %vm198, %v297
  %302 = vst.msk [vmem:[%s3 + $0x8] sm:$0x3] %vm206, %v298
  %303 = vst.msk [vmem:[%s3 + $0x10] sm:$0xff] %vm198, %v299
  %304 = vst.msk [vmem:[%s3 + $0x18] sm:$0x3] %vm206, %v300
  // Predicated region
  $region14: #{model_forward.12} parent=0 // pred_check
    _
  $region15: #{model_forward.12} parent=0 // pred_check_branch
    %306 = sbr.rel (0) target = $region17
  $region16: #{model_forward.12} parent=0 // pred_region
    _
  $region17: #{model_forward.12} parent=0 // pred_fallthru
    _
  // Predicated region
  $region18: #{model_forward.12} parent=0 // pred_check
    _
  $region19: #{model_forward.12} parent=0 // pred_check_branch
    %308 = sbr.rel (0) target = $region21
  $region20: #{model_forward.12} parent=0 // pred_region
    _
  $region21: #{model_forward.12} parent=0 // pred_fallthru
    _

// kernel: reverse.5
$region0: #{reverse.5}
  %s0 = inlined_call_operand.vmem [shape: f32[2,4,15], index: 0, kind: input, shape index: {}]
  %s1 = inlined_call_operand.vmem [shape: f32[2,4,15], index: 1, kind: output, shape index: {}]
  %v2 = vlaneseq
  %v3 = vsub.s32 14, %v2
  %4 = vset.pattern.permute.xlu0 %v3
  $region1: #{reverse.5} parent=0
    #allocation0 [shape = 'u8[8192]{0}', space=vmem, size = 0x2000, scoped, tag = 'operand span for operand 0']
    #allocation1 [shape = 'u8[4096]{0}', space=vmem, size = 0x1000, scoped, tag = 'packed  for operand 0']
    #allocation2 [shape = 'u8[8192]{0}', space=vmem, size = 0x2000, scoped, tag = 'operand span for operand 1']
    #allocation3 [shape = 'u8[4096]{0}', space=vmem, size = 0x1000, scoped, tag = 'packed  for operand 1']
    // Predicated region
    $region2: #{reverse.5} parent=1 // pred_check
      _
    $region3: #{reverse.5} parent=1 // pred_check_branch
      %6 = sbr.rel (0) target = $region5
    $region4: #{reverse.5} parent=1 // pred_region
      // Predicated region
      $region6: #{reverse.5} parent=4 // pred_check
        _
      $region7: #{reverse.5} parent=4 // pred_check_branch
        %8 = sbr.rel target = $region9
      $region8: #{reverse.5} parent=4 // pred_region
        // Predicated region
        $region21: #{reverse.5} parent=8 // pred_check
          _
        $region22: #{reverse.5} parent=8 // pred_check_branch
          %25 = sbr.rel (0) target = $region24
        $region23: #{reverse.5} parent=8 // pred_region
          loop: start=0, step=1, limit=1
          $region25: #{reverse.5} parent=23 // loop_pre_header
            _
          $region26: #{reverse.5} parent=23 // loop_header
            %s27 = sphi 0, %s31
            %p28 = scmp.ge.s32.totalorder %s27, 1
            %s32 = sphi %s0, %s0
            %s33 = sphi [#allocation1], [#allocation1]
          $region27: #{reverse.5} parent=23 // loop_header_branch
            %30 = sbr.rel (%p28) target = $region31
          $region28: #{reverse.5} parent=23 // loop_body
            _
          $region29: #{reverse.5} parent=23 // loop_footer
            %s31 = sadd.s32 1, %s27
          $region30: #{reverse.5} parent=23 // loop_footer_branch
            %26 = sbr.rel target = $region26
          $region31: #{reverse.5} parent=23 // loop_exit
            _
          loop: start=0, step=1, limit=1
          $region32: #{reverse.5} parent=23 // loop_pre_header
            _
          $region33: #{reverse.5} parent=23 // loop_header
            %s36 = sphi 0, %s40
            %p37 = scmp.ge.s32.totalorder %s36, 1
            %s41 = sphi %s0, %s0
            %s42 = sphi [#allocation1], [#allocation1]
          $region34: #{reverse.5} parent=23 // loop_header_branch
            %39 = sbr.rel (%p37) target = $region38
          $region35: #{reverse.5} parent=23 // loop_body
            %v43 = vld [vmem:[%s41] sm:$0xf]
            %44 = vst [vmem:[%s42] sm:$0xf] %v43
            %v45 = vld [vmem:[%s41 + $0x4] sm:$0xf]
            %46 = vst [vmem:[%s42 + $0x4] sm:$0xf] %v45
          $region36: #{reverse.5} parent=23 // loop_footer
            %s40 = sadd.s32 1, %s36
          $region37: #{reverse.5} parent=23 // loop_footer_branch
            %35 = sbr.rel target = $region33
          $region38: #{reverse.5} parent=23 // loop_exit
            _
        $region24: #{reverse.5} parent=8 // pred_fallthru
          _
      $region9: #{reverse.5} parent=4 // pred_fallthru
        _
      // Predicated region
      $region10: #{reverse.5} parent=4 // pred_check
        _
      $region11: #{reverse.5} parent=4 // pred_check_branch
        %10 = sbr.rel (0) target = $region13
      $region12: #{reverse.5} parent=4 // pred_region
        loop: start=0, step=1, limit=1
        $region14: #{reverse.5} parent=12 // loop_pre_header
          _
        $region15: #{reverse.5} parent=12 // loop_header
          %s13 = sphi 0, %s17
          %p14 = scmp.ge.s32.totalorder %s13, 1
          %s18 = sphi %s0, %s0
          %s19 = sphi [#allocation1], [#allocation1]
        $region16: #{reverse.5} parent=12 // loop_header_branch
          %16 = sbr.rel (%p14) target = $region20
        $region17: #{reverse.5} parent=12 // loop_body
          %v20 = vld [vmem:[%s18] sm:$0xf]
          %21 = vst [vmem:[%s19] sm:$0xf] %v20
          %v22 = vld [vmem:[%s18 + $0x4] sm:$0xf]
          %23 = vst [vmem:[%s19 + $0x4] sm:$0xf] %v22
        $region18: #{reverse.5} parent=12 // loop_footer
          %s17 = sadd.s32 1, %s13
        $region19: #{reverse.5} parent=12 // loop_footer_branch
          %12 = sbr.rel target = $region15
        $region20: #{reverse.5} parent=12 // loop_exit
          _
      $region13: #{reverse.5} parent=4 // pred_fallthru
        _
    $region5: #{reverse.5} parent=1 // pred_fallthru
      _
    %47 = vnop
    %s49 = sshllo.u32 0, 4
    %s50 = scalar_lea.vmem [#allocation1], 4
    %v51 = vld [vmem:[%s50] sm:%s49]
    %s52 = scalar_lea.vmem [#allocation0], 8
    %53 = vst [vmem:[%s52] sm:%s49] %v51
    %v54 = vld [vmem:[#allocation1] sm:%s49]
    %55 = vst [vmem:[#allocation0] sm:%s49] %v54
    %v56 = vld [vmem:[#allocation0] sm:$0xff]
    %57 = vperm.xlu0 %4, %v56
    %v58 = vpop.permute.xlu0 %57
    %59 = vst [vmem:[#allocation2] sm:$0xff] %v58
    %s60 = scalar_lea.vmem [#allocation2], 8
    %s61 = scalar_lea.vmem [#allocation0], 8
    %v62 = vld [vmem:[%s61] sm:$0xff]
    %63 = vperm.xlu0 %4, %v62
    %v64 = vpop.permute.xlu0 %63
    %65 = vst [vmem:[%s60] sm:$0xff] %v64
    %s67 = sshllo.u32 0, 4
    %v69 = vld [vmem:[#allocation2] sm:%s67]
    %s70 = sshllo.u32 0, 4
    %71 = vst [vmem:[#allocation3] sm:%s70] %v69
    %s72 = scalar_lea.vmem [#allocation2], 8
    %v73 = vld [vmem:[%s72] sm:%s67]
    %s74 = sshllo.u32 0, 4
    %s75 = scalar_lea.vmem [#allocation3], 4
    %76 = vst [vmem:[%s75] sm:%s74] %v73
    // Predicated region
    $region39: #{reverse.5} parent=1 // pred_check
      _
    $region40: #{reverse.5} parent=1 // pred_check_branch
      %78 = sbr.rel (0) target = $region42
    $region41: #{reverse.5} parent=1 // pred_region
      // Predicated region
      $region43: #{reverse.5} parent=41 // pred_check
        _
      $region44: #{reverse.5} parent=41 // pred_check_branch
        %80 = sbr.rel target = $region46
      $region45: #{reverse.5} parent=41 // pred_region
        // Predicated region
        $region58: #{reverse.5} parent=45 // pred_check
          _
        $region59: #{reverse.5} parent=45 // pred_check_branch
          %97 = sbr.rel (0) target = $region61
        $region60: #{reverse.5} parent=45 // pred_region
          loop: start=0, step=1, limit=1
          $region62: #{reverse.5} parent=60 // loop_pre_header
            _
          $region63: #{reverse.5} parent=60 // loop_header
            %s99 = sphi 0, %s103
            %p100 = scmp.ge.s32.totalorder %s99, 1
            %s104 = sphi [#allocation3], [#allocation3]
            %s105 = sphi %s1, %s1
          $region64: #{reverse.5} parent=60 // loop_header_branch
            %102 = sbr.rel (%p100) target = $region68
          $region65: #{reverse.5} parent=60 // loop_body
            _
          $region66: #{reverse.5} parent=60 // loop_footer
            %s103 = sadd.s32 1, %s99
          $region67: #{reverse.5} parent=60 // loop_footer_branch
            %98 = sbr.rel target = $region63
          $region68: #{reverse.5} parent=60 // loop_exit
            _
          loop: start=0, step=1, limit=1
          $region69: #{reverse.5} parent=60 // loop_pre_header
            _
          $region70: #{reverse.5} parent=60 // loop_header
            %s108 = sphi 0, %s112
            %p109 = scmp.ge.s32.totalorder %s108, 1
            %s113 = sphi [#allocation3], [#allocation3]
            %s114 = sphi %s1, %s1
          $region71: #{reverse.5} parent=60 // loop_header_branch
            %111 = sbr.rel (%p109) target = $region75
          $region72: #{reverse.5} parent=60 // loop_body
            %v115 = vld [vmem:[%s113] sm:$0xf]
            %116 = vst [vmem:[%s114] sm:$0xf] %v115
            %v117 = vld [vmem:[%s113 + $0x4] sm:$0xf]
            %118 = vst [vmem:[%s114 + $0x4] sm:$0xf] %v117
          $region73: #{reverse.5} parent=60 // loop_footer
            %s112 = sadd.s32 1, %s108
          $region74: #{reverse.5} parent=60 // loop_footer_branch
            %107 = sbr.rel target = $region70
          $region75: #{reverse.5} parent=60 // loop_exit
            _
        $region61: #{reverse.5} parent=45 // pred_fallthru
          _
      $region46: #{reverse.5} parent=41 // pred_fallthru
        _
      // Predicated region
      $region47: #{reverse.5} parent=41 // pred_check
        _
      $region48: #{reverse.5} parent=41 // pred_check_branch
        %82 = sbr.rel (0) target = $region50
      $region49: #{reverse.5} parent=41 // pred_region
        loop: start=0, step=1, limit=1
        $region51: #{reverse.5} parent=49 // loop_pre_header
          _
        $region52: #{reverse.5} parent=49 // loop_header
          %s85 = sphi 0, %s89
          %p86 = scmp.ge.s32.totalorder %s85, 1
          %s90 = sphi [#allocation3], [#allocation3]
          %s91 = sphi %s1, %s1
        $region53: #{reverse.5} parent=49 // loop_header_branch
          %88 = sbr.rel (%p86) target = $region57
        $region54: #{reverse.5} parent=49 // loop_body
          %v92 = vld [vmem:[%s90] sm:$0xf]
          %93 = vst [vmem:[%s91] sm:$0xf] %v92
          %v94 = vld [vmem:[%s90 + $0x4] sm:$0xf]
          %95 = vst [vmem:[%s91 + $0x4] sm:$0xf] %v94
        $region55: #{reverse.5} parent=49 // loop_footer
          %s89 = sadd.s32 1, %s85
        $region56: #{reverse.5} parent=49 // loop_footer_branch
          %84 = sbr.rel target = $region52
        $region57: #{reverse.5} parent=49 // loop_exit
          _
      $region50: #{reverse.5} parent=41 // pred_fallthru
        _
    $region42: #{reverse.5} parent=1 // pred_fallthru
      _
    %119 = vnop

// kernel: model_forward.13
$region0: #{model_forward.13}
  #allocation0 [shape = 'u32[]', space=smem, size = 0x4, offset = 0x4, fixed_abs, tag = 'smem constant byte address 0x4 - core index']
  #allocation1 [shape = 'u32[144,128]{1,0:T(1,128)}', space=vmem, size = 0x12000, scoped, tag = 'internal scratch']
  %s0 = inlined_call_operand.vmem [shape: f32[80,32], index: 0, kind: input, shape index: {}]
  %s1 = inlined_call_operand.vmem [shape: f32[80,80], index: 1, kind: input, shape index: {}]
  %s2 = inlined_call_operand.vmem [shape: bf16[32,192], index: 2, kind: input, shape index: {}]
  %s3 = inlined_call_operand.vmem [shape: f32[1,96], index: 3, kind: input, shape index: {}]
  %s4 = inlined_call_operand.vmem [shape: f32[9,32], index: 4, kind: input, shape index: {}]
  %s5 = inlined_call_operand.vmem [shape: f32[80,32], index: 5, kind: output, shape index: {}]
  %s6 = sld [smem:[#allocation0]]
  $region30: #{model_forward.13} parent=0
    _
  %s8 = ssub.s32 1, %s6
  %s9 = scalar_select 0, %s8, %s6
  // Predicated region
  $region2: #{model_forward.13} parent=0 // pred_check
    _
  $region3: #{model_forward.13} parent=0 // pred_check_branch
    %11 = sbr.rel (0) target = $region5
  $region4: #{model_forward.13} parent=0 // pred_region
    _
  $region5: #{model_forward.13} parent=0 // pred_fallthru
    _
  // Predicated region
  $region6: #{model_forward.13} parent=0 // pred_check
    _
  $region7: #{model_forward.13} parent=0 // pred_check_branch
    %13 = sbr.rel (0) target = $region9
  $region8: #{model_forward.13} parent=0 // pred_region
    _
  $region9: #{model_forward.13} parent=0 // pred_fallthru
    _
  // Predicated region
  $region10: #{model_forward.13} parent=0 // pred_check
    _
  $region11: #{model_forward.13} parent=0 // pred_check_branch
    %15 = sbr.rel (0) target = $region13
  $region12: #{model_forward.13} parent=0 // pred_region
    _
  $region13: #{model_forward.13} parent=0 // pred_fallthru
    _
  // Predicated region
  $region14: #{model_forward.13} parent=0 // pred_check
    _
  $region15: #{model_forward.13} parent=0 // pred_check_branch
    %17 = sbr.rel (0) target = $region17
  $region16: #{model_forward.13} parent=0 // pred_region
    _
  $region17: #{model_forward.13} parent=0 // pred_fallthru
    _
  // Predicated region
  $region18: #{model_forward.13} parent=0 // pred_check
    _
  $region19: #{model_forward.13} parent=0 // pred_check_branch
    %19 = sbr.rel (0) target = $region21
  $region20: #{model_forward.13} parent=0 // pred_region
    _
  $region21: #{model_forward.13} parent=0 // pred_fallthru
    _
  %v21 = vld [vmem:[%s0] sm:$0xff]
  %v22 = vld [vmem:[%s0 + $0x8] sm:$0xff]
  %v23 = vld [vmem:[%s0 + $0x10] sm:$0xff]
  %v24 = vld [vmem:[%s0 + $0x18] sm:$0xff]
  %v25 = vld [vmem:[%s0 + $0x20] sm:$0xff]
  %v26 = vld [vmem:[%s0 + $0x28] sm:$0xff]
  %v27 = vld [vmem:[%s0 + $0x30] sm:$0xff]
  %v28 = vld [vmem:[%s0 + $0x38] sm:$0xff]
  %v29 = vld [vmem:[%s0 + $0x40] sm:$0xff]
  %v30 = vld [vmem:[%s0 + $0x48] sm:$0xff]
  %v31 = vld [vmem:[%s4] sm:$0xff]
  %v32 = vld [vmem:[%s4 + $0x8] sm:$0x1]
  %v33 = vld [vmem:[%s1] sm:$0xff]
  %v34 = vld [vmem:[%s1 + $0x8] sm:$0xff]
  %v35 = vld [vmem:[%s1 + $0x10] sm:$0xff]
  %v36 = vld [vmem:[%s1 + $0x18] sm:$0xff]
  %v37 = vld [vmem:[%s1 + $0x20] sm:$0xff]
  %v38 = vld [vmem:[%s1 + $0x28] sm:$0xff]
  %v39 = vld [vmem:[%s1 + $0x30] sm:$0xff]
  %v40 = vld [vmem:[%s1 + $0x38] sm:$0xff]
  %v41 = vld [vmem:[%s1 + $0x40] sm:$0xff]
  %v42 = vld [vmem:[%s1 + $0x48] sm:$0xff]
  %v43 = vpack.c.bf16 %v22, %v21
  %v44 = vpack.c.bf16 %v24, %v23
  %v45 = vpack.c.bf16 %v26, %v25
  %v46 = vpack.c.bf16 %v28, %v27
  %v47 = vpack.c.bf16 %v30, %v29
  %v48 = vld [vmem:[%s2] sm:$0xf]
  %v49 = vld [vmem:[%s2 + $0x8] sm:$0xf]
  %v50 = vld [vmem:[%s2 + $0x10] sm:$0xf]
  %v51 = vld [vmem:[%s2 + $0x18] sm:$0xf]
  %v52 = vld [vmem:[%s3] sm:$0x1]
  %v54 = vlaneseq
  %v55 = vshrl.u32 %v54, 7
  %v56 = vsub.s32 0, %v55
  %v57 = vrot.slane %v52, %v56
  %v63 = vunpack.c.l.b16 %v48
  %v64 = vunpack.c.l.b16 %v49
  %v65 = vunpack.c.l.b16 %v50
  %v66 = vunpack.c.l.b16 %v51
  %v67 = vpack.c.b16 %v64, %v63
  %v68 = vpack.c.b16 %v66, %v65
  %vm71 = vcmask 261120
  %v73 = vsel %vm71, %v43, 0
  %v76 = vsel %vm71, %v44, 0
  %v79 = vsel %vm71, %v45, 0
  %v82 = vsel %vm71, %v46, 0
  %v85 = vsel %vm71, %v47, 0
  %87 = vmatprep.subr.bf16.mxu0 0
  %88 = vmatpush1.bf16.msra.mxu0 %v67
  %89 = vmatprep.subr.bf16.mxu0 0
  %90 = vmatpush1.bf16.msra.mxu0 %v68
  %91 = vmatprep.subr.bf16.mxu0 0
  %92 = vmatpush1.bf16.msra.mxu0 0
  %93 = vmatprep.subr.bf16.mxu0 0
  %94 = vmatpush1.bf16.msra.mxu0 0
  %95 = vmatprep.subr.bf16.mxu0 0
  %96 = vmatpush1.bf16.msra.mxu0 0
  %97 = vmatprep.subr.bf16.mxu0 0
  %98 = vmatpush1.bf16.msra.mxu0 0
  %99 = vmatprep.subr.bf16.mxu0 0
  %100 = vmatpush1.bf16.msra.mxu0 0
  %101 = vmatprep.subr.bf16.mxu0 0
  %102 = vmatpush1.bf16.msra.mxu0 0
  %103 = vmatprep.subr.bf16.mxu0 0
  %104 = vmatpush1.bf16.msra.mxu0 0
  %105 = vmatprep.subr.bf16.mxu0 0
  %106 = vmatpush1.bf16.msra.mxu0 0
  %107 = vmatprep.subr.bf16.mxu0 0
  %108 = vmatpush1.bf16.msra.mxu0 0
  %109 = vmatprep.subr.bf16.mxu0 0
  %110 = vmatpush1.bf16.msra.mxu0 0
  %111 = vmatprep.subr.bf16.mxu0 0
  %112 = vmatpush1.bf16.msra.mxu0 0
  %113 = vmatprep.subr.bf16.mxu0 0
  %114 = vmatpush1.bf16.msra.mxu0 0
  %115 = vmatprep.subr.bf16.mxu0 0
  %116 = vmatpush1.bf16.msra.mxu0 0
  %117 = vmatprep.subr.bf16.mxu0 0
  %118 = vmatpush1.bf16.msra.mxu0 0
  %119 = vmatprep.mubr.bf16.mxu0 0
  %120 = vmatmul.mubr.bf16.gmra.mrb[0].mxu0 %v73
  %v121 = vpop.f32.mrb[0].mxu0
  %v122 = vadd.f32 %v57, %v121
  %v123 = vpop.f32.mrb[0].mxu0
  %v124 = vpop.f32.mrb[0].mxu0
  %v125 = vadd.f32 %v57, %v124
  %v126 = vpop.f32.mrb[0].mxu0
  %127 = vmatprep.mubr.bf16.mxu0 0
  %128 = vmatmul.mubr.bf16.gmra.mrb[0].mxu0 %v76
  %v129 = vpop.f32.mrb[0].mxu0
  %v130 = vadd.f32 %v57, %v129
  %v131 = vpop.f32.mrb[0].mxu0
  %v132 = vpop.f32.mrb[0].mxu0
  %v133 = vadd.f32 %v57, %v132
  %v134 = vpop.f32.mrb[0].mxu0
  %135 = vmatprep.mubr.bf16.mxu0 0
  %136 = vmatmul.mubr.bf16.gmra.mrb[0].mxu0 %v79
  %v137 = vpop.f32.mrb[0].mxu0
  %v138 = vadd.f32 %v57, %v137
  %v139 = vpop.f32.mrb[0].mxu0
  %v140 = vpop.f32.mrb[0].mxu0
  %v141 = vadd.f32 %v57, %v140
  %v142 = vpop.f32.mrb[0].mxu0
  %143 = vmatprep.mubr.bf16.mxu0 0
  %144 = vmatmul.mubr.bf16.gmra.mrb[0].mxu0 %v82
  %v145 = vpop.f32.mrb[0].mxu0
  %v146 = vadd.f32 %v57, %v145
  %v147 = vpop.f32.mrb[0].mxu0
  %v148 = vpop.f32.mrb[0].mxu0
  %v149 = vadd.f32 %v57, %v148
  %v150 = vpop.f32.mrb[0].mxu0
  %151 = vmatprep.mubr.bf16.mxu0 0
  %152 = vmatmul.mubr.bf16.gmra.mrb[0].mxu0 %v85
  %v153 = vpop.f32.mrb[0].mxu0
  %v154 = vadd.f32 %v57, %v153
  %v155 = vpop.f32.mrb[0].mxu0
  %v156 = vpop.f32.mrb[0].mxu0
  %v157 = vadd.f32 %v57, %v156
  %v158 = vpop.f32.mrb[0].mxu0
  %159 = vdwg.mxu0
  %v160 = vpack.c.bf16 %v125, %v122
  %v161 = vpack.c.bf16 %v133, %v130
  %v162 = vpack.c.bf16 %v141, %v138
  %v163 = vpack.c.bf16 %v149, %v146
  %v164 = vpack.c.bf16 %v157, %v154
  %170 = vrot.lane.b32.xlu0 %v160, 96
  %v171 = vpop.permute.xlu0 %170
  %172 = vrot.lane.b32.xlu0 %v161, 96
  %v173 = vpop.permute.xlu0 %172
  %174 = vrot.lane.b32.xlu0 %v162, 96
  %v175 = vpop.permute.xlu0 %174
  %176 = vrot.lane.b32.xlu0 %v163, 96
  %v177 = vpop.permute.xlu0 %176
  %178 = vrot.lane.b32.xlu0 %v164, 96
  %v179 = vpop.permute.xlu0 %178
  %vm180 = vcmask 130048
  %v182 = vsel %vm180, %v160, 0
  %v185 = vsel %vm180, %v161, 0
  %v188 = vsel %vm180, %v162, 0
  %v191 = vsel %vm180, %v163, 0
  %v194 = vsel %vm180, %v164, 0
  %v197 = vsel %vm180, %v171, 0
  %v200 = vsel %vm180, %v173, 0
  %v203 = vsel %vm180, %v175, 0
  %v206 = vsel %vm180, %v177, 0
  %v209 = vsel %vm180, %v179, 0
  %211 = vmatprep.subr.bf16.mxu0 0
  %212 = vmatpush1.bf16.xpose.msra.mxu0 %v197
  %213 = vmatprep.subr.bf16.mxu0 0
  %214 = vmatpush1.bf16.xpose.msra.mxu0 %v200
  %215 = vmatprep.subr.bf16.mxu0 0
  %216 = vmatpush1.bf16.xpose.msra.mxu0 %v203
  %217 = vmatprep.subr.bf16.mxu0 0
  %218 = vmatpush1.bf16.xpose.msra.mxu0 %v206
  %219 = vmatprep.subr.bf16.mxu0 0
  %220 = vmatpush1.bf16.xpose.msra.mxu0 %v209
  %221 = vmatprep.subr.bf16.mxu0 0
  %222 = vmatpush1.bf16.xpose.msra.mxu0 0
  %223 = vmatprep.subr.bf16.mxu0 0
  %224 = vmatpush1.bf16.xpose.msra.mxu0 0
  %225 = vmatprep.subr.bf16.mxu0 0
  %226 = vmatpush1.bf16.xpose.msra.mxu0 0
  %227 = vmatprep.subr.bf16.mxu0 0
  %228 = vmatpush1.bf16.xpose.msra.mxu0 0
  %229 = vmatprep.subr.bf16.mxu0 0
  %230 = vmatpush1.bf16.xpose.msra.mxu0 0
  %231 = vmatprep.subr.bf16.mxu0 0
  %232 = vmatpush1.bf16.xpose.msra.mxu0 0
  %233 = vmatprep.subr.bf16.mxu0 0
  %234 = vmatpush1.bf16.xpose.msra.mxu0 0
  %235 = vmatprep.subr.bf16.mxu0 0
  %236 = vmatpush1.bf16.xpose.msra.mxu0 0
  %237 = vmatprep.subr.bf16.mxu0 0
  %238 = vmatpush1.bf16.xpose.msra.mxu0 0
  %239 = vmatprep.subr.bf16.mxu0 0
  %240 = vmatpush1.bf16.xpose.msra.mxu0 0
  %241 = vmatprep.subr.bf16.mxu0 0
  %242 = vmatpush1.bf16.xpose.msra.mxu0 0
  %243 = vmatprep.mubr.bf16.mxu0 0
  %244 = vmatmul.mubr.bf16.gmra.mrb[0].mxu0 %v182
  %v245 = vpop.f32.mrb[0].mxu0
  %v246 = vadd.f32 0.0, %v245
  %v247 = vpop.f32.mrb[0].mxu0
  %v248 = vpop.f32.mrb[0].mxu0
  %v249 = vadd.f32 0.0, %v248
  %v250 = vpop.f32.mrb[0].mxu0
  %251 = vmatprep.mubr.bf16.mxu0 0
  %252 = vmatmul.mubr.bf16.gmra.mrb[0].mxu0 %v185
  %v253 = vpop.f32.mrb[0].mxu0
  %v254 = vadd.f32 0.0, %v253
  %v255 = vpop.f32.mrb[0].mxu0
  %v256 = vpop.f32.mrb[0].mxu0
  %v257 = vadd.f32 0.0, %v256
  %v258 = vpop.f32.mrb[0].mxu0
  %259 = vmatprep.mubr.bf16.mxu0 0
  %260 = vmatmul.mubr.bf16.gmra.mrb[0].mxu0 %v188
  %v261 = vpop.f32.mrb[0].mxu0
  %v262 = vadd.f32 0.0, %v261
  %v263 = vpop.f32.mrb[0].mxu0
  %v264 = vpop.f32.mrb[0].mxu0
  %v265 = vadd.f32 0.0, %v264
  %v266 = vpop.f32.mrb[0].mxu0
  %267 = vmatprep.mubr.bf16.mxu0 0
  %268 = vmatmul.mubr.bf16.gmra.mrb[0].mxu0 %v191
  %v269 = vpop.f32.mrb[0].mxu0
  %v270 = vadd.f32 0.0, %v269
  %v271 = vpop.f32.mrb[0].mxu0
  %v272 = vpop.f32.mrb[0].mxu0
  %v273 = vadd.f32 0.0, %v272
  %v274 = vpop.f32.mrb[0].mxu0
  %275 = vmatprep.mubr.bf16.mxu0 0
  %276 = vmatmul.mubr.bf16.gmra.mrb[0].mxu0 %v194
  %v277 = vpop.f32.mrb[0].mxu0
  %v278 = vadd.f32 0.0, %v277
  %v279 = vpop.f32.mrb[0].mxu0
  %v280 = vpop.f32.mrb[0].mxu0
  %v281 = vadd.f32 0.0, %v280
  %v282 = vpop.f32.mrb[0].mxu0
  %283 = vdwg.mxu0
  %v284 = vmul.f32 %v246, 0.25
  %v285 = vmul.f32 %v249, 0.25
  %v286 = vmul.f32 %v254, 0.25
  %v287 = vmul.f32 %v257, 0.25
  %v288 = vmul.f32 %v262, 0.25
  %v289 = vmul.f32 %v265, 0.25
  %v290 = vmul.f32 %v270, 0.25
  %v291 = vmul.f32 %v273, 0.25
  %v292 = vmul.f32 %v278, 0.25
  %v293 = vmul.f32 %v281, 0.25
  %v294 = vadd.f32 %v284, %v33
  %v295 = vadd.f32 %v285, %v34
  %v296 = vadd.f32 %v286, %v35
  %v297 = vadd.f32 %v287, %v36
  %v298 = vadd.f32 %v288, %v37
  %v299 = vadd.f32 %v289, %v38
  %v300 = vadd.f32 %v290, %v39
  %v301 = vadd.f32 %v291, %v40
  %v302 = vadd.f32 %v292, %v41
  %v303 = vadd.f32 %v293, %v42
  %vm304 = vcmask 654336
  %v305 = vsel %vm304, %v294, -inf
  %306 = vmax.xlane.f32.xlu0 %v305
  %v307 = vpop.xlane.xlu0 %306
  %v308 = vsel %vm304, %v295, -inf
  %309 = vmax.xlane.f32.xlu0 %v308
  %v310 = vpop.xlane.xlu0 %309
  %v311 = vsel %vm304, %v296, -inf
  %312 = vmax.xlane.f32.xlu0 %v311
  %v313 = vpop.xlane.xlu0 %312
  %v314 = vsel %vm304, %v297, -inf
  %315 = vmax.xlane.f32.xlu0 %v314
  %v316 = vpop.xlane.xlu0 %315
  %v317 = vsel %vm304, %v298, -inf
  %318 = vmax.xlane.f32.xlu0 %v317
  %v319 = vpop.xlane.xlu0 %318
  %v320 = vsel %vm304, %v299, -inf
  %321 = vmax.xlane.f32.xlu0 %v320
  %v322 = vpop.xlane.xlu0 %321
  %v323 = vsel %vm304, %v300, -inf
  %324 = vmax.xlane.f32.xlu0 %v323
  %v325 = vpop.xlane.xlu0 %324
  %v326 = vsel %vm304, %v301, -inf
  %327 = vmax.xlane.f32.xlu0 %v326
  %v328 = vpop.xlane.xlu0 %327
  %v329 = vsel %vm304, %v302, -inf
  %330 = vmax.xlane.f32.xlu0 %v329
  %v331 = vpop.xlane.xlu0 %330
  %v332 = vsel %vm304, %v303, -inf
  %333 = vmax.xlane.f32.xlu0 %v332
  %v334 = vpop.xlane.xlu0 %333
  %v335 = vsub.f32 %v294, %v307
  %v336 = vsub.f32 %v295, %v310
  %v337 = vsub.f32 %v296, %v313
  %v338 = vsub.f32 %v297, %v316
  %v339 = vsub.f32 %v298, %v319
  %v340 = vsub.f32 %v299, %v322
  %v341 = vsub.f32 %v300, %v325
  %v342 = vsub.f32 %v301, %v328
  %v343 = vsub.f32 %v302, %v331
  %v344 = vsub.f32 %v303, %v334
  %v345 = vmul.f32 %v335, 1.442695
  %v346 = vpow.pop %v345
  %v347 = vmul.f32 %v336, 1.442695
  %v348 = vpow.pop %v347
  %v349 = vmul.f32 %v337, 1.442695
  %v350 = vpow.pop %v349
  %v351 = vmul.f32 %v338, 1.442695
  %v352 = vpow.pop %v351
  %v353 = vmul.f32 %v339, 1.442695
  %v354 = vpow.pop %v353
  %v355 = vmul.f32 %v340, 1.442695
  %v356 = vpow.pop %v355
  %v357 = vmul.f32 %v341, 1.442695
  %v358 = vpow.pop %v357
  %v359 = vmul.f32 %v342, 1.442695
  %v360 = vpow.pop %v359
  %v361 = vmul.f32 %v343, 1.442695
  %v362 = vpow.pop %v361
  %v363 = vmul.f32 %v344, 1.442695
  %v364 = vpow.pop %v363
  %v365 = vsel %vm304, %v346, 0.0
  %366 = vadd.xlane.f32.xlu0 %v365
  %v367 = vpop.xlane.xlu0 %366
  %v368 = vsel %vm304, %v348, 0.0
  %369 = vadd.xlane.f32.xlu0 %v368
  %v370 = vpop.xlane.xlu0 %369
  %v371 = vsel %vm304, %v350, 0.0
  %372 = vadd.xlane.f32.xlu0 %v371
  %v373 = vpop.xlane.xlu0 %372
  %v374 = vsel %vm304, %v352, 0.0
  %375 = vadd.xlane.f32.xlu0 %v374
  %v376 = vpop.xlane.xlu0 %375
  %v377 = vsel %vm304, %v354, 0.0
  %378 = vadd.xlane.f32.xlu0 %v377
  %v379 = vpop.xlane.xlu0 %378
  %v380 = vsel %vm304, %v356, 0.0
  %381 = vadd.xlane.f32.xlu0 %v380
  %v382 = vpop.xlane.xlu0 %381
  %v383 = vsel %vm304, %v358, 0.0
  %384 = vadd.xlane.f32.xlu0 %v383
  %v385 = vpop.xlane.xlu0 %384
  %v386 = vsel %vm304, %v360, 0.0
  %387 = vadd.xlane.f32.xlu0 %v386
  %v388 = vpop.xlane.xlu0 %387
  %v389 = vsel %vm304, %v362, 0.0
  %390 = vadd.xlane.f32.xlu0 %v389
  %v391 = vpop.xlane.xlu0 %390
  %v392 = vsel %vm304, %v364, 0.0
  %393 = vadd.xlane.f32.xlu0 %v392
  %v394 = vpop.xlane.xlu0 %393
  %v395 = vrcp.pop %v367
  %v396 = vrcp.pop %v370
  %v397 = vrcp.pop %v373
  %v398 = vrcp.pop %v376
  %v399 = vrcp.pop %v379
  %v400 = vrcp.pop %v382
  %v401 = vrcp.pop %v385
  %v402 = vrcp.pop %v388
  %v403 = vrcp.pop %v391
  %v404 = vrcp.pop %v394
  %v405 = vmul.f32 %v346, %v395
  %v406 = vmul.f32 %v348, %v396
  %v407 = vmul.f32 %v350, %v397
  %v408 = vmul.f32 %v352, %v398
  %v409 = vmul.f32 %v354, %v399
  %v410 = vmul.f32 %v356, %v400
  %v411 = vmul.f32 %v358, %v401
  %v412 = vmul.f32 %v360, %v402
  %v413 = vmul.f32 %v362, %v403
  %v414 = vmul.f32 %v364, %v404
  %v415 = vpack.c.bf16 %v406, %v405
  %v416 = vpack.c.bf16 %v408, %v407
  %v417 = vpack.c.bf16 %v410, %v409
  %v418 = vpack.c.bf16 %v412, %v411
  %v419 = vpack.c.bf16 %v414, %v413
  %420 = vrot.lane.b32.xlu0 %v160, 64
  %v421 = vpop.permute.xlu0 %420
  %422 = vrot.lane.b32.xlu0 %v161, 64
  %v423 = vpop.permute.xlu0 %422
  %424 = vrot.lane.b32.xlu0 %v162, 64
  %v425 = vpop.permute.xlu0 %424
  %426 = vrot.lane.b32.xlu0 %v163, 64
  %v427 = vpop.permute.xlu0 %426
  %428 = vrot.lane.b32.xlu0 %v164, 64
  %v429 = vpop.permute.xlu0 %428
  %v436 = vsel %vm304, %v415, 0
  %v439 = vsel %vm304, %v416, 0
  %v442 = vsel %vm304, %v417, 0
  %v445 = vsel %vm304, %v418, 0
  %v448 = vsel %vm304, %v419, 0
  %450 = vmatprep.subr.bf16.mxu0 0
  %451 = vmatpush1.bf16.msra.mxu0 %v421
  %452 = vmatprep.subr.bf16.mxu0 0
  %453 = vmatpush1.bf16.msra.mxu0 %v423
  %454 = vmatprep.subr.bf16.mxu0 0
  %455 = vmatpush1.bf16.msra.mxu0 %v425
  %456 = vmatprep.subr.bf16.mxu0 0
  %457 = vmatpush1.bf16.msra.mxu0 %v427
  %458 = vmatprep.subr.bf16.mxu0 0
  %459 = vmatpush1.bf16.msra.mxu0 %v429
  %460 = vmatprep.subr.bf16.mxu0 0
  %461 = vmatpush1.bf16.msra.mxu0 0
  %462 = vmatprep.subr.bf16.mxu0 0
  %463 = vmatpush1.bf16.msra.mxu0 0
  %464 = vmatprep.subr.bf16.mxu0 0
  %465 = vmatpush1.bf16.msra.mxu0 0
  %466 = vmatprep.subr.bf16.mxu0 0
  %467 = vmatpush1.bf16.msra.mxu0 0
  %468 = vmatprep.subr.bf16.mxu0 0
  %469 = vmatpush1.bf16.msra.mxu0 0
  %470 = vmatprep.subr.bf16.mxu0 0
  %471 = vmatpush1.bf16.msra.mxu0 0
  %472 = vmatprep.subr.bf16.mxu0 0
  %473 = vmatpush1.bf16.msra.mxu0 0
  %474 = vmatprep.subr.bf16.mxu0 0
  %475 = vmatpush1.bf16.msra.mxu0 0
  %476 = vmatprep.subr.bf16.mxu0 0
  %477 = vmatpush1.bf16.msra.mxu0 0
  %478 = vmatprep.subr.bf16.mxu0 0
  %479 = vmatpush1.bf16.msra.mxu0 0
  %480 = vmatprep.subr.bf16.mxu0 0
  %481 = vmatpush1.bf16.msra.mxu0 0
  %482 = vmatprep.mubr.bf16.mxu0 0
  %483 = vmatmul.mubr.bf16.gmra.mrb[0].mxu0 %v436
  %v484 = vpop.f32.mrb[0].mxu0
  %v485 = vadd.f32 0.0, %v484
  %v486 = vpop.f32.mrb[0].mxu0
  %v487 = vpop.f32.mrb[0].mxu0
  %v488 = vadd.f32 0.0, %v487
  %v489 = vpop.f32.mrb[0].mxu0
  %490 = vmatprep.mubr.bf16.mxu0 0
  %491 = vmatmul.mubr.bf16.gmra.mrb[0].mxu0 %v439
  %v492 = vpop.f32.mrb[0].mxu0
  %v493 = vadd.f32 0.0, %v492
  %v494 = vpop.f32.mrb[0].mxu0
  %v495 = vpop.f32.mrb[0].mxu0
  %v496 = vadd.f32 0.0, %v495
  %v497 = vpop.f32.mrb[0].mxu0
  %498 = vmatprep.mubr.bf16.mxu0 0
  %499 = vmatmul.mubr.bf16.gmra.mrb[0].mxu0 %v442
  %v500 = vpop.f32.mrb[0].mxu0
  %v501 = vadd.f32 0.0, %v500
  %v502 = vpop.f32.mrb[0].mxu0
  %v503 = vpop.f32.mrb[0].mxu0
  %v504 = vadd.f32 0.0, %v503
  %v505 = vpop.f32.mrb[0].mxu0
  %506 = vmatprep.mubr.bf16.mxu0 0
  %507 = vmatmul.mubr.bf16.gmra.mrb[0].mxu0 %v445
  %v508 = vpop.f32.mrb[0].mxu0
  %v509 = vadd.f32 0.0, %v508
  %v510 = vpop.f32.mrb[0].mxu0
  %v511 = vpop.f32.mrb[0].mxu0
  %v512 = vadd.f32 0.0, %v511
  %v513 = vpop.f32.mrb[0].mxu0
  %514 = vmatprep.mubr.bf16.mxu0 0
  %515 = vmatmul.mubr.bf16.gmra.mrb[0].mxu0 %v448
  %v516 = vpop.f32.mrb[0].mxu0
  %v517 = vadd.f32 0.0, %v516
  %v518 = vpop.f32.mrb[0].mxu0
  %v519 = vpop.f32.mrb[0].mxu0
  %v520 = vadd.f32 0.0, %v519
  %v521 = vpop.f32.mrb[0].mxu0
  %522 = vdwg.mxu0
  %523 = vrot.lane.b32.xlu0 %v160, 112
  %v524 = vpop.permute.xlu0 %523
  %525 = vrot.lane.b32.xlu0 %v161, 112
  %v526 = vpop.permute.xlu0 %525
  %527 = vrot.lane.b32.xlu0 %v162, 112
  %v528 = vpop.permute.xlu0 %527
  %529 = vrot.lane.b32.xlu0 %v163, 112
  %v530 = vpop.permute.xlu0 %529
  %531 = vrot.lane.b32.xlu0 %v164, 112
  %v532 = vpop.permute.xlu0 %531
  %533 = vrot.lane.b32.xlu0 %v160, 80
  %v534 = vpop.permute.xlu0 %533
  %535 = vrot.lane.b32.xlu0 %v161, 80
  %v536 = vpop.permute.xlu0 %535
  %537 = vrot.lane.b32.xlu0 %v162, 80
  %v538 = vpop.permute.xlu0 %537
  %539 = vrot.lane.b32.xlu0 %v163, 80
  %v540 = vpop.permute.xlu0 %539
  %541 = vrot.lane.b32.xlu0 %v164, 80
  %v542 = vpop.permute.xlu0 %541
  %v544 = vsel %vm180, %v524, 0
  %v547 = vsel %vm180, %v526, 0
  %v550 = vsel %vm180, %v528, 0
  %v553 = vsel %vm180, %v530, 0
  %v556 = vsel %vm180, %v532, 0
  %v559 = vsel %vm180, %v534, 0
  %v562 = vsel %vm180, %v536, 0
  %v565 = vsel %vm180, %v538, 0
  %v568 = vsel %vm180, %v540, 0
  %v571 = vsel %vm180, %v542, 0
  %573 = vmatprep.subr.bf16.mxu0 0
  %574 = vmatpush1.bf16.xpose.msra.mxu0 %v559
  %575 = vmatprep.subr.bf16.mxu0 0
  %576 = vmatpush1.bf16.xpose.msra.mxu0 %v562
  %577 = vmatprep.subr.bf16.mxu0 0
  %578 = vmatpush1.bf16.xpose.msra.mxu0 %v565
  %579 = vmatprep.subr.bf16.mxu0 0
  %580 = vmatpush1.bf16.xpose.msra.mxu0 %v568
  %581 = vmatprep.subr.bf16.mxu0 0
  %582 = vmatpush1.bf16.xpose.msra.mxu0 %v571
  %583 = vmatprep.subr.bf16.mxu0 0
  %584 = vmatpush1.bf16.xpose.msra.mxu0 0
  %585 = vmatprep.subr.bf16.mxu0 0
  %586 = vmatpush1.bf16.xpose.msra.mxu0 0
  %587 = vmatprep.subr.bf16.mxu0 0
  %588 = vmatpush1.bf16.xpose.msra.mxu0 0
  %589 = vmatprep.subr.bf16.mxu0 0
  %590 = vmatpush1.bf16.xpose.msra.mxu0 0
  %591 = vmatprep.subr.bf16.mxu0 0
  %592 = vmatpush1.bf16.xpose.msra.mxu0 0
  %593 = vmatprep.subr.bf16.mxu0 0
  %594 = vmatpush1.bf16.xpose.msra.mxu0 0
  %595 = vmatprep.subr.bf16.mxu0 0
  %596 = vmatpush1.bf16.xpose.msra.mxu0 0
  %597 = vmatprep.subr.bf16.mxu0 0
  %598 = vmatpush1.bf16.xpose.msra.mxu0 0
  %599 = vmatprep.subr.bf16.mxu0 0
  %600 = vmatpush1.bf16.xpose.msra.mxu0 0
  %601 = vmatprep.subr.bf16.mxu0 0
  %602 = vmatpush1.bf16.xpose.msra.mxu0 0
  %603 = vmatprep.subr.bf16.mxu0 0
  %604 = vmatpush1.bf16.xpose.msra.mxu0 0
  %605 = vmatprep.mubr.bf16.mxu0 0
  %606 = vmatmul.mubr.bf16.gmra.mrb[0].mxu0 %v544
  %v607 = vpop.f32.mrb[0].mxu0
  %v608 = vadd.f32 0.0, %v607
  %v609 = vpop.f32.mrb[0].mxu0
  %v610 = vpop.f32.mrb[0].mxu0
  %v611 = vadd.f32 0.0, %v610
  %v612 = vpop.f32.mrb[0].mxu0
  %613 = vmatprep.mubr.bf16.mxu0 0
  %614 = vmatmul.mubr.bf16.gmra.mrb[0].mxu0 %v547
  %v615 = vpop.f32.mrb[0].mxu0
  %v616 = vadd.f32 0.0, %v615
  %v617 = vpop.f32.mrb[0].mxu0
  %v618 = vpop.f32.mrb[0].mxu0
  %v619 = vadd.f32 0.0, %v618
  %v620 = vpop.f32.mrb[0].mxu0
  %621 = vmatprep.mubr.bf16.mxu0 0
  %622 = vmatmul.mubr.bf16.gmra.mrb[0].mxu0 %v550
  %v623 = vpop.f32.mrb[0].mxu0
  %v624 = vadd.f32 0.0, %v623
  %v625 = vpop.f32.mrb[0].mxu0
  %v626 = vpop.f32.mrb[0].mxu0
  %v627 = vadd.f32 0.0, %v626
  %v628 = vpop.f32.mrb[0].mxu0
  %629 = vmatprep.mubr.bf16.mxu0 0
  %630 = vmatmul.mubr.bf16.gmra.mrb[0].mxu0 %v553
  %v631 = vpop.f32.mrb[0].mxu0
  %v632 = vadd.f32 0.0, %v631
  %v633 = vpop.f32.mrb[0].mxu0
  %v634 = vpop.f32.mrb[0].mxu0
  %v635 = vadd.f32 0.0, %v634
  %v636 = vpop.f32.mrb[0].mxu0
  %637 = vmatprep.mubr.bf16.mxu0 0
  %638 = vmatmul.mubr.bf16.gmra.mrb[0].mxu0 %v556
  %v639 = vpop.f32.mrb[0].mxu0
  %v640 = vadd.f32 0.0, %v639
  %v641 = vpop.f32.mrb[0].mxu0
  %v642 = vpop.f32.mrb[0].mxu0
  %v643 = vadd.f32 0.0, %v642
  %v644 = vpop.f32.mrb[0].mxu0
  %645 = vdwg.mxu0
  %v646 = vmul.f32 %v608, 0.25
  %v647 = vmul.f32 %v611, 0.25
  %v648 = vmul.f32 %v616, 0.25
  %v649 = vmul.f32 %v619, 0.25
  %v650 = vmul.f32 %v624, 0.25
  %v651 = vmul.f32 %v627, 0.25
  %v652 = vmul.f32 %v632, 0.25
  %v653 = vmul.f32 %v635, 0.25
  %v654 = vmul.f32 %v640, 0.25
  %v655 = vmul.f32 %v643, 0.25
  %v656 = vadd.f32 %v646, %v33
  %v657 = vadd.f32 %v647, %v34
  %v658 = vadd.f32 %v648, %v35
  %v659 = vadd.f32 %v649, %v36
  %v660 = vadd.f32 %v650, %v37
  %v661 = vadd.f32 %v651, %v38
  %v662 = vadd.f32 %v652, %v39
  %v663 = vadd.f32 %v653, %v40
  %v664 = vadd.f32 %v654, %v41
  %v665 = vadd.f32 %v655, %v42
  %v666 = vsel %vm304, %v656, -inf
  %667 = vmax.xlane.f32.xlu0 %v666
  %v668 = vpop.xlane.xlu0 %667
  %v669 = vsel %vm304, %v657, -inf
  %670 = vmax.xlane.f32.xlu0 %v669
  %v671 = vpop.xlane.xlu0 %670
  %v672 = vsel %vm304, %v658, -inf
  %673 = vmax.xlane.f32.xlu0 %v672
  %v674 = vpop.xlane.xlu0 %673
  %v675 = vsel %vm304, %v659, -inf
  %676 = vmax.xlane.f32.xlu0 %v675
  %v677 = vpop.xlane.xlu0 %676
  %v678 = vsel %vm304, %v660, -inf
  %679 = vmax.xlane.f32.xlu0 %v678
  %v680 = vpop.xlane.xlu0 %679
  %v681 = vsel %vm304, %v661, -inf
  %682 = vmax.xlane.f32.xlu0 %v681
  %v683 = vpop.xlane.xlu0 %682
  %v684 = vsel %vm304, %v662, -inf
  %685 = vmax.xlane.f32.xlu0 %v684
  %v686 = vpop.xlane.xlu0 %685
  %v687 = vsel %vm304, %v663, -inf
  %688 = vmax.xlane.f32.xlu0 %v687
  %v689 = vpop.xlane.xlu0 %688
  %v690 = vsel %vm304, %v664, -inf
  %691 = vmax.xlane.f32.xlu0 %v690
  %v692 = vpop.xlane.xlu0 %691
  %v693 = vsel %vm304, %v665, -inf
  %694 = vmax.xlane.f32.xlu0 %v693
  %v695 = vpop.xlane.xlu0 %694
  %v696 = vsub.f32 %v656, %v668
  %v697 = vsub.f32 %v657, %v671
  %v698 = vsub.f32 %v658, %v674
  %v699 = vsub.f32 %v659, %v677
  %v700 = vsub.f32 %v660, %v680
  %v701 = vsub.f32 %v661, %v683
  %v702 = vsub.f32 %v662, %v686
  %v703 = vsub.f32 %v663, %v689
  %v704 = vsub.f32 %v664, %v692
  %v705 = vsub.f32 %v665, %v695
  %v706 = vmul.f32 %v696, 1.442695
  %v707 = vpow.pop %v706
  %v708 = vmul.f32 %v697, 1.442695
  %v709 = vpow.pop %v708
  %v710 = vmul.f32 %v698, 1.442695
  %v711 = vpow.pop %v710
  %v712 = vmul.f32 %v699, 1.442695
  %v713 = vpow.pop %v712
  %v714 = vmul.f32 %v700, 1.442695
  %v715 = vpow.pop %v714
  %v716 = vmul.f32 %v701, 1.442695
  %v717 = vpow.pop %v716
  %v718 = vmul.f32 %v702, 1.442695
  %v719 = vpow.pop %v718
  %v720 = vmul.f32 %v703, 1.442695
  %v721 = vpow.pop %v720
  %v722 = vmul.f32 %v704, 1.442695
  %v723 = vpow.pop %v722
  %v724 = vmul.f32 %v705, 1.442695
  %v725 = vpow.pop %v724
  %v726 = vsel %vm304, %v707, 0.0
  %727 = vadd.xlane.f32.xlu0 %v726
  %v728 = vpop.xlane.xlu0 %727
  %v729 = vsel %vm304, %v709, 0.0
  %730 = vadd.xlane.f32.xlu0 %v729
  %v731 = vpop.xlane.xlu0 %730
  %v732 = vsel %vm304, %v711, 0.0
  %733 = vadd.xlane.f32.xlu0 %v732
  %v734 = vpop.xlane.xlu0 %733
  %v735 = vsel %vm304, %v713, 0.0
  %736 = vadd.xlane.f32.xlu0 %v735
  %v737 = vpop.xlane.xlu0 %736
  %v738 = vsel %vm304, %v715, 0.0
  %739 = vadd.xlane.f32.xlu0 %v738
  %v740 = vpop.xlane.xlu0 %739
  %v741 = vsel %vm304, %v717, 0.0
  %742 = vadd.xlane.f32.xlu0 %v741
  %v743 = vpop.xlane.xlu0 %742
  %v744 = vsel %vm304, %v719, 0.0
  %745 = vadd.xlane.f32.xlu0 %v744
  %v746 = vpop.xlane.xlu0 %745
  %v747 = vsel %vm304, %v721, 0.0
  %748 = vadd.xlane.f32.xlu0 %v747
  %v749 = vpop.xlane.xlu0 %748
  %v750 = vsel %vm304, %v723, 0.0
  %751 = vadd.xlane.f32.xlu0 %v750
  %v752 = vpop.xlane.xlu0 %751
  %v753 = vsel %vm304, %v725, 0.0
  %754 = vadd.xlane.f32.xlu0 %v753
  %v755 = vpop.xlane.xlu0 %754
  %v756 = vrcp.pop %v728
  %v757 = vrcp.pop %v731
  %v758 = vrcp.pop %v734
  %v759 = vrcp.pop %v737
  %v760 = vrcp.pop %v740
  %v761 = vrcp.pop %v743
  %v762 = vrcp.pop %v746
  %v763 = vrcp.pop %v749
  %v764 = vrcp.pop %v752
  %v765 = vrcp.pop %v755
  %v766 = vmul.f32 %v707, %v756
  %v767 = vmul.f32 %v709, %v757
  %v768 = vmul.f32 %v711, %v758
  %v769 = vmul.f32 %v713, %v759
  %v770 = vmul.f32 %v715, %v760
  %v771 = vmul.f32 %v717, %v761
  %v772 = vmul.f32 %v719, %v762
  %v773 = vmul.f32 %v721, %v763
  %v774 = vmul.f32 %v723, %v764
  %v775 = vmul.f32 %v725, %v765
  %v776 = vpack.c.bf16 %v767, %v766
  %v777 = vpack.c.bf16 %v769, %v768
  %v778 = vpack.c.bf16 %v771, %v770
  %v779 = vpack.c.bf16 %v773, %v772
  %v780 = vpack.c.bf16 %v775, %v774
  %781 = vrot.lane.b32.xlu0 %v160, 48
  %v782 = vpop.permute.xlu0 %781
  %783 = vrot.lane.b32.xlu0 %v161, 48
  %v784 = vpop.permute.xlu0 %783
  %785 = vrot.lane.b32.xlu0 %v162, 48
  %v786 = vpop.permute.xlu0 %785
  %787 = vrot.lane.b32.xlu0 %v163, 48
  %v788 = vpop.permute.xlu0 %787
  %789 = vrot.lane.b32.xlu0 %v164, 48
  %v790 = vpop.permute.xlu0 %789
  %v797 = vsel %vm304, %v776, 0
  %v800 = vsel %vm304, %v777, 0
  %v803 = vsel %vm304, %v778, 0
  %v806 = vsel %vm304, %v779, 0
  %v809 = vsel %vm304, %v780, 0
  %811 = vmatprep.subr.bf16.mxu0 0
  %812 = vmatpush1.bf16.msra.mxu0 %v782
  %813 = vmatprep.subr.bf16.mxu0 0
  %814 = vmatpush1.bf16.msra.mxu0 %v784
  %815 = vmatprep.subr.bf16.mxu0 0
  %816 = vmatpush1.bf16.msra.mxu0 %v786
  %817 = vmatprep.subr.bf16.mxu0 0
  %818 = vmatpush1.bf16.msra.mxu0 %v788
  %819 = vmatprep.subr.bf16.mxu0 0
  %820 = vmatpush1.bf16.msra.mxu0 %v790
  %821 = vmatprep.subr.bf16.mxu0 0
  %822 = vmatpush1.bf16.msra.mxu0 0
  %823 = vmatprep.subr.bf16.mxu0 0
  %824 = vmatpush1.bf16.msra.mxu0 0
  %825 = vmatprep.subr.bf16.mxu0 0
  %826 = vmatpush1.bf16.msra.mxu0 0
  %827 = vmatprep.subr.bf16.mxu0 0
  %828 = vmatpush1.bf16.msra.mxu0 0
  %829 = vmatprep.subr.bf16.mxu0 0
  %830 = vmatpush1.bf16.msra.mxu0 0
  %831 = vmatprep.subr.bf16.mxu0 0
  %832 = vmatpush1.bf16.msra.mxu0 0
  %833 = vmatprep.subr.bf16.mxu0 0
  %834 = vmatpush1.bf16.msra.mxu0 0
  %835 = vmatprep.subr.bf16.mxu0 0
  %836 = vmatpush1.bf16.msra.mxu0 0
  %837 = vmatprep.subr.bf16.mxu0 0
  %838 = vmatpush1.bf16.msra.mxu0 0
  %839 = vmatprep.subr.bf16.mxu0 0
  %840 = vmatpush1.bf16.msra.mxu0 0
  %841 = vmatprep.subr.bf16.mxu0 0
  %842 = vmatpush1.bf16.msra.mxu0 0
  %843 = vmatprep.mubr.bf16.mxu0 0
  %844 = vmatmul.mubr.bf16.gmra.mrb[0].mxu0 %v797
  %v845 = vpop.f32.mrb[0].mxu0
  %v846 = vadd.f32 0.0, %v845
  %v847 = vpop.f32.mrb[0].mxu0
  %v848 = vpop.f32.mrb[0].mxu0
  %v849 = vadd.f32 0.0, %v848
  %v850 = vpop.f32.mrb[0].mxu0
  %851 = vmatprep.mubr.bf16.mxu0 0
  %852 = vmatmul.mubr.bf16.gmra.mrb[0].mxu0 %v800
  %v853 = vpop.f32.mrb[0].mxu0
  %v854 = vadd.f32 0.0, %v853
  %v855 = vpop.f32.mrb[0].mxu0
  %v856 = vpop.f32.mrb[0].mxu0
  %v857 = vadd.f32 0.0, %v856
  %v858 = vpop.f32.mrb[0].mxu0
  %859 = vmatprep.mubr.bf16.mxu0 0
  %860 = vmatmul.mubr.bf16.gmra.mrb[0].mxu0 %v803
  %v861 = vpop.f32.mrb[0].mxu0
  %v862 = vadd.f32 0.0, %v861
  %v863 = vpop.f32.mrb[0].mxu0
  %v864 = vpop.f32.mrb[0].mxu0
  %v865 = vadd.f32 0.0, %v864
  %v866 = vpop.f32.mrb[0].mxu0
  %867 = vmatprep.mubr.bf16.mxu0 0
  %868 = vmatmul.mubr.bf16.gmra.mrb[0].mxu0 %v806
  %v869 = vpop.f32.mrb[0].mxu0
  %v870 = vadd.f32 0.0, %v869
  %v871 = vpop.f32.mrb[0].mxu0
  %v872 = vpop.f32.mrb[0].mxu0
  %v873 = vadd.f32 0.0, %v872
  %v874 = vpop.f32.mrb[0].mxu0
  %875 = vmatprep.mubr.bf16.mxu0 0
  %876 = vmatmul.mubr.bf16.gmra.mrb[0].mxu0 %v809
  %v877 = vpop.f32.mrb[0].mxu0
  %v878 = vadd.f32 0.0, %v877
  %v879 = vpop.f32.mrb[0].mxu0
  %v880 = vpop.f32.mrb[0].mxu0
  %v881 = vadd.f32 0.0, %v880
  %v882 = vpop.f32.mrb[0].mxu0
  %883 = vdwg.mxu0
  %894 = vrot.lane.b32.xlu0 %v846, 16
  %v895 = vpop.permute.xlu0 %894
  %896 = vrot.lane.b32.xlu0 %v849, 16
  %v897 = vpop.permute.xlu0 %896
  %898 = vrot.lane.b32.xlu0 %v854, 16
  %v899 = vpop.permute.xlu0 %898
  %900 = vrot.lane.b32.xlu0 %v857, 16
  %v901 = vpop.permute.xlu0 %900
  %902 = vrot.lane.b32.xlu0 %v862, 16
  %v903 = vpop.permute.xlu0 %902
  %904 = vrot.lane.b32.xlu0 %v865, 16
  %v905 = vpop.permute.xlu0 %904
  %906 = vrot.lane.b32.xlu0 %v870, 16
  %v907 = vpop.permute.xlu0 %906
  %908 = vrot.lane.b32.xlu0 %v873, 16
  %v909 = vpop.permute.xlu0 %908
  %910 = vrot.lane.b32.xlu0 %v878, 16
  %v911 = vpop.permute.xlu0 %910
  %912 = vrot.lane.b32.xlu0 %v881, 16
  %v913 = vpop.permute.xlu0 %912
  %v924 = vsel %vm180, %v485, %v895
  %v925 = vsel %vm180, %v488, %v897
  %v926 = vsel %vm180, %v493, %v899
  %v927 = vsel %vm180, %v496, %v901
  %v928 = vsel %vm180, %v501, %v903
  %v929 = vsel %vm180, %v504, %v905
  %v930 = vsel %vm180, %v509, %v907
  %v931 = vsel %vm180, %v512, %v909
  %v932 = vsel %vm180, %v517, %v911
  %v933 = vsel %vm180, %v520, %v913
  %v934 = vpack.c.bf16 %v925, %v924
  %v935 = vpack.c.bf16 %v927, %v926
  %v936 = vpack.c.bf16 %v929, %v928
  %v937 = vpack.c.bf16 %v931, %v930
  %v938 = vpack.c.bf16 %v933, %v932
  %v939 = vlaneseq
  %v940 = vshrl.u32 %v939, 7
  %v941 = vsub.s32 0, %v940
  %v942 = vrot.slane %v31, %v941
  %943 = vrot.lane.b32.xlu0 %v67, 32
  %v944 = vpop.permute.xlu0 %943
  %945 = vrot.lane.b32.xlu0 %v68, 32
  %v946 = vpop.permute.xlu0 %945
  %v950 = vsel %vm71, %v934, 0
  %v953 = vsel %vm71, %v935, 0
  %v956 = vsel %vm71, %v936, 0
  %v959 = vsel %vm71, %v937, 0
  %v962 = vsel %vm71, %v938, 0
  %964 = vmatprep.subr.bf16.mxu0 0
  %965 = vmatpush1.bf16.msra.mxu0 %v944
  %966 = vmatprep.subr.bf16.mxu0 0
  %967 = vmatpush1.bf16.msra.mxu0 %v946
  %968 = vmatprep.subr.bf16.mxu0 0
  %969 = vmatpush1.bf16.msra.mxu0 0
  %970 = vmatprep.subr.bf16.mxu0 0
  %971 = vmatpush1.bf16.msra.mxu0 0
  %972 = vmatprep.subr.bf16.mxu0 0
  %973 = vmatpush1.bf16.msra.mxu0 0
  %974 = vmatprep.subr.bf16.mxu0 0
  %975 = vmatpush1.bf16.msra.mxu0 0
  %976 = vmatprep.subr.bf16.mxu0 0
  %977 = vmatpush1.bf16.msra.mxu0 0
  %978 = vmatprep.subr.bf16.mxu0 0
  %979 = vmatpush1.bf16.msra.mxu0 0
  %980 = vmatprep.subr.bf16.mxu0 0
  %981 = vmatpush1.bf16.msra.mxu0 0
  %982 = vmatprep.subr.bf16.mxu0 0
  %983 = vmatpush1.bf16.msra.mxu0 0
  %984 = vmatprep.subr.bf16.mxu0 0
  %985 = vmatpush1.bf16.msra.mxu0 0
  %986 = vmatprep.subr.bf16.mxu0 0
  %987 = vmatpush1.bf16.msra.mxu0 0
  %988 = vmatprep.subr.bf16.mxu0 0
  %989 = vmatpush1.bf16.msra.mxu0 0
  %990 = vmatprep.subr.bf16.mxu0 0
  %991 = vmatpush1.bf16.msra.mxu0 0
  %992 = vmatprep.subr.bf16.mxu0 0
  %993 = vmatpush1.bf16.msra.mxu0 0
  %994 = vmatprep.subr.bf16.mxu0 0
  %995 = vmatpush1.bf16.msra.mxu0 0
  %996 = vmatprep.mubr.bf16.mxu0 0
  %997 = vmatmul.mubr.bf16.gmra.mrb[0].mxu0 %v950
  %v998 = vpop.f32.mrb[0].mxu0
  %v999 = vadd.f32 %v942, %v998
  %v1000 = vpop.f32.mrb[0].mxu0
  %v1001 = vpop.f32.mrb[0].mxu0
  %v1002 = vadd.f32 %v942, %v1001
  %v1003 = vpop.f32.mrb[0].mxu0
  %1004 = vmatprep.mubr.bf16.mxu0 0
  %1005 = vmatmul.mubr.bf16.gmra.mrb[0].mxu0 %v953
  %v1006 = vpop.f32.mrb[0].mxu0
  %v1007 = vadd.f32 %v942, %v1006
  %v1008 = vpop.f32.mrb[0].mxu0
  %v1009 = vpop.f32.mrb[0].mxu0
  %v1010 = vadd.f32 %v942, %v1009
  %v1011 = vpop.f32.mrb[0].mxu0
  %1012 = vmatprep.mubr.bf16.mxu0 0
  %1013 = vmatmul.mubr.bf16.gmra.mrb[0].mxu0 %v956
  %v1014 = vpop.f32.mrb[0].mxu0
  %v1015 = vadd.f32 %v942, %v1014
  %v1016 = vpop.f32.mrb[0].mxu0
  %v1017 = vpop.f32.mrb[0].mxu0
  %v1018 = vadd.f32 %v942, %v1017
  %v1019 = vpop.f32.mrb[0].mxu0
  %1020 = vmatprep.mubr.bf16.mxu0 0
  %1021 = vmatmul.mubr.bf16.gmra.mrb[0].mxu0 %v959
  %v1022 = vpop.f32.mrb[0].mxu0
  %v1023 = vadd.f32 %v942, %v1022
  %v1024 = vpop.f32.mrb[0].mxu0
  %v1025 = vpop.f32.mrb[0].mxu0
  %v1026 = vadd.f32 %v942, %v1025
  %v1027 = vpop.f32.mrb[0].mxu0
  %1028 = vmatprep.mubr.bf16.mxu0 0
  %1029 = vmatmul.mubr.bf16.gmra.mrb[0].mxu0 %v962
  %v1030 = vpop.f32.mrb[0].mxu0
  %v1031 = vadd.f32 %v942, %v1030
  %v1032 = vpop.f32.mrb[0].mxu0
  %v1033 = vpop.f32.mrb[0].mxu0
  %v1034 = vadd.f32 %v942, %v1033
  %v1035 = vpop.f32.mrb[0].mxu0
  %1036 = vdwg.mxu0
  %v1037 = vadd.f32 %v21, %v999
  %v1038 = vadd.f32 %v22, %v1002
  %v1039 = vadd.f32 %v23, %v1007
  %v1040 = vadd.f32 %v24, %v1010
  %v1041 = vadd.f32 %v25, %v1015
  %v1042 = vadd.f32 %v26, %v1018
  %v1043 = vadd.f32 %v27, %v1023
  %v1044 = vadd.f32 %v28, %v1026
  %v1045 = vadd.f32 %v29, %v1031
  %v1046 = vadd.f32 %v30, %v1034
  %v1047 = vsel %vm71, %v1037, 0.0
  %1048 = vadd.xlane.f32.xlu0 %v1047
  %v1049 = vpop.xlane.xlu0 %1048
  %v1050 = vsel %vm71, %v1038, 0.0
  %1051 = vadd.xlane.f32.xlu0 %v1050
  %v1052 = vpop.xlane.xlu0 %1051
  %v1053 = vsel %vm71, %v1039, 0.0
  %1054 = vadd.xlane.f32.xlu0 %v1053
  %v1055 = vpop.xlane.xlu0 %1054
  %v1056 = vsel %vm71, %v1040, 0.0
  %1057 = vadd.xlane.f32.xlu0 %v1056
  %v1058 = vpop.xlane.xlu0 %1057
  %v1059 = vsel %vm71, %v1041, 0.0
  %1060 = vadd.xlane.f32.xlu0 %v1059
  %v1061 = vpop.xlane.xlu0 %1060
  %v1062 = vsel %vm71, %v1042, 0.0
  %1063 = vadd.xlane.f32.xlu0 %v1062
  %v1064 = vpop.xlane.xlu0 %1063
  %v1065 = vsel %vm71, %v1043, 0.0
  %1066 = vadd.xlane.f32.xlu0 %v1065
  %v1067 = vpop.xlane.xlu0 %1066
  %v1068 = vsel %vm71, %v1044, 0.0
  %1069 = vadd.xlane.f32.xlu0 %v1068
  %v1070 = vpop.xlane.xlu0 %1069
  %v1071 = vsel %vm71, %v1045, 0.0
  %1072 = vadd.xlane.f32.xlu0 %v1071
  %v1073 = vpop.xlane.xlu0 %1072
  %v1074 = vsel %vm71, %v1046, 0.0
  %1075 = vadd.xlane.f32.xlu0 %v1074
  %v1076 = vpop.xlane.xlu0 %1075
  %v1077 = vrcp.pop 32.0
  %v1078 = vmul.f32 %v1049, %v1077
  %v1079 = vmul.f32 %v1052, %v1077
  %v1080 = vmul.f32 %v1055, %v1077
  %v1081 = vmul.f32 %v1058, %v1077
  %v1082 = vmul.f32 %v1061, %v1077
  %v1083 = vmul.f32 %v1064, %v1077
  %v1084 = vmul.f32 %v1067, %v1077
  %v1085 = vmul.f32 %v1070, %v1077
  %v1086 = vmul.f32 %v1073, %v1077
  %v1087 = vmul.f32 %v1076, %v1077
  %v1088 = vsub.f32 %v1037, %v1078
  %v1089 = vsub.f32 %v1038, %v1079
  %v1090 = vsub.f32 %v1039, %v1080
  %v1091 = vsub.f32 %v1040, %v1081
  %v1092 = vsub.f32 %v1041, %v1082
  %v1093 = vsub.f32 %v1042, %v1083
  %v1094 = vsub.f32 %v1043, %v1084
  %v1095 = vsub.f32 %v1044, %v1085
  %v1096 = vsub.f32 %v1045, %v1086
  %v1097 = vsub.f32 %v1046, %v1087
  %v1098 = vmul.f32 %v1088, %v1088
  %v1099 = vmul.f32 %v1089, %v1089
  %v1100 = vmul.f32 %v1090, %v1090
  %v1101 = vmul.f32 %v1091, %v1091
  %v1102 = vmul.f32 %v1092, %v1092
  %v1103 = vmul.f32 %v1093, %v1093
  %v1104 = vmul.f32 %v1094, %v1094
  %v1105 = vmul.f32 %v1095, %v1095
  %v1106 = vmul.f32 %v1096, %v1096
  %v1107 = vmul.f32 %v1097, %v1097
  %v1108 = vsel %vm71, %v1098, 0.0
  %1109 = vadd.xlane.f32.xlu0 %v1108
  %v1110 = vpop.xlane.xlu0 %1109
  %v1111 = vsel %vm71, %v1099, 0.0
  %1112 = vadd.xlane.f32.xlu0 %v1111
  %v1113 = vpop.xlane.xlu0 %1112
  %v1114 = vsel %vm71, %v1100, 0.0
  %1115 = vadd.xlane.f32.xlu0 %v1114
  %v1116 = vpop.xlane.xlu0 %1115
  %v1117 = vsel %vm71, %v1101, 0.0
  %1118 = vadd.xlane.f32.xlu0 %v1117
  %v1119 = vpop.xlane.xlu0 %1118
  %v1120 = vsel %vm71, %v1102, 0.0
  %1121 = vadd.xlane.f32.xlu0 %v1120
  %v1122 = vpop.xlane.xlu0 %1121
  %v1123 = vsel %vm71, %v1103, 0.0
  %1124 = vadd.xlane.f32.xlu0 %v1123
  %v1125 = vpop.xlane.xlu0 %1124
  %v1126 = vsel %vm71, %v1104, 0.0
  %1127 = vadd.xlane.f32.xlu0 %v1126
  %v1128 = vpop.xlane.xlu0 %1127
  %v1129 = vsel %vm71, %v1105, 0.0
  %1130 = vadd.xlane.f32.xlu0 %v1129
  %v1131 = vpop.xlane.xlu0 %1130
  %v1132 = vsel %vm71, %v1106, 0.0
  %1133 = vadd.xlane.f32.xlu0 %v1132
  %v1134 = vpop.xlane.xlu0 %1133
  %v1135 = vsel %vm71, %v1107, 0.0
  %1136 = vadd.xlane.f32.xlu0 %v1135
  %v1137 = vpop.xlane.xlu0 %1136
  %v1138 = vmul.f32 %v1110, %v1077
  %v1139 = vmul.f32 %v1113, %v1077
  %v1140 = vmul.f32 %v1116, %v1077
  %v1141 = vmul.f32 %v1119, %v1077
  %v1142 = vmul.f32 %v1122, %v1077
  %v1143 = vmul.f32 %v1125, %v1077
  %v1144 = vmul.f32 %v1128, %v1077
  %v1145 = vmul.f32 %v1131, %v1077
  %v1146 = vmul.f32 %v1134, %v1077
  %v1147 = vmul.f32 %v1137, %v1077
  %v1148 = vadd.f32 %v1138, 1e-05
  %v1149 = vadd.f32 %v1139, 1e-05
  %v1150 = vadd.f32 %v1140, 1e-05
  %v1151 = vadd.f32 %v1141, 1e-05
  %v1152 = vadd.f32 %v1142, 1e-05
  %v1153 = vadd.f32 %v1143, 1e-05
  %v1154 = vadd.f32 %v1144, 1e-05
  %v1155 = vadd.f32 %v1145, 1e-05
  %v1156 = vadd.f32 %v1146, 1e-05
  %v1157 = vadd.f32 %v1147, 1e-05
  %v1158 = vrsqrt.pop %v1148
  %v1159 = vrsqrt.pop %v1149
  %v1160 = vrsqrt.pop %v1150
  %v1161 = vrsqrt.pop %v1151
  %v1162 = vrsqrt.pop %v1152
  %v1163 = vrsqrt.pop %v1153
  %v1164 = vrsqrt.pop %v1154
  %v1165 = vrsqrt.pop %v1155
  %v1166 = vrsqrt.pop %v1156
  %v1167 = vrsqrt.pop %v1157
  %v1168 = vmul.f32 %v1088, %v1158
  %v1169 = vmul.f32 %v1089, %v1159
  %v1170 = vmul.f32 %v1090, %v1160
  %v1171 = vmul.f32 %v1091, %v1161
  %v1172 = vmul.f32 %v1092, %v1162
  %v1173 = vmul.f32 %v1093, %v1163
  %v1174 = vmul.f32 %v1094, %v1164
  %v1175 = vmul.f32 %v1095, %v1165
  %v1176 = vmul.f32 %v1096, %v1166
  %v1177 = vmul.f32 %v1097, %v1167
  %v1178 = vlaneseq
  %v1179 = vshrl.u32 %v1178, 7
  %v1180 = vsub.s32 3, %v1179
  %v1181 = vrot.slane %v31, %v1180
  %v1182 = vmul.f32 %v1168, %v1181
  %v1183 = vmul.f32 %v1169, %v1181
  %v1184 = vmul.f32 %v1170, %v1181
  %v1185 = vmul.f32 %v1171, %v1181
  %v1186 = vmul.f32 %v1172, %v1181
  %v1187 = vmul.f32 %v1173, %v1181
  %v1188 = vmul.f32 %v1174, %v1181
  %v1189 = vmul.f32 %v1175, %v1181
  %v1190 = vmul.f32 %v1176, %v1181
  %v1191 = vmul.f32 %v1177, %v1181
  %v1192 = vlaneseq
  %v1193 = vshrl.u32 %v1192, 7
  %v1194 = vsub.s32 4, %v1193
  %v1195 = vrot.slane %v31, %v1194
  %v1196 = vadd.f32 %v1182, %v1195
  %v1197 = vadd.f32 %v1183, %v1195
  %v1198 = vadd.f32 %v1184, %v1195
  %v1199 = vadd.f32 %v1185, %v1195
  %v1200 = vadd.f32 %v1186, %v1195
  %v1201 = vadd.f32 %v1187, %v1195
  %v1202 = vadd.f32 %v1188, %v1195
  %v1203 = vadd.f32 %v1189, %v1195
  %v1204 = vadd.f32 %v1190, %v1195
  %v1205 = vadd.f32 %v1191, %v1195
  %v1206 = vpack.c.bf16 %v1197, %v1196
  %v1207 = vpack.c.bf16 %v1199, %v1198
  %v1208 = vpack.c.bf16 %v1201, %v1200
  %v1209 = vpack.c.bf16 %v1203, %v1202
  %v1210 = vpack.c.bf16 %v1205, %v1204
  %v1211 = vld [vmem:[%s2 + $0x4] sm:$0xf]
  %v1212 = vld [vmem:[%s2 + $0xc] sm:$0xf]
  %v1213 = vld [vmem:[%s2 + $0x14] sm:$0xf]
  %v1214 = vld [vmem:[%s2 + $0x1c] sm:$0xf]
  %v1215 = vlaneseq
  %v1216 = vshrl.u32 %v1215, 7
  %v1217 = vsub.s32 1, %v1216
  %v1218 = vrot.slane %v31, %v1217
  %v1223 = vunpack.c.l.b16 %v1211
  %v1224 = vunpack.c.l.b16 %v1212
  %v1225 = vunpack.c.l.b16 %v1213
  %v1226 = vunpack.c.l.b16 %v1214
  %v1227 = vpack.c.b16 %v1224, %v1223
  %v1228 = vpack.c.b16 %v1226, %v1225
  %v1232 = vsel %vm71, %v1206, 0
  %v1235 = vsel %vm71, %v1207, 0
  %v1238 = vsel %vm71, %v1208, 0
  %v1241 = vsel %vm71, %v1209, 0
  %v1244 = vsel %vm71, %v1210, 0
  %1246 = vmatprep.subr.bf16.mxu0 0
  %1247 = vmatpush1.bf16.msra.mxu0 %v1227
  %1248 = vmatprep.subr.bf16.mxu0 0
  %1249 = vmatpush1.bf16.msra.mxu0 %v1228
  %1250 = vmatprep.subr.bf16.mxu0 0
  %1251 = vmatpush1.bf16.msra.mxu0 0
  %1252 = vmatprep.subr.bf16.mxu0 0
  %1253 = vmatpush1.bf16.msra.mxu0 0
  %1254 = vmatprep.subr.bf16.mxu0 0
  %1255 = vmatpush1.bf16.msra.mxu0 0
  %1256 = vmatprep.subr.bf16.mxu0 0
  %1257 = vmatpush1.bf16.msra.mxu0 0
  %1258 = vmatprep.subr.bf16.mxu0 0
  %1259 = vmatpush1.bf16.msra.mxu0 0
  %1260 = vmatprep.subr.bf16.mxu0 0
  %1261 = vmatpush1.bf16.msra.mxu0 0
  %1262 = vmatprep.subr.bf16.mxu0 0
  %1263 = vmatpush1.bf16.msra.mxu0 0
  %1264 = vmatprep.subr.bf16.mxu0 0
  %1265 = vmatpush1.bf16.msra.mxu0 0
  %1266 = vmatprep.subr.bf16.mxu0 0
  %1267 = vmatpush1.bf16.msra.mxu0 0
  %1268 = vmatprep.subr.bf16.mxu0 0
  %1269 = vmatpush1.bf16.msra.mxu0 0
  %1270 = vmatprep.subr.bf16.mxu0 0
  %1271 = vmatpush1.bf16.msra.mxu0 0
  %1272 = vmatprep.subr.bf16.mxu0 0
  %1273 = vmatpush1.bf16.msra.mxu0 0
  %1274 = vmatprep.subr.bf16.mxu0 0
  %1275 = vmatpush1.bf16.msra.mxu0 0
  %1276 = vmatprep.subr.bf16.mxu0 0
  %1277 = vmatpush1.bf16.msra.mxu0 0
  %1278 = vmatprep.mubr.bf16.mxu0 0
  %1279 = vmatmul.mubr.bf16.gmra.mrb[0].mxu0 %v1232
  %v1280 = vpop.f32.mrb[0].mxu0
  %v1281 = vadd.f32 %v1218, %v1280
  %v1282 = vpop.f32.mrb[0].mxu0
  %v1283 = vpop.f32.mrb[0].mxu0
  %v1284 = vadd.f32 %v1218, %v1283
  %v1285 = vpop.f32.mrb[0].mxu0
  %1286 = vmatprep.mubr.bf16.mxu0 0
  %1287 = vmatmul.mubr.bf16.gmra.mrb[0].mxu0 %v1235
  %v1288 = vpop.f32.mrb[0].mxu0
  %v1289 = vadd.f32 %v1218, %v1288
  %v1290 = vpop.f32.mrb[0].mxu0
  %v1291 = vpop.f32.mrb[0].mxu0
  %v1292 = vadd.f32 %v1218, %v1291
  %v1293 = vpop.f32.mrb[0].mxu0
  %1294 = vmatprep.mubr.bf16.mxu0 0
  %1295 = vmatmul.mubr.bf16.gmra.mrb[0].mxu0 %v1238
  %v1296 = vpop.f32.mrb[0].mxu0
  %v1297 = vadd.f32 %v1218, %v1296
  %v1298 = vpop.f32.mrb[0].mxu0
  %v1299 = vpop.f32.mrb[0].mxu0
  %v1300 = vadd.f32 %v1218, %v1299
  %v1301 = vpop.f32.mrb[0].mxu0
  %1302 = vmatprep.mubr.bf16.mxu0 0
  %1303 = vmatmul.mubr.bf16.gmra.mrb[0].mxu0 %v1241
  %v1304 = vpop.f32.mrb[0].mxu0
  %v1305 = vadd.f32 %v1218, %v1304
  %v1306 = vpop.f32.mrb[0].mxu0
  %v1307 = vpop.f32.mrb[0].mxu0
  %v1308 = vadd.f32 %v1218, %v1307
  %v1309 = vpop.f32.mrb[0].mxu0
  %1310 = vmatprep.mubr.bf16.mxu0 0
  %1311 = vmatmul.mubr.bf16.gmra.mrb[0].mxu0 %v1244
  %v1312 = vpop.f32.mrb[0].mxu0
  %v1313 = vadd.f32 %v1218, %v1312
  %v1314 = vpop.f32.mrb[0].mxu0
  %v1315 = vpop.f32.mrb[0].mxu0
  %v1316 = vadd.f32 %v1218, %v1315
  %v1317 = vpop.f32.mrb[0].mxu0
  %1318 = vdwg.mxu0
  %v1319 = vmax.f32 %v1281, 0.0
  %v1320 = vmax.f32 %v1284, 0.0
  %v1321 = vmax.f32 %v1289, 0.0
  %v1322 = vmax.f32 %v1292, 0.0
  %v1323 = vmax.f32 %v1297, 0.0
  %v1324 = vmax.f32 %v1300, 0.0
  %v1325 = vmax.f32 %v1305, 0.0
  %v1326 = vmax.f32 %v1308, 0.0
  %v1327 = vmax.f32 %v1313, 0.0
  %v1328 = vmax.f32 %v1316, 0.0
  %v1329 = vpack.c.bf16 %v1320, %v1319
  %v1330 = vpack.c.bf16 %v1322, %v1321
  %v1331 = vpack.c.bf16 %v1324, %v1323
  %v1332 = vpack.c.bf16 %v1326, %v1325
  %v1333 = vpack.c.bf16 %v1328, %v1327
  %v1334 = vlaneseq
  %v1335 = vshrl.u32 %v1334, 7
  %v1336 = vsub.s32 2, %v1335
  %v1337 = vrot.slane %v31, %v1336
  %1338 = vrot.lane.b32.xlu0 %v1227, 96
  %v1339 = vpop.permute.xlu0 %1338
  %1340 = vrot.lane.b32.xlu0 %v1228, 96
  %v1341 = vpop.permute.xlu0 %1340
  %v1345 = vsel %vm71, %v1329, 0
  %v1348 = vsel %vm71, %v1330, 0
  %v1351 = vsel %vm71, %v1331, 0
  %v1354 = vsel %vm71, %v1332, 0
  %v1357 = vsel %vm71, %v1333, 0
  %1359 = vmatprep.subr.bf16.mxu0 0
  %1360 = vmatpush1.bf16.msra.mxu0 %v1339
  %1361 = vmatprep.subr.bf16.mxu0 0
  %1362 = vmatpush1.bf16.msra.mxu0 %v1341
  %1363 = vmatprep.subr.bf16.mxu0 0
  %1364 = vmatpush1.bf16.msra.mxu0 0
  %1365 = vmatprep.subr.bf16.mxu0 0
  %1366 = vmatpush1.bf16.msra.mxu0 0
  %1367 = vmatprep.subr.bf16.mxu0 0
  %1368 = vmatpush1.bf16.msra.mxu0 0
  %1369 = vmatprep.subr.bf16.mxu0 0
  %1370 = vmatpush1.bf16.msra.mxu0 0
  %1371 = vmatprep.subr.bf16.mxu0 0
  %1372 = vmatpush1.bf16.msra.mxu0 0
  %1373 = vmatprep.subr.bf16.mxu0 0
  %1374 = vmatpush1.bf16.msra.mxu0 0
  %1375 = vmatprep.subr.bf16.mxu0 0
  %1376 = vmatpush1.bf16.msra.mxu0 0
  %1377 = vmatprep.subr.bf16.mxu0 0
  %1378 = vmatpush1.bf16.msra.mxu0 0
  %1379 = vmatprep.subr.bf16.mxu0 0
  %1380 = vmatpush1.bf16.msra.mxu0 0
  %1381 = vmatprep.subr.bf16.mxu0 0
  %1382 = vmatpush1.bf16.msra.mxu0 0
  %1383 = vmatprep.subr.bf16.mxu0 0
  %1384 = vmatpush1.bf16.msra.mxu0 0
  %1385 = vmatprep.subr.bf16.mxu0 0
  %1386 = vmatpush1.bf16.msra.mxu0 0
  %1387 = vmatprep.subr.bf16.mxu0 0
  %1388 = vmatpush1.bf16.msra.mxu0 0
  %1389 = vmatprep.subr.bf16.mxu0 0
  %1390 = vmatpush1.bf16.msra.mxu0 0
  %1391 = vmatprep.mubr.bf16.mxu0 0
  %1392 = vmatmul.mubr.bf16.gmra.mrb[0].mxu0 %v1345
  %v1393 = vpop.f32.mrb[0].mxu0
  %v1394 = vadd.f32 %v1337, %v1393
  %v1395 = vpop.f32.mrb[0].mxu0
  %v1396 = vpop.f32.mrb[0].mxu0
  %v1397 = vadd.f32 %v1337, %v1396
  %v1398 = vpop.f32.mrb[0].mxu0
  %1399 = vmatprep.mubr.bf16.mxu0 0
  %1400 = vmatmul.mubr.bf16.gmra.mrb[0].mxu0 %v1348
  %v1401 = vpop.f32.mrb[0].mxu0
  %v1402 = vadd.f32 %v1337, %v1401
  %v1403 = vpop.f32.mrb[0].mxu0
  %v1404 = vpop.f32.mrb[0].mxu0
  %v1405 = vadd.f32 %v1337, %v1404
  %v1406 = vpop.f32.mrb[0].mxu0
  %1407 = vmatprep.mubr.bf16.mxu0 0
  %1408 = vmatmul.mubr.bf16.gmra.mrb[0].mxu0 %v1351
  %v1409 = vpop.f32.mrb[0].mxu0
  %v1410 = vadd.f32 %v1337, %v1409
  %v1411 = vpop.f32.mrb[0].mxu0
  %v1412 = vpop.f32.mrb[0].mxu0
  %v1413 = vadd.f32 %v1337, %v1412
  %v1414 = vpop.f32.mrb[0].mxu0
  %1415 = vmatprep.mubr.bf16.mxu0 0
  %1416 = vmatmul.mubr.bf16.gmra.mrb[0].mxu0 %v1354
  %v1417 = vpop.f32.mrb[0].mxu0
  %v1418 = vadd.f32 %v1337, %v1417
  %v1419 = vpop.f32.mrb[0].mxu0
  %v1420 = vpop.f32.mrb[0].mxu0
  %v1421 = vadd.f32 %v1337, %v1420
  %v1422 = vpop.f32.mrb[0].mxu0
  %1423 = vmatprep.mubr.bf16.mxu0 0
  %1424 = vmatmul.mubr.bf16.gmra.mrb[0].mxu0 %v1357
  %v1425 = vpop.f32.mrb[0].mxu0
  %v1426 = vadd.f32 %v1337, %v1425
  %v1427 = vpop.f32.mrb[0].mxu0
  %v1428 = vpop.f32.mrb[0].mxu0
  %v1429 = vadd.f32 %v1337, %v1428
  %v1430 = vpop.f32.mrb[0].mxu0
  %1431 = vdwg.mxu0
  %v1432 = vadd.f32 %v1196, %v1394
  %v1433 = vadd.f32 %v1197, %v1397
  %v1434 = vadd.f32 %v1198, %v1402
  %v1435 = vadd.f32 %v1199, %v1405
  %v1436 = vadd.f32 %v1200, %v1410
  %v1437 = vadd.f32 %v1201, %v1413
  %v1438 = vadd.f32 %v1202, %v1418
  %v1439 = vadd.f32 %v1203, %v1421
  %v1440 = vadd.f32 %v1204, %v1426
  %v1441 = vadd.f32 %v1205, %v1429
  %v1442 = vsel %vm71, %v1432, 0.0
  %1443 = vadd.xlane.f32.xlu0 %v1442
  %v1444 = vpop.xlane.xlu0 %1443
  %v1445 = vsel %vm71, %v1433, 0.0
  %1446 = vadd.xlane.f32.xlu0 %v1445
  %v1447 = vpop.xlane.xlu0 %1446
  %v1448 = vsel %vm71, %v1434, 0.0
  %1449 = vadd.xlane.f32.xlu0 %v1448
  %v1450 = vpop.xlane.xlu0 %1449
  %v1451 = vsel %vm71, %v1435, 0.0
  %1452 = vadd.xlane.f32.xlu0 %v1451
  %v1453 = vpop.xlane.xlu0 %1452
  %v1454 = vsel %vm71, %v1436, 0.0
  %1455 = vadd.xlane.f32.xlu0 %v1454
  %v1456 = vpop.xlane.xlu0 %1455
  %v1457 = vsel %vm71, %v1437, 0.0
  %1458 = vadd.xlane.f32.xlu0 %v1457
  %v1459 = vpop.xlane.xlu0 %1458
  %v1460 = vsel %vm71, %v1438, 0.0
  %1461 = vadd.xlane.f32.xlu0 %v1460
  %v1462 = vpop.xlane.xlu0 %1461
  %v1463 = vsel %vm71, %v1439, 0.0
  %1464 = vadd.xlane.f32.xlu0 %v1463
  %v1465 = vpop.xlane.xlu0 %1464
  %v1466 = vsel %vm71, %v1440, 0.0
  %1467 = vadd.xlane.f32.xlu0 %v1466
  %v1468 = vpop.xlane.xlu0 %1467
  %v1469 = vsel %vm71, %v1441, 0.0
  %1470 = vadd.xlane.f32.xlu0 %v1469
  %v1471 = vpop.xlane.xlu0 %1470
  %v1472 = vmul.f32 %v1444, %v1077
  %v1473 = vmul.f32 %v1447, %v1077
  %v1474 = vmul.f32 %v1450, %v1077
  %v1475 = vmul.f32 %v1453, %v1077
  %v1476 = vmul.f32 %v1456, %v1077
  %v1477 = vmul.f32 %v1459, %v1077
  %v1478 = vmul.f32 %v1462, %v1077
  %v1479 = vmul.f32 %v1465, %v1077
  %v1480 = vmul.f32 %v1468, %v1077
  %v1481 = vmul.f32 %v1471, %v1077
  %v1482 = vsub.f32 %v1432, %v1472
  %v1483 = vsub.f32 %v1433, %v1473
  %v1484 = vsub.f32 %v1434, %v1474
  %v1485 = vsub.f32 %v1435, %v1475
  %v1486 = vsub.f32 %v1436, %v1476
  %v1487 = vsub.f32 %v1437, %v1477
  %v1488 = vsub.f32 %v1438, %v1478
  %v1489 = vsub.f32 %v1439, %v1479
  %v1490 = vsub.f32 %v1440, %v1480
  %v1491 = vsub.f32 %v1441, %v1481
  %v1492 = vmul.f32 %v1482, %v1482
  %v1493 = vmul.f32 %v1483, %v1483
  %v1494 = vmul.f32 %v1484, %v1484
  %v1495 = vmul.f32 %v1485, %v1485
  %v1496 = vmul.f32 %v1486, %v1486
  %v1497 = vmul.f32 %v1487, %v1487
  %v1498 = vmul.f32 %v1488, %v1488
  %v1499 = vmul.f32 %v1489, %v1489
  %v1500 = vmul.f32 %v1490, %v1490
  %v1501 = vmul.f32 %v1491, %v1491
  %v1502 = vsel %vm71, %v1492, 0.0
  %1503 = vadd.xlane.f32.xlu0 %v1502
  %v1504 = vpop.xlane.xlu0 %1503
  %v1505 = vsel %vm71, %v1493, 0.0
  %1506 = vadd.xlane.f32.xlu0 %v1505
  %v1507 = vpop.xlane.xlu0 %1506
  %v1508 = vsel %vm71, %v1494, 0.0
  %1509 = vadd.xlane.f32.xlu0 %v1508
  %v1510 = vpop.xlane.xlu0 %1509
  %v1511 = vsel %vm71, %v1495, 0.0
  %1512 = vadd.xlane.f32.xlu0 %v1511
  %v1513 = vpop.xlane.xlu0 %1512
  %v1514 = vsel %vm71, %v1496, 0.0
  %1515 = vadd.xlane.f32.xlu0 %v1514
  %v1516 = vpop.xlane.xlu0 %1515
  %v1517 = vsel %vm71, %v1497, 0.0
  %1518 = vadd.xlane.f32.xlu0 %v1517
  %v1519 = vpop.xlane.xlu0 %1518
  %v1520 = vsel %vm71, %v1498, 0.0
  %1521 = vadd.xlane.f32.xlu0 %v1520
  %v1522 = vpop.xlane.xlu0 %1521
  %v1523 = vsel %vm71, %v1499, 0.0
  %1524 = vadd.xlane.f32.xlu0 %v1523
  %v1525 = vpop.xlane.xlu0 %1524
  %v1526 = vsel %vm71, %v1500, 0.0
  %1527 = vadd.xlane.f32.xlu0 %v1526
  %v1528 = vpop.xlane.xlu0 %1527
  %v1529 = vsel %vm71, %v1501, 0.0
  %1530 = vadd.xlane.f32.xlu0 %v1529
  %v1531 = vpop.xlane.xlu0 %1530
  %v1532 = vmul.f32 %v1504, %v1077
  %v1533 = vmul.f32 %v1507, %v1077
  %v1534 = vmul.f32 %v1510, %v1077
  %v1535 = vmul.f32 %v1513, %v1077
  %v1536 = vmul.f32 %v1516, %v1077
  %v1537 = vmul.f32 %v1519, %v1077
  %v1538 = vmul.f32 %v1522, %v1077
  %v1539 = vmul.f32 %v1525, %v1077
  %v1540 = vmul.f32 %v1528, %v1077
  %v1541 = vmul.f32 %v1531, %v1077
  %v1542 = vadd.f32 %v1532, 1e-05
  %v1543 = vadd.f32 %v1533, 1e-05
  %v1544 = vadd.f32 %v1534, 1e-05
  %v1545 = vadd.f32 %v1535, 1e-05
  %v1546 = vadd.f32 %v1536, 1e-05
  %v1547 = vadd.f32 %v1537, 1e-05
  %v1548 = vadd.f32 %v1538, 1e-05
  %v1549 = vadd.f32 %v1539, 1e-05
  %v1550 = vadd.f32 %v1540, 1e-05
  %v1551 = vadd.f32 %v1541, 1e-05
  %v1552 = vrsqrt.pop %v1542
  %v1553 = vrsqrt.pop %v1543
  %v1554 = vrsqrt.pop %v1544
  %v1555 = vrsqrt.pop %v1545
  %v1556 = vrsqrt.pop %v1546
  %v1557 = vrsqrt.pop %v1547
  %v1558 = vrsqrt.pop %v1548
  %v1559 = vrsqrt.pop %v1549
  %v1560 = vrsqrt.pop %v1550
  %v1561 = vrsqrt.pop %v1551
  %v1562 = vmul.f32 %v1482, %v1552
  %v1563 = vmul.f32 %v1483, %v1553
  %v1564 = vmul.f32 %v1484, %v1554
  %v1565 = vmul.f32 %v1485, %v1555
  %v1566 = vmul.f32 %v1486, %v1556
  %v1567 = vmul.f32 %v1487, %v1557
  %v1568 = vmul.f32 %v1488, %v1558
  %v1569 = vmul.f32 %v1489, %v1559
  %v1570 = vmul.f32 %v1490, %v1560
  %v1571 = vmul.f32 %v1491, %v1561
  %v1572 = vlaneseq
  %v1573 = vshrl.u32 %v1572, 7
  %v1574 = vsub.s32 5, %v1573
  %v1575 = vrot.slane %v31, %v1574
  %v1576 = vmul.f32 %v1562, %v1575
  %v1577 = vmul.f32 %v1563, %v1575
  %v1578 = vmul.f32 %v1564, %v1575
  %v1579 = vmul.f32 %v1565, %v1575
  %v1580 = vmul.f32 %v1566, %v1575
  %v1581 = vmul.f32 %v1567, %v1575
  %v1582 = vmul.f32 %v1568, %v1575
  %v1583 = vmul.f32 %v1569, %v1575
  %v1584 = vmul.f32 %v1570, %v1575
  %v1585 = vmul.f32 %v1571, %v1575
  %v1586 = vlaneseq
  %v1587 = vshrl.u32 %v1586, 7
  %v1588 = vsub.s32 6, %v1587
  %v1589 = vrot.slane %v31, %v1588
  %v1590 = vadd.f32 %v1576, %v1589
  %v1591 = vadd.f32 %v1577, %v1589
  %v1592 = vadd.f32 %v1578, %v1589
  %v1593 = vadd.f32 %v1579, %v1589
  %v1594 = vadd.f32 %v1580, %v1589
  %v1595 = vadd.f32 %v1581, %v1589
  %v1596 = vadd.f32 %v1582, %v1589
  %v1597 = vadd.f32 %v1583, %v1589
  %v1598 = vadd.f32 %v1584, %v1589
  %v1599 = vadd.f32 %v1585, %v1589
  %v1600 = vsel %vm71, %v1590, 0.0
  %1601 = vadd.xlane.f32.xlu0 %v1600
  %v1602 = vpop.xlane.xlu0 %1601
  %v1603 = vsel %vm71, %v1591, 0.0
  %1604 = vadd.xlane.f32.xlu0 %v1603
  %v1605 = vpop.xlane.xlu0 %1604
  %v1606 = vsel %vm71, %v1592, 0.0
  %1607 = vadd.xlane.f32.xlu0 %v1606
  %v1608 = vpop.xlane.xlu0 %1607
  %v1609 = vsel %vm71, %v1593, 0.0
  %1610 = vadd.xlane.f32.xlu0 %v1609
  %v1611 = vpop.xlane.xlu0 %1610
  %v1612 = vsel %vm71, %v1594, 0.0
  %1613 = vadd.xlane.f32.xlu0 %v1612
  %v1614 = vpop.xlane.xlu0 %1613
  %v1615 = vsel %vm71, %v1595, 0.0
  %1616 = vadd.xlane.f32.xlu0 %v1615
  %v1617 = vpop.xlane.xlu0 %1616
  %v1618 = vsel %vm71, %v1596, 0.0
  %1619 = vadd.xlane.f32.xlu0 %v1618
  %v1620 = vpop.xlane.xlu0 %1619
  %v1621 = vsel %vm71, %v1597, 0.0
  %1622 = vadd.xlane.f32.xlu0 %v1621
  %v1623 = vpop.xlane.xlu0 %1622
  %v1624 = vsel %vm71, %v1598, 0.0
  %1625 = vadd.xlane.f32.xlu0 %v1624
  %v1626 = vpop.xlane.xlu0 %1625
  %v1627 = vsel %vm71, %v1599, 0.0
  %1628 = vadd.xlane.f32.xlu0 %v1627
  %v1629 = vpop.xlane.xlu0 %1628
  %v1630 = vmul.f32 %v1602, %v1077
  %v1631 = vmul.f32 %v1605, %v1077
  %v1632 = vmul.f32 %v1608, %v1077
  %v1633 = vmul.f32 %v1611, %v1077
  %v1634 = vmul.f32 %v1614, %v1077
  %v1635 = vmul.f32 %v1617, %v1077
  %v1636 = vmul.f32 %v1620, %v1077
  %v1637 = vmul.f32 %v1623, %v1077
  %v1638 = vmul.f32 %v1626, %v1077
  %v1639 = vmul.f32 %v1629, %v1077
  %v1640 = vsub.f32 %v1590, %v1630
  %v1641 = vsub.f32 %v1591, %v1631
  %v1642 = vsub.f32 %v1592, %v1632
  %v1643 = vsub.f32 %v1593, %v1633
  %v1644 = vsub.f32 %v1594, %v1634
  %v1645 = vsub.f32 %v1595, %v1635
  %v1646 = vsub.f32 %v1596, %v1636
  %v1647 = vsub.f32 %v1597, %v1637
  %v1648 = vsub.f32 %v1598, %v1638
  %v1649 = vsub.f32 %v1599, %v1639
  %v1650 = vmul.f32 %v1640, %v1640
  %v1651 = vmul.f32 %v1641, %v1641
  %v1652 = vmul.f32 %v1642, %v1642
  %v1653 = vmul.f32 %v1643, %v1643
  %v1654 = vmul.f32 %v1644, %v1644
  %v1655 = vmul.f32 %v1645, %v1645
  %v1656 = vmul.f32 %v1646, %v1646
  %v1657 = vmul.f32 %v1647, %v1647
  %v1658 = vmul.f32 %v1648, %v1648
  %v1659 = vmul.f32 %v1649, %v1649
  %v1660 = vsel %vm71, %v1650, 0.0
  %1661 = vadd.xlane.f32.xlu0 %v1660
  %v1662 = vpop.xlane.xlu0 %1661
  %v1663 = vsel %vm71, %v1651, 0.0
  %1664 = vadd.xlane.f32.xlu0 %v1663
  %v1665 = vpop.xlane.xlu0 %1664
  %v1666 = vsel %vm71, %v1652, 0.0
  %1667 = vadd.xlane.f32.xlu0 %v1666
  %v1668 = vpop.xlane.xlu0 %1667
  %v1669 = vsel %vm71, %v1653, 0.0
  %1670 = vadd.xlane.f32.xlu0 %v1669
  %v1671 = vpop.xlane.xlu0 %1670
  %v1672 = vsel %vm71, %v1654, 0.0
  %1673 = vadd.xlane.f32.xlu0 %v1672
  %v1674 = vpop.xlane.xlu0 %1673
  %v1675 = vsel %vm71, %v1655, 0.0
  %1676 = vadd.xlane.f32.xlu0 %v1675
  %v1677 = vpop.xlane.xlu0 %1676
  %v1678 = vsel %vm71, %v1656, 0.0
  %1679 = vadd.xlane.f32.xlu0 %v1678
  %v1680 = vpop.xlane.xlu0 %1679
  %v1681 = vsel %vm71, %v1657, 0.0
  %1682 = vadd.xlane.f32.xlu0 %v1681
  %v1683 = vpop.xlane.xlu0 %1682
  %v1684 = vsel %vm71, %v1658, 0.0
  %1685 = vadd.xlane.f32.xlu0 %v1684
  %v1686 = vpop.xlane.xlu0 %1685
  %v1687 = vsel %vm71, %v1659, 0.0
  %1688 = vadd.xlane.f32.xlu0 %v1687
  %v1689 = vpop.xlane.xlu0 %1688
  %v1690 = vmul.f32 %v1662, %v1077
  %v1691 = vmul.f32 %v1665, %v1077
  %v1692 = vmul.f32 %v1668, %v1077
  %v1693 = vmul.f32 %v1671, %v1077
  %v1694 = vmul.f32 %v1674, %v1077
  %v1695 = vmul.f32 %v1677, %v1077
  %v1696 = vmul.f32 %v1680, %v1077
  %v1697 = vmul.f32 %v1683, %v1077
  %v1698 = vmul.f32 %v1686, %v1077
  %v1699 = vmul.f32 %v1689, %v1077
  %v1700 = vadd.f32 %v1690, 1e-05
  %v1701 = vadd.f32 %v1691, 1e-05
  %v1702 = vadd.f32 %v1692, 1e-05
  %v1703 = vadd.f32 %v1693, 1e-05
  %v1704 = vadd.f32 %v1694, 1e-05
  %v1705 = vadd.f32 %v1695, 1e-05
  %v1706 = vadd.f32 %v1696, 1e-05
  %v1707 = vadd.f32 %v1697, 1e-05
  %v1708 = vadd.f32 %v1698, 1e-05
  %v1709 = vadd.f32 %v1699, 1e-05
  %v1710 = vrsqrt.pop %v1700
  %v1711 = vrsqrt.pop %v1701
  %v1712 = vrsqrt.pop %v1702
  %v1713 = vrsqrt.pop %v1703
  %v1714 = vrsqrt.pop %v1704
  %v1715 = vrsqrt.pop %v1705
  %v1716 = vrsqrt.pop %v1706
  %v1717 = vrsqrt.pop %v1707
  %v1718 = vrsqrt.pop %v1708
  %v1719 = vrsqrt.pop %v1709
  %v1720 = vmul.f32 %v1640, %v1710
  %v1721 = vmul.f32 %v1641, %v1711
  %v1722 = vmul.f32 %v1642, %v1712
  %v1723 = vmul.f32 %v1643, %v1713
  %v1724 = vmul.f32 %v1644, %v1714
  %v1725 = vmul.f32 %v1645, %v1715
  %v1726 = vmul.f32 %v1646, %v1716
  %v1727 = vmul.f32 %v1647, %v1717
  %v1728 = vmul.f32 %v1648, %v1718
  %v1729 = vmul.f32 %v1649, %v1719
  %v1730 = vlaneseq
  %v1731 = vshrl.u32 %v1730, 7
  %v1732 = vsub.s32 7, %v1731
  %v1733 = vrot.slane %v31, %v1732
  %v1734 = vmul.f32 %v1720, %v1733
  %v1735 = vmul.f32 %v1721, %v1733
  %v1736 = vmul.f32 %v1722, %v1733
  %v1737 = vmul.f32 %v1723, %v1733
  %v1738 = vmul.f32 %v1724, %v1733
  %v1739 = vmul.f32 %v1725, %v1733
  %v1740 = vmul.f32 %v1726, %v1733
  %v1741 = vmul.f32 %v1727, %v1733
  %v1742 = vmul.f32 %v1728, %v1733
  %v1743 = vmul.f32 %v1729, %v1733
  %v1744 = vlaneseq
  %v1745 = vshrl.u32 %v1744, 7
  %v1746 = vsub.s32 0, %v1745
  %v1747 = vrot.slane %v32, %v1746
  %v1748 = vadd.f32 %v1734, %v1747
  %v1749 = vadd.f32 %v1735, %v1747
  %v1750 = vadd.f32 %v1736, %v1747
  %v1751 = vadd.f32 %v1737, %v1747
  %v1752 = vadd.f32 %v1738, %v1747
  %v1753 = vadd.f32 %v1739, %v1747
  %v1754 = vadd.f32 %v1740, %v1747
  %v1755 = vadd.f32 %v1741, %v1747
  %v1756 = vadd.f32 %v1742, %v1747
  %v1757 = vadd.f32 %v1743, %v1747
  %1758 = vst.msk [vmem:[%s5] sm:$0xff] %vm71, %v1748
  %1759 = vst.msk [vmem:[%s5 + $0x8] sm:$0xff] %vm71, %v1749
  %1760 = vst.msk [vmem:[%s5 + $0x10] sm:$0xff] %vm71, %v1750
  %1761 = vst.msk [vmem:[%s5 + $0x18] sm:$0xff] %vm71, %v1751
  %1762 = vst.msk [vmem:[%s5 + $0x20] sm:$0xff] %vm71, %v1752
  %1763 = vst.msk [vmem:[%s5 + $0x28] sm:$0xff] %vm71, %v1753
  %1764 = vst.msk [vmem:[%s5 + $0x30] sm:$0xff] %vm71, %v1754
  %1765 = vst.msk [vmem:[%s5 + $0x38] sm:$0xff] %vm71, %v1755
  %1766 = vst.msk [vmem:[%s5 + $0x40] sm:$0xff] %vm71, %v1756
  %1767 = vst.msk [vmem:[%s5 + $0x48] sm:$0xff] %vm71, %v1757
  // Predicated region
  $region22: #{model_forward.13} parent=0 // pred_check
    _
  $region23: #{model_forward.13} parent=0 // pred_check_branch
    %1769 = sbr.rel (0) target = $region25
  $region24: #{model_forward.13} parent=0 // pred_region
    _
  $region25: #{model_forward.13} parent=0 // pred_fallthru
    _
  // Predicated region
  $region26: #{model_forward.13} parent=0 // pred_check
    _
  $region27: #{model_forward.13} parent=0 // pred_check_branch
    %1771 = sbr.rel (0) target = $region29
  $region28: #{model_forward.13} parent=0 // pred_region
    _
  $region29: #{model_forward.13} parent=0 // pred_fallthru
    _

// kernel: model_forward.15
$region0: #{model_forward.15}
  #allocation0 [shape = 'u32[]', space=smem, size = 0x4, offset = 0x4, fixed_abs, tag = 'smem constant byte address 0x4 - core index']
  #allocation1 [shape = 'u32[144,128]{1,0:T(1,128)}', space=vmem, size = 0x12000, scoped, tag = 'internal scratch']
  %s0 = inlined_call_operand.vmem [shape: f32[2,4,9,1], index: 0, kind: input, shape index: {}]
  %s1 = inlined_call_operand.vmem [shape: f32[2,4,1,9], index: 1, kind: input, shape index: {}]
  %s2 = inlined_call_operand.vmem [shape: f32[1,9], index: 2, kind: input, shape index: {}]
  %s3 = inlined_call_operand.vmem [shape: f32[2,9,9], index: 3, kind: output, shape index: {}]
  %s4 = sld [smem:[#allocation0]]
  $region22: #{model_forward.15} parent=0
    _
  %s6 = ssub.s32 1, %s4
  %s7 = scalar_select 0, %s6, %s4
  // Predicated region
  $region2: #{model_forward.15} parent=0 // pred_check
    _
  $region3: #{model_forward.15} parent=0 // pred_check_branch
    %9 = sbr.rel (0) target = $region5
  $region4: #{model_forward.15} parent=0 // pred_region
    _
  $region5: #{model_forward.15} parent=0 // pred_fallthru
    _
  // Predicated region
  $region6: #{model_forward.15} parent=0 // pred_check
    _
  $region7: #{model_forward.15} parent=0 // pred_check_branch
    %11 = sbr.rel (0) target = $region9
  $region8: #{model_forward.15} parent=0 // pred_region
    _
  $region9: #{model_forward.15} parent=0 // pred_fallthru
    _
  // Predicated region
  $region10: #{model_forward.15} parent=0 // pred_check
    _
  $region11: #{model_forward.15} parent=0 // pred_check_branch
    %13 = sbr.rel (0) target = $region13
  $region12: #{model_forward.15} parent=0 // pred_region
    _
  $region13: #{model_forward.15} parent=0 // pred_fallthru
    _
  %v14 = vld [vmem:[%s0] sm:$0xff]
  %v15 = vld [vmem:[%s0 + $0x8] sm:$0x1]
  %v16 = vld [vmem:[%s0 + $0x10] sm:$0xff]
  %v17 = vld [vmem:[%s0 + $0x18] sm:$0x1]
  %v18 = vld [vmem:[%s0 + $0x20] sm:$0xff]
  %v19 = vld [vmem:[%s0 + $0x28] sm:$0x1]
  %v20 = vld [vmem:[%s0 + $0x30] sm:$0xff]
  %v21 = vld [vmem:[%s0 + $0x38] sm:$0x1]
  %v22 = vld [vmem:[%s0 + $0x40] sm:$0xff]
  %v23 = vld [vmem:[%s0 + $0x48] sm:$0x1]
  %v24 = vld [vmem:[%s0 + $0x50] sm:$0xff]
  %v25 = vld [vmem:[%s0 + $0x58] sm:$0x1]
  %v26 = vld [vmem:[%s0 + $0x60] sm:$0xff]
  %v27 = vld [vmem:[%s0 + $0x68] sm:$0x1]
  %v28 = vld [vmem:[%s0 + $0x70] sm:$0xff]
  %v29 = vld [vmem:[%s0 + $0x78] sm:$0x1]
  %v30 = vld [vmem:[%s1] sm:$0x1]
  %v31 = vld [vmem:[%s1 + $0x1] sm:$0x1]
  %v32 = vld [vmem:[%s1 + $0x2] sm:$0x1]
  %v33 = vld [vmem:[%s1 + $0x3] sm:$0x1]
  %v34 = vld [vmem:[%s1 + $0x4] sm:$0x1]
  %v35 = vld [vmem:[%s1 + $0x5] sm:$0x1]
  %v36 = vld [vmem:[%s1 + $0x6] sm:$0x1]
  %v37 = vld [vmem:[%s1 + $0x7] sm:$0x1]
  %39 = vset.pattern.permute.xlu0 0
  %40 = vperm.xlu0 %39, %v14
  %v41 = vpop.permute.xlu0 %40
  %44 = vset.pattern.permute.xlu0 0
  %45 = vperm.xlu0 %44, %v15
  %v46 = vpop.permute.xlu0 %45
  %49 = vset.pattern.permute.xlu0 0
  %50 = vperm.xlu0 %49, %v16
  %v51 = vpop.permute.xlu0 %50
  %54 = vset.pattern.permute.xlu0 0
  %55 = vperm.xlu0 %54, %v17
  %v56 = vpop.permute.xlu0 %55
  %59 = vset.pattern.permute.xlu0 0
  %60 = vperm.xlu0 %59, %v18
  %v61 = vpop.permute.xlu0 %60
  %64 = vset.pattern.permute.xlu0 0
  %65 = vperm.xlu0 %64, %v19
  %v66 = vpop.permute.xlu0 %65
  %69 = vset.pattern.permute.xlu0 0
  %70 = vperm.xlu0 %69, %v20
  %v71 = vpop.permute.xlu0 %70
  %74 = vset.pattern.permute.xlu0 0
  %75 = vperm.xlu0 %74, %v21
  %v76 = vpop.permute.xlu0 %75
  %79 = vset.pattern.permute.xlu0 0
  %80 = vperm.xlu0 %79, %v22
  %v81 = vpop.permute.xlu0 %80
  %84 = vset.pattern.permute.xlu0 0
  %85 = vperm.xlu0 %84, %v23
  %v86 = vpop.permute.xlu0 %85
  %89 = vset.pattern.permute.xlu0 0
  %90 = vperm.xlu0 %89, %v24
  %v91 = vpop.permute.xlu0 %90
  %94 = vset.pattern.permute.xlu0 0
  %95 = vperm.xlu0 %94, %v25
  %v96 = vpop.permute.xlu0 %95
  %99 = vset.pattern.permute.xlu0 0
  %100 = vperm.xlu0 %99, %v26
  %v101 = vpop.permute.xlu0 %100
  %104 = vset.pattern.permute.xlu0 0
  %105 = vperm.xlu0 %104, %v27
  %v106 = vpop.permute.xlu0 %105
  %109 = vset.pattern.permute.xlu0 0
  %110 = vperm.xlu0 %109, %v28
  %v111 = vpop.permute.xlu0 %110
  %114 = vset.pattern.permute.xlu0 0
  %115 = vperm.xlu0 %114, %v29
  %v116 = vpop.permute.xlu0 %115
  %v126 = vlaneseq
  %v127 = vshrl.u32 %v126, 7
  %v128 = vsub.s32 0, %v127
  %v129 = vrot.slane %v30, %v128
  %v130 = vlaneseq
  %v131 = vshrl.u32 %v130, 7
  %v132 = vsub.s32 0, %v131
  %v133 = vrot.slane %v31, %v132
  %v134 = vlaneseq
  %v135 = vshrl.u32 %v134, 7
  %v136 = vsub.s32 0, %v135
  %v137 = vrot.slane %v32, %v136
  %v138 = vlaneseq
  %v139 = vshrl.u32 %v138, 7
  %v140 = vsub.s32 0, %v139
  %v141 = vrot.slane %v33, %v140
  %v142 = vlaneseq
  %v143 = vshrl.u32 %v142, 7
  %v144 = vsub.s32 0, %v143
  %v145 = vrot.slane %v34, %v144
  %v146 = vlaneseq
  %v147 = vshrl.u32 %v146, 7
  %v148 = vsub.s32 0, %v147
  %v149 = vrot.slane %v35, %v148
  %v150 = vlaneseq
  %v151 = vshrl.u32 %v150, 7
  %v152 = vsub.s32 0, %v151
  %v153 = vrot.slane %v36, %v152
  %v154 = vlaneseq
  %v155 = vshrl.u32 %v154, 7
  %v156 = vsub.s32 0, %v155
  %v157 = vrot.slane %v37, %v156
  %v166 = vsub.f32 %v41, %v129
  %v167 = vsub.f32 %v46, %v129
  %v168 = vsub.f32 %v51, %v133
  %v169 = vsub.f32 %v56, %v133
  %v170 = vsub.f32 %v61, %v137
  %v171 = vsub.f32 %v66, %v137
  %v172 = vsub.f32 %v71, %v141
  %v173 = vsub.f32 %v76, %v141
  %v174 = vsub.f32 %v81, %v145
  %v175 = vsub.f32 %v86, %v145
  %v176 = vsub.f32 %v91, %v149
  %v177 = vsub.f32 %v96, %v149
  %v178 = vsub.f32 %v101, %v153
  %v179 = vsub.f32 %v106, %v153
  %v180 = vsub.f32 %v111, %v157
  %v181 = vsub.f32 %v116, %v157
  %v182 = vmul.f32 %v166, %v166
  %v183 = vmul.f32 %v167, %v167
  %v184 = vmul.f32 %v168, %v168
  %v185 = vmul.f32 %v169, %v169
  %v186 = vmul.f32 %v170, %v170
  %v187 = vmul.f32 %v171, %v171
  %v188 = vmul.f32 %v172, %v172
  %v189 = vmul.f32 %v173, %v173
  %v190 = vmul.f32 %v174, %v174
  %v191 = vmul.f32 %v175, %v175
  %v192 = vmul.f32 %v176, %v176
  %v193 = vmul.f32 %v177, %v177
  %v194 = vmul.f32 %v178, %v178
  %v195 = vmul.f32 %v179, %v179
  %v196 = vmul.f32 %v180, %v180
  %v197 = vmul.f32 %v181, %v181
  %vm198 = vcmask 72704
  %v199 = vsel %vm198, %v182, 0.0
  %v200 = vsel %vm198, %v184, 0.0
  %v201 = vadd.f32 %v199, %v200
  %v202 = vsel %vm198, %v186, 0.0
  %v203 = vadd.f32 %v201, %v202
  %v204 = vsel %vm198, %v188, 0.0
  %v205 = vadd.f32 %v203, %v204
  %vm206 = vcmask 65536
  %v207 = vsel %vm206, %v183, 0.0
  %v208 = vsel %vm206, %v185, 0.0
  %v209 = vadd.f32 %v207, %v208
  %v210 = vsel %vm206, %v187, 0.0
  %v211 = vadd.f32 %v209, %v210
  %v212 = vsel %vm206, %v189, 0.0
  %v213 = vadd.f32 %v211, %v212
  %v214 = vsel %vm198, %v190, 0.0
  %v215 = vsel %vm198, %v192, 0.0
  %v216 = vadd.f32 %v214, %v215
  %v217 = vsel %vm198, %v194, 0.0
  %v218 = vadd.f32 %v216, %v217
  %v219 = vsel %vm198, %v196, 0.0
  %v220 = vadd.f32 %v218, %v219
  %v221 = vsel %vm206, %v191, 0.0
  %v222 = vsel %vm206, %v193, 0.0
  %v223 = vadd.f32 %v221, %v222
  %v224 = vsel %vm206, %v195, 0.0
  %v225 = vadd.f32 %v223, %v224
  %v226 = vsel %vm206, %v197, 0.0
  %v227 = vadd.f32 %v225, %v226
  %v228 = vld [vmem:[%s2] sm:$0x1]
  %v229 = vmul.f32 %v228, %v228
  %v231 = vlaneseq
  %v232 = vshrl.u32 %v231, 7
  %v233 = vsub.s32 0, %v232
  %v234 = vrot.slane %v229, %v233
  %v236 = vmul.f32 %v205, %v234
  %v237 = vmul.f32 %v213, %v234
  %v238 = vmul.f32 %v220, %v234
  %v239 = vmul.f32 %v227, %v234
  %v240 = vadd.f32 %v236, 1e-10
  %v241 = vadd.f32 %v237, 1e-10
  %v242 = vadd.f32 %v238, 1e-10
  %v243 = vadd.f32 %v239, 1e-10
  %v244 = vrcp.pop %v240
  %v245 = vmul.f32 1.0, %v244
  %v246 = vrcp.pop %v241
  %v247 = vmul.f32 1.0, %v246
  %v248 = vrcp.pop %v242
  %v249 = vmul.f32 1.0, %v248
  %v250 = vrcp.pop %v243
  %v251 = vmul.f32 1.0, %v250
  %v252 = vlaneseq
  %v253 = vshrl.u32 %v252, 7
  %v254 = vadd.s32 %v253, 8
  %v255 = vlaneseq
  %v256 = vand.u32 %v255, 127
  %vm257 = vcmp.eq.s32.totalorder %v253, %v256
  %vm258 = vcmp.eq.s32.totalorder %v254, %v256
  %v259 = vsel %vm257, 1, 0
  %v260 = vsel %vm258, 1, 0
  %v261 = vcvt.s32.f32 %v259
  %v262 = vcvt.s32.f32 %v260
  %v263 = vsub.f32 1.0, %v261
  %v264 = vsub.f32 1.0, %v262
  %v265 = vmul.f32 %v245, %v263
  %v266 = vmul.f32 %v247, %v264
  %v267 = vmul.f32 %v249, %v263
  %v268 = vmul.f32 %v251, %v264
  %v269 = vsel %vm198, %v265, -inf
  %270 = vmax.xlane.f32.xlu0 %v269
  %v271 = vpop.xlane.xlu0 %270
  %v272 = vsel %vm206, %v266, -inf
  %273 = vmax.xlane.f32.xlu0 %v272
  %v274 = vpop.xlane.xlu0 %273
  %v275 = vsel %vm198, %v267, -inf
  %276 = vmax.xlane.f32.xlu0 %v275
  %v277 = vpop.xlane.xlu0 %276
  %v278 = vsel %vm206, %v268, -inf
  %279 = vmax.xlane.f32.xlu0 %v278
  %v280 = vpop.xlane.xlu0 %279
  %v281 = vrcp.pop %v271
  %v282 = vmul.f32 %v265, %v281
  %v283 = vrcp.pop %v274
  %v284 = vmul.f32 %v266, %v283
  %v285 = vrcp.pop %v277
  %v286 = vmul.f32 %v267, %v285
  %v287 = vrcp.pop %v280
  %v288 = vmul.f32 %v268, %v287
  %v289 = vmul.f32 %v282, %v263
  %v290 = vmul.f32 %v284, %v264
  %v291 = vmul.f32 %v286, %v263
  %v292 = vmul.f32 %v288, %v264
  %v293 = vadd.f32 %v289, %v261
  %v294 = vadd.f32 %v290, %v262
  %v295 = vadd.f32 %v291, %v261
  %v296 = vadd.f32 %v292, %v262
  %v297 = vmul.f32 %v293, 0.99
  %v298 = vmul.f32 %v294, 0.99
  %v299 = vmul.f32 %v295, 0.99
  %v300 = vmul.f32 %v296, 0.99
  %301 = vst.msk [vmem:[%s3] sm:$0xff] %vm198, %v297
  %302 = vst.msk [vmem:[%s3 + $0x8] sm:$0x1] %vm206, %v298
  %303 = vst.msk [vmem:[%s3 + $0x10] sm:$0xff] %vm198, %v299
  %304 = vst.msk [vmem:[%s3 + $0x18] sm:$0x1] %vm206, %v300
  // Predicated region
  $region14: #{model_forward.15} parent=0 // pred_check
    _
  $region15: #{model_forward.15} parent=0 // pred_check_branch
    %306 = sbr.rel (0) target = $region17
  $region16: #{model_forward.15} parent=0 // pred_region
    _
  $region17: #{model_forward.15} parent=0 // pred_fallthru
    _
  // Predicated region
  $region18: #{model_forward.15} parent=0 // pred_check
    _
  $region19: #{model_forward.15} parent=0 // pred_check_branch
    %308 = sbr.rel (0) target = $region21
  $region20: #{model_forward.15} parent=0 // pred_region
    _
  $region21: #{model_forward.15} parent=0 // pred_fallthru
    _

// kernel: model_forward.17
$region0: #{model_forward.17}
  #allocation0 [shape = 'u32[]', space=smem, size = 0x4, offset = 0x4, fixed_abs, tag = 'smem constant byte address 0x4 - core index']
  #allocation1 [shape = 'u32[144,128]{1,0:T(1,128)}', space=vmem, size = 0x12000, scoped, tag = 'internal scratch']
  %s0 = inlined_call_operand.vmem [shape: f32[8,64], index: 0, kind: input, shape index: {}]
  %s1 = inlined_call_operand.vmem [shape: f32[64,32], index: 1, kind: input, shape index: {}]
  %s2 = inlined_call_operand.vmem [shape: f32[32,32], index: 2, kind: input, shape index: {}]
  %s3 = inlined_call_operand.vmem [shape: f32[32,32], index: 3, kind: input, shape index: {}]
  %s4 = inlined_call_operand.vmem [shape: f32[32,16], index: 4, kind: input, shape index: {}]
  %s5 = inlined_call_operand.vmem [shape: f32[5,32], index: 5, kind: input, shape index: {}]
  %s6 = inlined_call_operand.vmem [shape: f32[1,16], index: 6, kind: input, shape index: {}]
  %s7 = inlined_call_operand.vmem [shape: f32[8,16], index: 7, kind: output, shape index: {}]
  %s8 = sld [smem:[#allocation0]]
  $region38: #{model_forward.17} parent=0
    _
  %s10 = ssub.s32 1, %s8
  %s11 = scalar_select 0, %s10, %s8
  // Predicated region
  $region2: #{model_forward.17} parent=0 // pred_check
    _
  $region3: #{model_forward.17} parent=0 // pred_check_branch
    %13 = sbr.rel (0) target = $region5
  $region4: #{model_forward.17} parent=0 // pred_region
    _
  $region5: #{model_forward.17} parent=0 // pred_fallthru
    _
  // Predicated region
  $region6: #{model_forward.17} parent=0 // pred_check
    _
  $region7: #{model_forward.17} parent=0 // pred_check_branch
    %15 = sbr.rel (0) target = $region9
  $region8: #{model_forward.17} parent=0 // pred_region
    _
  $region9: #{model_forward.17} parent=0 // pred_fallthru
    _
  // Predicated region
  $region10: #{model_forward.17} parent=0 // pred_check
    _
  $region11: #{model_forward.17} parent=0 // pred_check_branch
    %17 = sbr.rel (0) target = $region13
  $region12: #{model_forward.17} parent=0 // pred_region
    _
  $region13: #{model_forward.17} parent=0 // pred_fallthru
    _
  // Predicated region
  $region14: #{model_forward.17} parent=0 // pred_check
    _
  $region15: #{model_forward.17} parent=0 // pred_check_branch
    %19 = sbr.rel (0) target = $region17
  $region16: #{model_forward.17} parent=0 // pred_region
    _
  $region17: #{model_forward.17} parent=0 // pred_fallthru
    _
  // Predicated region
  $region18: #{model_forward.17} parent=0 // pred_check
    _
  $region19: #{model_forward.17} parent=0 // pred_check_branch
    %21 = sbr.rel (0) target = $region21
  $region20: #{model_forward.17} parent=0 // pred_region
    _
  $region21: #{model_forward.17} parent=0 // pred_fallthru
    _
  // Predicated region
  $region22: #{model_forward.17} parent=0 // pred_check
    _
  $region23: #{model_forward.17} parent=0 // pred_check_branch
    %23 = sbr.rel (0) target = $region25
  $region24: #{model_forward.17} parent=0 // pred_region
    _
  $region25: #{model_forward.17} parent=0 // pred_fallthru
    _
  // Predicated region
  $region26: #{model_forward.17} parent=0 // pred_check
    _
  $region27: #{model_forward.17} parent=0 // pred_check_branch
    %25 = sbr.rel (0) target = $region29
  $region28: #{model_forward.17} parent=0 // pred_region
    _
  $region29: #{model_forward.17} parent=0 // pred_fallthru
    _
  %v26 = vld [vmem:[%s5] sm:$0x1f]
  %v27 = vld [vmem:[%s0] sm:$0xff]
  %v28 = vld [vmem:[%s1] sm:$0xff]
  %v29 = vld [vmem:[%s1 + $0x8] sm:$0xff]
  %v30 = vld [vmem:[%s1 + $0x10] sm:$0xff]
  %v31 = vld [vmem:[%s1 + $0x18] sm:$0xff]
  %v32 = vld [vmem:[%s1 + $0x20] sm:$0xff]
  %v33 = vld [vmem:[%s1 + $0x28] sm:$0xff]
  %v34 = vld [vmem:[%s1 + $0x30] sm:$0xff]
  %v35 = vld [vmem:[%s1 + $0x38] sm:$0xff]
  %v36 = vlaneseq
  %v37 = vshrl.u32 %v36, 7
  %v38 = vsub.s32 0, %v37
  %v39 = vrot.slane %v26, %v38
  %vm40 = vcmask 523264
  %v42 = vsel %vm40, %v27, 0
  %44 = vmatprep.subr.mxu0 0.0
  %45 = vmatpush1.msra.mxu0 %v28
  %46 = vmatprep.subr.mxu0 0.0
  %47 = vmatpush1.msra.mxu0 %v29
  %48 = vmatprep.subr.mxu0 0.0
  %49 = vmatpush1.msra.mxu0 %v30
  %50 = vmatprep.subr.mxu0 0.0
  %51 = vmatpush1.msra.mxu0 %v31
  %52 = vmatprep.subr.mxu0 0.0
  %53 = vmatpush1.msra.mxu0 %v32
  %54 = vmatprep.subr.mxu0 0.0
  %55 = vmatpush1.msra.mxu0 %v33
  %56 = vmatprep.subr.mxu0 0.0
  %57 = vmatpush1.msra.mxu0 %v34
  %58 = vmatprep.subr.mxu0 0.0
  %59 = vmatpush1.msra.mxu0 %v35
  %60 = vmatprep.subr.mxu0 0.0
  %61 = vmatpush1.msra.mxu0 0.0
  %62 = vmatprep.subr.mxu0 0.0
  %63 = vmatpush1.msra.mxu0 0.0
  %64 = vmatprep.subr.mxu0 0.0
  %65 = vmatpush1.msra.mxu0 0.0
  %66 = vmatprep.subr.mxu0 0.0
  %67 = vmatpush1.msra.mxu0 0.0
  %68 = vmatprep.subr.mxu0 0.0
  %69 = vmatpush1.msra.mxu0 0.0
  %70 = vmatprep.subr.mxu0 0.0
  %71 = vmatpush1.msra.mxu0 0.0
  %72 = vmatprep.subr.mxu0 0.0
  %73 = vmatpush1.msra.mxu0 0.0
  %74 = vmatprep.subr.mxu0 0.0
  %75 = vmatpush1.msra.mxu0 0.0
  %76 = vmatprep.subr.mxu0 0.0
  %77 = vmatpush1.msra.mxu0 0.0
  %78 = vmatprep.subr.mxu0 0.0
  %79 = vmatpush1.msra.mxu0 0.0
  %80 = vmatprep.subr.mxu0 0.0
  %81 = vmatpush1.msra.mxu0 0.0
  %82 = vmatprep.subr.mxu0 0.0
  %83 = vmatpush1.msra.mxu0 0.0
  %84 = vmatprep.subr.mxu0 0.0
  %85 = vmatpush1.msra.mxu0 0.0
  %86 = vmatprep.subr.mxu0 0.0
  %87 = vmatpush1.msra.mxu0 0.0
  %88 = vmatprep.subr.mxu0 0.0
  %89 = vmatpush1.msra.mxu0 0.0
  %90 = vmatprep.subr.mxu0 0.0
  %91 = vmatpush1.msra.mxu0 0.0
  %92 = vmatprep.subr.mxu0 0.0
  %93 = vmatpush1.msra.mxu0 0.0
  %94 = vmatprep.subr.mxu0 0.0
  %95 = vmatpush1.msra.mxu0 0.0
  %96 = vmatprep.subr.mxu0 0.0
  %97 = vmatpush1.msra.mxu0 0.0
  %98 = vmatprep.subr.mxu0 0.0
  %99 = vmatpush1.msra.mxu0 0.0
  %100 = vmatprep.subr.mxu0 0.0
  %101 = vmatpush1.msra.mxu0 0.0
  %102 = vmatprep.subr.mxu0 0.0
  %103 = vmatpush1.msra.mxu0 0.0
  %104 = vmatprep.subr.mxu0 0.0
  %105 = vmatpush1.msra.mxu0 0.0
  %106 = vmatprep.subr.mxu0 0.0
  %107 = vmatpush1.msra.mxu0 0.0
  %108 = vmatprep.mubr.f32.mxu0 0.0
  %109 = vmatmul.mubr.f32.gmra.mrb[0].mxu0 %v42
  %v110 = vpop.f32.mrb[0].mxu0
  %v111 = vadd.f32 %v39, %v110
  %v112 = vpop.f32.mrb[0].mxu0
  %113 = vdwg.mxu0
  %vm114 = vcmp.ge.f32.partialorder %v111, 0.0
  %v115 = vmul.f32 %v111, 0.01
  %v116 = vsel %vm114, %v111, %v115
  %vm117 = vcmask 261120
  %v118 = vsel %vm117, %v116, 0.0
  %119 = vadd.xlane.f32.xlu0 %v118
  %v120 = vpop.xlane.xlu0 %119
  %v121 = vrcp.pop 32.0
  %v122 = vmul.f32 %v120, %v121
  %v123 = vsub.f32 %v116, %v122
  %v124 = vmul.f32 %v123, %v123
  %v125 = vsel %vm117, %v124, 0.0
  %126 = vadd.xlane.f32.xlu0 %v125
  %v127 = vpop.xlane.xlu0 %126
  %v128 = vmul.f32 %v127, %v121
  %v129 = vadd.f32 %v128, 1e-05
  %v130 = vrsqrt.pop %v129
  %v131 = vmul.f32 %v123, %v130
  %v132 = vlaneseq
  %v133 = vshrl.u32 %v132, 7
  %v134 = vsub.s32 1, %v133
  %v135 = vrot.slane %v26, %v134
  %v136 = vmul.f32 %v131, %v135
  %v137 = vlaneseq
  %v138 = vshrl.u32 %v137, 7
  %v139 = vsub.s32 2, %v138
  %v140 = vrot.slane %v26, %v139
  %v141 = vadd.f32 %v136, %v140
  %v142 = vld [vmem:[%s2] sm:$0xff]
  %v143 = vld [vmem:[%s2 + $0x8] sm:$0xff]
  %v144 = vld [vmem:[%s2 + $0x10] sm:$0xff]
  %v145 = vld [vmem:[%s2 + $0x18] sm:$0xff]
  %v146 = vlaneseq
  %v147 = vshrl.u32 %v146, 7
  %v148 = vsub.s32 3, %v147
  %v149 = vrot.slane %v26, %v148
  %v151 = vsel %vm117, %v141, 0
  %153 = vmatprep.subr.mxu0 0.0
  %154 = vmatpush1.msra.mxu0 %v142
  %155 = vmatprep.subr.mxu0 0.0
  %156 = vmatpush1.msra.mxu0 %v143
  %157 = vmatprep.subr.mxu0 0.0
  %158 = vmatpush1.msra.mxu0 %v144
  %159 = vmatprep.subr.mxu0 0.0
  %160 = vmatpush1.msra.mxu0 %v145
  %161 = vmatprep.subr.mxu0 0.0
  %162 = vmatpush1.msra.mxu0 0.0
  %163 = vmatprep.subr.mxu0 0.0
  %164 = vmatpush1.msra.mxu0 0.0
  %165 = vmatprep.subr.mxu0 0.0
  %166 = vmatpush1.msra.mxu0 0.0
  %167 = vmatprep.subr.mxu0 0.0
  %168 = vmatpush1.msra.mxu0 0.0
  %169 = vmatprep.subr.mxu0 0.0
  %170 = vmatpush1.msra.mxu0 0.0
  %171 = vmatprep.subr.mxu0 0.0
  %172 = vmatpush1.msra.mxu0 0.0
  %173 = vmatprep.subr.mxu0 0.0
  %174 = vmatpush1.msra.mxu0 0.0
  %175 = vmatprep.subr.mxu0 0.0
  %176 = vmatpush1.msra.mxu0 0.0
  %177 = vmatprep.subr.mxu0 0.0
  %178 = vmatpush1.msra.mxu0 0.0
  %179 = vmatprep.subr.mxu0 0.0
  %180 = vmatpush1.msra.mxu0 0.0
  %181 = vmatprep.subr.mxu0 0.0
  %182 = vmatpush1.msra.mxu0 0.0
  %183 = vmatprep.subr.mxu0 0.0
  %184 = vmatpush1.msra.mxu0 0.0
  %185 = vmatprep.subr.mxu0 0.0
  %186 = vmatpush1.msra.mxu0 0.0
  %187 = vmatprep.subr.mxu0 0.0
  %188 = vmatpush1.msra.mxu0 0.0
  %189 = vmatprep.subr.mxu0 0.0
  %190 = vmatpush1.msra.mxu0 0.0
  %191 = vmatprep.subr.mxu0 0.0
  %192 = vmatpush1.msra.mxu0 0.0
  %193 = vmatprep.subr.mxu0 0.0
  %194 = vmatpush1.msra.mxu0 0.0
  %195 = vmatprep.subr.mxu0 0.0
  %196 = vmatpush1.msra.mxu0 0.0
  %197 = vmatprep.subr.mxu0 0.0
  %198 = vmatpush1.msra.mxu0 0.0
  %199 = vmatprep.subr.mxu0 0.0
  %200 = vmatpush1.msra.mxu0 0.0
  %201 = vmatprep.subr.mxu0 0.0
  %202 = vmatpush1.msra.mxu0 0.0
  %203 = vmatprep.subr.mxu0 0.0
  %204 = vmatpush1.msra.mxu0 0.0
  %205 = vmatprep.subr.mxu0 0.0
  %206 = vmatpush1.msra.mxu0 0.0
  %207 = vmatprep.subr.mxu0 0.0
  %208 = vmatpush1.msra.mxu0 0.0
  %209 = vmatprep.subr.mxu0 0.0
  %210 = vmatpush1.msra.mxu0 0.0
  %211 = vmatprep.subr.mxu0 0.0
  %212 = vmatpush1.msra.mxu0 0.0
  %213 = vmatprep.subr.mxu0 0.0
  %214 = vmatpush1.msra.mxu0 0.0
  %215 = vmatprep.subr.mxu0 0.0
  %216 = vmatpush1.msra.mxu0 0.0
  %217 = vmatprep.mubr.f32.mxu0 0.0
  %218 = vmatmul.mubr.f32.gmra.mrb[0].mxu0 %v151
  %v219 = vpop.f32.mrb[0].mxu0
  %v220 = vadd.f32 %v149, %v219
  %v221 = vpop.f32.mrb[0].mxu0
  %222 = vdwg.mxu0
  %vm223 = vcmp.ge.f32.partialorder %v220, 0.0
  %v224 = vmul.f32 %v220, 0.01
  %v225 = vsel %vm223, %v220, %v224
  %v226 = vld [vmem:[%s3] sm:$0xff]
  %v227 = vld [vmem:[%s3 + $0x8] sm:$0xff]
  %v228 = vld [vmem:[%s3 + $0x10] sm:$0xff]
  %v229 = vld [vmem:[%s3 + $0x18] sm:$0xff]
  %v230 = vlaneseq
  %v231 = vshrl.u32 %v230, 7
  %v232 = vsub.s32 4, %v231
  %v233 = vrot.slane %v26, %v232
  %v235 = vsel %vm117, %v225, 0
  %237 = vmatprep.subr.mxu0 0.0
  %238 = vmatpush1.msra.mxu0 %v226
  %239 = vmatprep.subr.mxu0 0.0
  %240 = vmatpush1.msra.mxu0 %v227
  %241 = vmatprep.subr.mxu0 0.0
  %242 = vmatpush1.msra.mxu0 %v228
  %243 = vmatprep.subr.mxu0 0.0
  %244 = vmatpush1.msra.mxu0 %v229
  %245 = vmatprep.subr.mxu0 0.0
  %246 = vmatpush1.msra.mxu0 0.0
  %247 = vmatprep.subr.mxu0 0.0
  %248 = vmatpush1.msra.mxu0 0.0
  %249 = vmatprep.subr.mxu0 0.0
  %250 = vmatpush1.msra.mxu0 0.0
  %251 = vmatprep.subr.mxu0 0.0
  %252 = vmatpush1.msra.mxu0 0.0
  %253 = vmatprep.subr.mxu0 0.0
  %254 = vmatpush1.msra.mxu0 0.0
  %255 = vmatprep.subr.mxu0 0.0
  %256 = vmatpush1.msra.mxu0 0.0
  %257 = vmatprep.subr.mxu0 0.0
  %258 = vmatpush1.msra.mxu0 0.0
  %259 = vmatprep.subr.mxu0 0.0
  %260 = vmatpush1.msra.mxu0 0.0
  %261 = vmatprep.subr.mxu0 0.0
  %262 = vmatpush1.msra.mxu0 0.0
  %263 = vmatprep.subr.mxu0 0.0
  %264 = vmatpush1.msra.mxu0 0.0
  %265 = vmatprep.subr.mxu0 0.0
  %266 = vmatpush1.msra.mxu0 0.0
  %267 = vmatprep.subr.mxu0 0.0
  %268 = vmatpush1.msra.mxu0 0.0
  %269 = vmatprep.subr.mxu0 0.0
  %270 = vmatpush1.msra.mxu0 0.0
  %271 = vmatprep.subr.mxu0 0.0
  %272 = vmatpush1.msra.mxu0 0.0
  %273 = vmatprep.subr.mxu0 0.0
  %274 = vmatpush1.msra.mxu0 0.0
  %275 = vmatprep.subr.mxu0 0.0
  %276 = vmatpush1.msra.mxu0 0.0
  %277 = vmatprep.subr.mxu0 0.0
  %278 = vmatpush1.msra.mxu0 0.0
  %279 = vmatprep.subr.mxu0 0.0
  %280 = vmatpush1.msra.mxu0 0.0
  %281 = vmatprep.subr.mxu0 0.0
  %282 = vmatpush1.msra.mxu0 0.0
  %283 = vmatprep.subr.mxu0 0.0
  %284 = vmatpush1.msra.mxu0 0.0
  %285 = vmatprep.subr.mxu0 0.0
  %286 = vmatpush1.msra.mxu0 0.0
  %287 = vmatprep.subr.mxu0 0.0
  %288 = vmatpush1.msra.mxu0 0.0
  %289 = vmatprep.subr.mxu0 0.0
  %290 = vmatpush1.msra.mxu0 0.0
  %291 = vmatprep.subr.mxu0 0.0
  %292 = vmatpush1.msra.mxu0 0.0
  %293 = vmatprep.subr.mxu0 0.0
  %294 = vmatpush1.msra.mxu0 0.0
  %295 = vmatprep.subr.mxu0 0.0
  %296 = vmatpush1.msra.mxu0 0.0
  %297 = vmatprep.subr.mxu0 0.0
  %298 = vmatpush1.msra.mxu0 0.0
  %299 = vmatprep.subr.mxu0 0.0
  %300 = vmatpush1.msra.mxu0 0.0
  %301 = vmatprep.mubr.f32.mxu0 0.0
  %302 = vmatmul.mubr.f32.gmra.mrb[0].mxu0 %v235
  %v303 = vpop.f32.mrb[0].mxu0
  %v304 = vadd.f32 %v233, %v303
  %v305 = vpop.f32.mrb[0].mxu0
  %306 = vdwg.mxu0
  %v307 = vmax.f32 %v304, 0.0
  %v308 = vld [vmem:[%s4] sm:$0xff]
  %v309 = vld [vmem:[%s4 + $0x8] sm:$0xff]
  %v310 = vld [vmem:[%s4 + $0x10] sm:$0xff]
  %v311 = vld [vmem:[%s4 + $0x18] sm:$0xff]
  %v312 = vld [vmem:[%s6] sm:$0x1]
  %v314 = vlaneseq
  %v315 = vshrl.u32 %v314, 7
  %v316 = vsub.s32 0, %v315
  %v317 = vrot.slane %v312, %v316
  %v320 = vsel %vm117, %v307, 0
  %322 = vmatprep.subr.mxu0 0.0
  %323 = vmatpush1.msra.mxu0 %v308
  %324 = vmatprep.subr.mxu0 0.0
  %325 = vmatpush1.msra.mxu0 %v309
  %326 = vmatprep.subr.mxu0 0.0
  %327 = vmatpush1.msra.mxu0 %v310
  %328 = vmatprep.subr.mxu0 0.0
  %329 = vmatpush1.msra.mxu0 %v311
  %330 = vmatprep.subr.mxu0 0.0
  %331 = vmatpush1.msra.mxu0 0.0
  %332 = vmatprep.subr.mxu0 0.0
  %333 = vmatpush1.msra.mxu0 0.0
  %334 = vmatprep.subr.mxu0 0.0
  %335 = vmatpush1.msra.mxu0 0.0
  %336 = vmatprep.subr.mxu0 0.0
  %337 = vmatpush1.msra.mxu0 0.0
  %338 = vmatprep.subr.mxu0 0.0
  %339 = vmatpush1.msra.mxu0 0.0
  %340 = vmatprep.subr.mxu0 0.0
  %341 = vmatpush1.msra.mxu0 0.0
  %342 = vmatprep.subr.mxu0 0.0
  %343 = vmatpush1.msra.mxu0 0.0
  %344 = vmatprep.subr.mxu0 0.0
  %345 = vmatpush1.msra.mxu0 0.0
  %346 = vmatprep.subr.mxu0 0.0
  %347 = vmatpush1.msra.mxu0 0.0
  %348 = vmatprep.subr.mxu0 0.0
  %349 = vmatpush1.msra.mxu0 0.0
  %350 = vmatprep.subr.mxu0 0.0
  %351 = vmatpush1.msra.mxu0 0.0
  %352 = vmatprep.subr.mxu0 0.0
  %353 = vmatpush1.msra.mxu0 0.0
  %354 = vmatprep.subr.mxu0 0.0
  %355 = vmatpush1.msra.mxu0 0.0
  %356 = vmatprep.subr.mxu0 0.0
  %357 = vmatpush1.msra.mxu0 0.0
  %358 = vmatprep.subr.mxu0 0.0
  %359 = vmatpush1.msra.mxu0 0.0
  %360 = vmatprep.subr.mxu0 0.0
  %361 = vmatpush1.msra.mxu0 0.0
  %362 = vmatprep.subr.mxu0 0.0
  %363 = vmatpush1.msra.mxu0 0.0
  %364 = vmatprep.subr.mxu0 0.0
  %365 = vmatpush1.msra.mxu0 0.0
  %366 = vmatprep.subr.mxu0 0.0
  %367 = vmatpush1.msra.mxu0 0.0
  %368 = vmatprep.subr.mxu0 0.0
  %369 = vmatpush1.msra.mxu0 0.0
  %370 = vmatprep.subr.mxu0 0.0
  %371 = vmatpush1.msra.mxu0 0.0
  %372 = vmatprep.subr.mxu0 0.0
  %373 = vmatpush1.msra.mxu0 0.0
  %374 = vmatprep.subr.mxu0 0.0
  %375 = vmatpush1.msra.mxu0 0.0
  %376 = vmatprep.subr.mxu0 0.0
  %377 = vmatpush1.msra.mxu0 0.0
  %378 = vmatprep.subr.mxu0 0.0
  %379 = vmatpush1.msra.mxu0 0.0
  %380 = vmatprep.subr.mxu0 0.0
  %381 = vmatpush1.msra.mxu0 0.0
  %382 = vmatprep.subr.mxu0 0.0
  %383 = vmatpush1.msra.mxu0 0.0
  %384 = vmatprep.subr.mxu0 0.0
  %385 = vmatpush1.msra.mxu0 0.0
  %386 = vmatprep.mubr.f32.mxu0 0.0
  %387 = vmatmul.mubr.f32.gmra.mrb[0].mxu0 %v320
  %v388 = vpop.f32.mrb[0].mxu0
  %v389 = vadd.f32 %v317, %v388
  %v390 = vpop.f32.mrb[0].mxu0
  %391 = vdwg.mxu0
  %vm392 = vcmask 130048
  %393 = vst.msk [vmem:[%s7] sm:$0xff] %vm392, %v389
  // Predicated region
  $region30: #{model_forward.17} parent=0 // pred_check
    _
  $region31: #{model_forward.17} parent=0 // pred_check_branch
    %395 = sbr.rel (0) target = $region33
  $region32: #{model_forward.17} parent=0 // pred_region
    _
  $region33: #{model_forward.17} parent=0 // pred_fallthru
    _
  // Predicated region
  $region34: #{model_forward.17} parent=0 // pred_check
    _
  $region35: #{model_forward.17} parent=0 // pred_check_branch
    %397 = sbr.rel (0) target = $region37
  $region36: #{model_forward.17} parent=0 // pred_region
    _
  $region37: #{model_forward.17} parent=0 // pred_fallthru
    _

// kernel: model_forward.16
$region0: #{model_forward.16}
  #allocation0 [shape = 'u32[]', space=smem, size = 0x4, offset = 0x4, fixed_abs, tag = 'smem constant byte address 0x4 - core index']
  #allocation1 [shape = 'u32[144,128]{1,0:T(1,128)}', space=vmem, size = 0x12000, scoped, tag = 'internal scratch']
  %s0 = inlined_call_operand.vmem [shape: f32[72,32], index: 0, kind: input, shape index: {}]
  %s1 = inlined_call_operand.vmem [shape: f32[72,72], index: 1, kind: input, shape index: {}]
  %s2 = inlined_call_operand.vmem [shape: bf16[32,192], index: 2, kind: input, shape index: {}]
  %s3 = inlined_call_operand.vmem [shape: f32[1,96], index: 3, kind: input, shape index: {}]
  %s4 = inlined_call_operand.vmem [shape: f32[9,32], index: 4, kind: input, shape index: {}]
  %s5 = inlined_call_operand.vmem [shape: f32[72,32], index: 5, kind: output, shape index: {}]
  %s6 = sld [smem:[#allocation0]]
  $region30: #{model_forward.16} parent=0
    _
  %s8 = ssub.s32 1, %s6
  %s9 = scalar_select 0, %s8, %s6
  // Predicated region
  $region2: #{model_forward.16} parent=0 // pred_check
    _
  $region3: #{model_forward.16} parent=0 // pred_check_branch
    %11 = sbr.rel (0) target = $region5
  $region4: #{model_forward.16} parent=0 // pred_region
    _
  $region5: #{model_forward.16} parent=0 // pred_fallthru
    _
  // Predicated region
  $region6: #{model_forward.16} parent=0 // pred_check
    _
  $region7: #{model_forward.16} parent=0 // pred_check_branch
    %13 = sbr.rel (0) target = $region9
  $region8: #{model_forward.16} parent=0 // pred_region
    _
  $region9: #{model_forward.16} parent=0 // pred_fallthru
    _
  // Predicated region
  $region10: #{model_forward.16} parent=0 // pred_check
    _
  $region11: #{model_forward.16} parent=0 // pred_check_branch
    %15 = sbr.rel (0) target = $region13
  $region12: #{model_forward.16} parent=0 // pred_region
    _
  $region13: #{model_forward.16} parent=0 // pred_fallthru
    _
  // Predicated region
  $region14: #{model_forward.16} parent=0 // pred_check
    _
  $region15: #{model_forward.16} parent=0 // pred_check_branch
    %17 = sbr.rel (0) target = $region17
  $region16: #{model_forward.16} parent=0 // pred_region
    _
  $region17: #{model_forward.16} parent=0 // pred_fallthru
    _
  // Predicated region
  $region18: #{model_forward.16} parent=0 // pred_check
    _
  $region19: #{model_forward.16} parent=0 // pred_check_branch
    %19 = sbr.rel (0) target = $region21
  $region20: #{model_forward.16} parent=0 // pred_region
    _
  $region21: #{model_forward.16} parent=0 // pred_fallthru
    _
  %v21 = vld [vmem:[%s0] sm:$0xff]
  %v22 = vld [vmem:[%s0 + $0x8] sm:$0xff]
  %v23 = vld [vmem:[%s0 + $0x10] sm:$0xff]
  %v24 = vld [vmem:[%s0 + $0x18] sm:$0xff]
  %v25 = vld [vmem:[%s0 + $0x20] sm:$0xff]
  %v26 = vld [vmem:[%s0 + $0x28] sm:$0xff]
  %v27 = vld [vmem:[%s0 + $0x30] sm:$0xff]
  %v28 = vld [vmem:[%s0 + $0x38] sm:$0xff]
  %v29 = vld [vmem:[%s0 + $0x40] sm:$0xff]
  %v30 = vld [vmem:[%s4] sm:$0xff]
  %v31 = vld [vmem:[%s4 + $0x8] sm:$0x1]
  %v32 = vld [vmem:[%s1] sm:$0xff]
  %v33 = vld [vmem:[%s1 + $0x8] sm:$0xff]
  %v34 = vld [vmem:[%s1 + $0x10] sm:$0xff]
  %v35 = vld [vmem:[%s1 + $0x18] sm:$0xff]
  %v36 = vld [vmem:[%s1 + $0x20] sm:$0xff]
  %v37 = vld [vmem:[%s1 + $0x28] sm:$0xff]
  %v38 = vld [vmem:[%s1 + $0x30] sm:$0xff]
  %v39 = vld [vmem:[%s1 + $0x38] sm:$0xff]
  %v40 = vld [vmem:[%s1 + $0x40] sm:$0xff]
  %v41 = vpack.c.bf16 %v22, %v21
  %v42 = vpack.c.bf16 %v24, %v23
  %v43 = vpack.c.bf16 %v26, %v25
  %v44 = vpack.c.bf16 %v28, %v27
  %v45 = vpack.c.bf16 %v29, %v29
  %v46 = vld [vmem:[%s2] sm:$0xf]
  %v47 = vld [vmem:[%s2 + $0x8] sm:$0xf]
  %v48 = vld [vmem:[%s2 + $0x10] sm:$0xf]
  %v49 = vld [vmem:[%s2 + $0x18] sm:$0xf]
  %v50 = vld [vmem:[%s3] sm:$0x1]
  %v52 = vlaneseq
  %v53 = vshrl.u32 %v52, 7
  %v54 = vsub.s32 0, %v53
  %v55 = vrot.slane %v50, %v54
  %v61 = vunpack.c.l.b16 %v46
  %v62 = vunpack.c.l.b16 %v47
  %v63 = vunpack.c.l.b16 %v48
  %v64 = vunpack.c.l.b16 %v49
  %v65 = vpack.c.b16 %v62, %v61
  %v66 = vpack.c.b16 %v64, %v63
  %vm69 = vcmask 261120
  %v71 = vsel %vm69, %v41, 0
  %v74 = vsel %vm69, %v42, 0
  %v77 = vsel %vm69, %v43, 0
  %v80 = vsel %vm69, %v44, 0
  %v83 = vsel %vm69, %v45, 0
  %85 = vmatprep.subr.bf16.mxu0 0
  %86 = vmatpush1.bf16.msra.mxu0 %v65
  %87 = vmatprep.subr.bf16.mxu0 0
  %88 = vmatpush1.bf16.msra.mxu0 %v66
  %89 = vmatprep.subr.bf16.mxu0 0
  %90 = vmatpush1.bf16.msra.mxu0 0
  %91 = vmatprep.subr.bf16.mxu0 0
  %92 = vmatpush1.bf16.msra.mxu0 0
  %93 = vmatprep.subr.bf16.mxu0 0
  %94 = vmatpush1.bf16.msra.mxu0 0
  %95 = vmatprep.subr.bf16.mxu0 0
  %96 = vmatpush1.bf16.msra.mxu0 0
  %97 = vmatprep.subr.bf16.mxu0 0
  %98 = vmatpush1.bf16.msra.mxu0 0
  %99 = vmatprep.subr.bf16.mxu0 0
  %100 = vmatpush1.bf16.msra.mxu0 0
  %101 = vmatprep.subr.bf16.mxu0 0
  %102 = vmatpush1.bf16.msra.mxu0 0
  %103 = vmatprep.subr.bf16.mxu0 0
  %104 = vmatpush1.bf16.msra.mxu0 0
  %105 = vmatprep.subr.bf16.mxu0 0
  %106 = vmatpush1.bf16.msra.mxu0 0
  %107 = vmatprep.subr.bf16.mxu0 0
  %108 = vmatpush1.bf16.msra.mxu0 0
  %109 = vmatprep.subr.bf16.mxu0 0
  %110 = vmatpush1.bf16.msra.mxu0 0
  %111 = vmatprep.subr.bf16.mxu0 0
  %112 = vmatpush1.bf16.msra.mxu0 0
  %113 = vmatprep.subr.bf16.mxu0 0
  %114 = vmatpush1.bf16.msra.mxu0 0
  %115 = vmatprep.subr.bf16.mxu0 0
  %116 = vmatpush1.bf16.msra.mxu0 0
  %117 = vmatprep.mubr.bf16.mxu0 0
  %118 = vmatmul.mubr.bf16.gmra.mrb[0].mxu0 %v71
  %v119 = vpop.f32.mrb[0].mxu0
  %v120 = vadd.f32 %v55, %v119
  %v121 = vpop.f32.mrb[0].mxu0
  %v122 = vpop.f32.mrb[0].mxu0
  %v123 = vadd.f32 %v55, %v122
  %v124 = vpop.f32.mrb[0].mxu0
  %125 = vmatprep.mubr.bf16.mxu0 0
  %126 = vmatmul.mubr.bf16.gmra.mrb[0].mxu0 %v74
  %v127 = vpop.f32.mrb[0].mxu0
  %v128 = vadd.f32 %v55, %v127
  %v129 = vpop.f32.mrb[0].mxu0
  %v130 = vpop.f32.mrb[0].mxu0
  %v131 = vadd.f32 %v55, %v130
  %v132 = vpop.f32.mrb[0].mxu0
  %133 = vmatprep.mubr.bf16.mxu0 0
  %134 = vmatmul.mubr.bf16.gmra.mrb[0].mxu0 %v77
  %v135 = vpop.f32.mrb[0].mxu0
  %v136 = vadd.f32 %v55, %v135
  %v137 = vpop.f32.mrb[0].mxu0
  %v138 = vpop.f32.mrb[0].mxu0
  %v139 = vadd.f32 %v55, %v138
  %v140 = vpop.f32.mrb[0].mxu0
  %141 = vmatprep.mubr.bf16.mxu0 0
  %142 = vmatmul.mubr.bf16.gmra.mrb[0].mxu0 %v80
  %v143 = vpop.f32.mrb[0].mxu0
  %v144 = vadd.f32 %v55, %v143
  %v145 = vpop.f32.mrb[0].mxu0
  %v146 = vpop.f32.mrb[0].mxu0
  %v147 = vadd.f32 %v55, %v146
  %v148 = vpop.f32.mrb[0].mxu0
  %149 = vmatprep.mubr.bf16.mxu0 0
  %150 = vmatmul.mubr.bf16.gmra.mrb[0].mxu0 %v83
  %v151 = vpop.f32.mrb[0].mxu0
  %v152 = vadd.f32 %v55, %v151
  %v153 = vpop.f32.mrb[0].mxu0
  %v154 = vpop.f32.mrb[0].mxu0
  %v155 = vpop.f32.mrb[0].mxu0
  %156 = vdwg.mxu0
  %v157 = vpack.c.bf16 %v123, %v120
  %v158 = vpack.c.bf16 %v131, %v128
  %v159 = vpack.c.bf16 %v139, %v136
  %v160 = vpack.c.bf16 %v147, %v144
  %v161 = vpack.c.bf16 %v152, %v152
  %167 = vrot.lane.b32.xlu0 %v157, 96
  %v168 = vpop.permute.xlu0 %167
  %169 = vrot.lane.b32.xlu0 %v158, 96
  %v170 = vpop.permute.xlu0 %169
  %171 = vrot.lane.b32.xlu0 %v159, 96
  %v172 = vpop.permute.xlu0 %171
  %173 = vrot.lane.b32.xlu0 %v160, 96
  %v174 = vpop.permute.xlu0 %173
  %175 = vrot.lane.b32.xlu0 %v161, 96
  %v176 = vpop.permute.xlu0 %175
  %vm177 = vcmask 130048
  %v179 = vsel %vm177, %v157, 0
  %v182 = vsel %vm177, %v158, 0
  %v185 = vsel %vm177, %v159, 0
  %v188 = vsel %vm177, %v160, 0
  %v191 = vsel %vm177, %v161, 0
  %v194 = vsel %vm177, %v168, 0
  %v197 = vsel %vm177, %v170, 0
  %v200 = vsel %vm177, %v172, 0
  %v203 = vsel %vm177, %v174, 0
  %v206 = vsel %vm177, %v176, 0
  %208 = vmatprep.subr.bf16.mxu0 0
  %209 = vmatpush1.bf16.xpose.msra.mxu0 %v194
  %210 = vmatprep.subr.bf16.mxu0 0
  %211 = vmatpush1.bf16.xpose.msra.mxu0 %v197
  %212 = vmatprep.subr.bf16.mxu0 0
  %213 = vmatpush1.bf16.xpose.msra.mxu0 %v200
  %214 = vmatprep.subr.bf16.mxu0 0
  %215 = vmatpush1.bf16.xpose.msra.mxu0 %v203
  %216 = vmatprep.subr.bf16.mxu0 0
  %217 = vmatpush1.bf16.xpose.msra.mxu0 %v206
  %218 = vmatprep.subr.bf16.mxu0 0
  %219 = vmatpush1.bf16.xpose.msra.mxu0 0
  %220 = vmatprep.subr.bf16.mxu0 0
  %221 = vmatpush1.bf16.xpose.msra.mxu0 0
  %222 = vmatprep.subr.bf16.mxu0 0
  %223 = vmatpush1.bf16.xpose.msra.mxu0 0
  %224 = vmatprep.subr.bf16.mxu0 0
  %225 = vmatpush1.bf16.xpose.msra.mxu0 0
  %226 = vmatprep.subr.bf16.mxu0 0
  %227 = vmatpush1.bf16.xpose.msra.mxu0 0
  %228 = vmatprep.subr.bf16.mxu0 0
  %229 = vmatpush1.bf16.xpose.msra.mxu0 0
  %230 = vmatprep.subr.bf16.mxu0 0
  %231 = vmatpush1.bf16.xpose.msra.mxu0 0
  %232 = vmatprep.subr.bf16.mxu0 0
  %233 = vmatpush1.bf16.xpose.msra.mxu0 0
  %234 = vmatprep.subr.bf16.mxu0 0
  %235 = vmatpush1.bf16.xpose.msra.mxu0 0
  %236 = vmatprep.subr.bf16.mxu0 0
  %237 = vmatpush1.bf16.xpose.msra.mxu0 0
  %238 = vmatprep.subr.bf16.mxu0 0
  %239 = vmatpush1.bf16.xpose.msra.mxu0 0
  %240 = vmatprep.mubr.bf16.mxu0 0
  %241 = vmatmul.mubr.bf16.gmra.mrb[0].mxu0 %v179
  %v242 = vpop.f32.mrb[0].mxu0
  %v243 = vadd.f32 0.0, %v242
  %v244 = vpop.f32.mrb[0].mxu0
  %v245 = vpop.f32.mrb[0].mxu0
  %v246 = vadd.f32 0.0, %v245
  %v247 = vpop.f32.mrb[0].mxu0
  %248 = vmatprep.mubr.bf16.mxu0 0
  %249 = vmatmul.mubr.bf16.gmra.mrb[0].mxu0 %v182
  %v250 = vpop.f32.mrb[0].mxu0
  %v251 = vadd.f32 0.0, %v250
  %v252 = vpop.f32.mrb[0].mxu0
  %v253 = vpop.f32.mrb[0].mxu0
  %v254 = vadd.f32 0.0, %v253
  %v255 = vpop.f32.mrb[0].mxu0
  %256 = vmatprep.mubr.bf16.mxu0 0
  %257 = vmatmul.mubr.bf16.gmra.mrb[0].mxu0 %v185
  %v258 = vpop.f32.mrb[0].mxu0
  %v259 = vadd.f32 0.0, %v258
  %v260 = vpop.f32.mrb[0].mxu0
  %v261 = vpop.f32.mrb[0].mxu0
  %v262 = vadd.f32 0.0, %v261
  %v263 = vpop.f32.mrb[0].mxu0
  %264 = vmatprep.mubr.bf16.mxu0 0
  %265 = vmatmul.mubr.bf16.gmra.mrb[0].mxu0 %v188
  %v266 = vpop.f32.mrb[0].mxu0
  %v267 = vadd.f32 0.0, %v266
  %v268 = vpop.f32.mrb[0].mxu0
  %v269 = vpop.f32.mrb[0].mxu0
  %v270 = vadd.f32 0.0, %v269
  %v271 = vpop.f32.mrb[0].mxu0
  %272 = vmatprep.mubr.bf16.mxu0 0
  %273 = vmatmul.mubr.bf16.gmra.mrb[0].mxu0 %v191
  %v274 = vpop.f32.mrb[0].mxu0
  %v275 = vadd.f32 0.0, %v274
  %v276 = vpop.f32.mrb[0].mxu0
  %v277 = vpop.f32.mrb[0].mxu0
  %v278 = vpop.f32.mrb[0].mxu0
  %279 = vdwg.mxu0
  %v280 = vmul.f32 %v243, 0.25
  %v281 = vmul.f32 %v246, 0.25
  %v282 = vmul.f32 %v251, 0.25
  %v283 = vmul.f32 %v254, 0.25
  %v284 = vmul.f32 %v259, 0.25
  %v285 = vmul.f32 %v262, 0.25
  %v286 = vmul.f32 %v267, 0.25
  %v287 = vmul.f32 %v270, 0.25
  %v288 = vmul.f32 %v275, 0.25
  %v289 = vadd.f32 %v280, %v32
  %v290 = vadd.f32 %v281, %v33
  %v291 = vadd.f32 %v282, %v34
  %v292 = vadd.f32 %v283, %v35
  %v293 = vadd.f32 %v284, %v36
  %v294 = vadd.f32 %v285, %v37
  %v295 = vadd.f32 %v286, %v38
  %v296 = vadd.f32 %v287, %v39
  %v297 = vadd.f32 %v288, %v40
  %vm298 = vcmask 588800
  %v299 = vsel %vm298, %v289, -inf
  %300 = vmax.xlane.f32.xlu0 %v299
  %v301 = vpop.xlane.xlu0 %300
  %v302 = vsel %vm298, %v290, -inf
  %303 = vmax.xlane.f32.xlu0 %v302
  %v304 = vpop.xlane.xlu0 %303
  %v305 = vsel %vm298, %v291, -inf
  %306 = vmax.xlane.f32.xlu0 %v305
  %v307 = vpop.xlane.xlu0 %306
  %v308 = vsel %vm298, %v292, -inf
  %309 = vmax.xlane.f32.xlu0 %v308
  %v310 = vpop.xlane.xlu0 %309
  %v311 = vsel %vm298, %v293, -inf
  %312 = vmax.xlane.f32.xlu0 %v311
  %v313 = vpop.xlane.xlu0 %312
  %v314 = vsel %vm298, %v294, -inf
  %315 = vmax.xlane.f32.xlu0 %v314
  %v316 = vpop.xlane.xlu0 %315
  %v317 = vsel %vm298, %v295, -inf
  %318 = vmax.xlane.f32.xlu0 %v317
  %v319 = vpop.xlane.xlu0 %318
  %v320 = vsel %vm298, %v296, -inf
  %321 = vmax.xlane.f32.xlu0 %v320
  %v322 = vpop.xlane.xlu0 %321
  %v323 = vsel %vm298, %v297, -inf
  %324 = vmax.xlane.f32.xlu0 %v323
  %v325 = vpop.xlane.xlu0 %324
  %v326 = vsub.f32 %v289, %v301
  %v327 = vsub.f32 %v290, %v304
  %v328 = vsub.f32 %v291, %v307
  %v329 = vsub.f32 %v292, %v310
  %v330 = vsub.f32 %v293, %v313
  %v331 = vsub.f32 %v294, %v316
  %v332 = vsub.f32 %v295, %v319
  %v333 = vsub.f32 %v296, %v322
  %v334 = vsub.f32 %v297, %v325
  %v335 = vmul.f32 %v326, 1.442695
  %v336 = vpow.pop %v335
  %v337 = vmul.f32 %v327, 1.442695
  %v338 = vpow.pop %v337
  %v339 = vmul.f32 %v328, 1.442695
  %v340 = vpow.pop %v339
  %v341 = vmul.f32 %v329, 1.442695
  %v342 = vpow.pop %v341
  %v343 = vmul.f32 %v330, 1.442695
  %v344 = vpow.pop %v343
  %v345 = vmul.f32 %v331, 1.442695
  %v346 = vpow.pop %v345
  %v347 = vmul.f32 %v332, 1.442695
  %v348 = vpow.pop %v347
  %v349 = vmul.f32 %v333, 1.442695
  %v350 = vpow.pop %v349
  %v351 = vmul.f32 %v334, 1.442695
  %v352 = vpow.pop %v351
  %v353 = vsel %vm298, %v336, 0.0
  %354 = vadd.xlane.f32.xlu0 %v353
  %v355 = vpop.xlane.xlu0 %354
  %v356 = vsel %vm298, %v338, 0.0
  %357 = vadd.xlane.f32.xlu0 %v356
  %v358 = vpop.xlane.xlu0 %357
  %v359 = vsel %vm298, %v340, 0.0
  %360 = vadd.xlane.f32.xlu0 %v359
  %v361 = vpop.xlane.xlu0 %360
  %v362 = vsel %vm298, %v342, 0.0
  %363 = vadd.xlane.f32.xlu0 %v362
  %v364 = vpop.xlane.xlu0 %363
  %v365 = vsel %vm298, %v344, 0.0
  %366 = vadd.xlane.f32.xlu0 %v365
  %v367 = vpop.xlane.xlu0 %366
  %v368 = vsel %vm298, %v346, 0.0
  %369 = vadd.xlane.f32.xlu0 %v368
  %v370 = vpop.xlane.xlu0 %369
  %v371 = vsel %vm298, %v348, 0.0
  %372 = vadd.xlane.f32.xlu0 %v371
  %v373 = vpop.xlane.xlu0 %372
  %v374 = vsel %vm298, %v350, 0.0
  %375 = vadd.xlane.f32.xlu0 %v374
  %v376 = vpop.xlane.xlu0 %375
  %v377 = vsel %vm298, %v352, 0.0
  %378 = vadd.xlane.f32.xlu0 %v377
  %v379 = vpop.xlane.xlu0 %378
  %v380 = vrcp.pop %v355
  %v381 = vrcp.pop %v358
  %v382 = vrcp.pop %v361
  %v383 = vrcp.pop %v364
  %v384 = vrcp.pop %v367
  %v385 = vrcp.pop %v370
  %v386 = vrcp.pop %v373
  %v387 = vrcp.pop %v376
  %v388 = vrcp.pop %v379
  %v389 = vmul.f32 %v336, %v380
  %v390 = vmul.f32 %v338, %v381
  %v391 = vmul.f32 %v340, %v382
  %v392 = vmul.f32 %v342, %v383
  %v393 = vmul.f32 %v344, %v384
  %v394 = vmul.f32 %v346, %v385
  %v395 = vmul.f32 %v348, %v386
  %v396 = vmul.f32 %v350, %v387
  %v397 = vmul.f32 %v352, %v388
  %v398 = vpack.c.bf16 %v390, %v389
  %v399 = vpack.c.bf16 %v392, %v391
  %v400 = vpack.c.bf16 %v394, %v393
  %v401 = vpack.c.bf16 %v396, %v395
  %v402 = vpack.c.bf16 %v397, %v397
  %403 = vrot.lane.b32.xlu0 %v157, 64
  %v404 = vpop.permute.xlu0 %403
  %405 = vrot.lane.b32.xlu0 %v158, 64
  %v406 = vpop.permute.xlu0 %405
  %407 = vrot.lane.b32.xlu0 %v159, 64
  %v408 = vpop.permute.xlu0 %407
  %409 = vrot.lane.b32.xlu0 %v160, 64
  %v410 = vpop.permute.xlu0 %409
  %411 = vrot.lane.b32.xlu0 %v161, 64
  %v412 = vpop.permute.xlu0 %411
  %v418 = vsel %vm298, %v398, 0
  %v421 = vsel %vm298, %v399, 0
  %v424 = vsel %vm298, %v400, 0
  %v427 = vsel %vm298, %v401, 0
  %v430 = vsel %vm298, %v402, 0
  %vm432 = vcmask 1043456
  %v434 = vsel %vm432, %v412, 0
  %436 = vmatprep.subr.bf16.mxu0 0
  %437 = vmatpush1.bf16.msra.mxu0 %v404
  %438 = vmatprep.subr.bf16.mxu0 0
  %439 = vmatpush1.bf16.msra.mxu0 %v406
  %440 = vmatprep.subr.bf16.mxu0 0
  %441 = vmatpush1.bf16.msra.mxu0 %v408
  %442 = vmatprep.subr.bf16.mxu0 0
  %443 = vmatpush1.bf16.msra.mxu0 %v410
  %444 = vmatprep.subr.bf16.mxu0 0
  %445 = vmatpush1.bf16.msra.mxu0 %v434
  %446 = vmatprep.subr.bf16.mxu0 0
  %447 = vmatpush1.bf16.msra.mxu0 0
  %448 = vmatprep.subr.bf16.mxu0 0
  %449 = vmatpush1.bf16.msra.mxu0 0
  %450 = vmatprep.subr.bf16.mxu0 0
  %451 = vmatpush1.bf16.msra.mxu0 0
  %452 = vmatprep.subr.bf16.mxu0 0
  %453 = vmatpush1.bf16.msra.mxu0 0
  %454 = vmatprep.subr.bf16.mxu0 0
  %455 = vmatpush1.bf16.msra.mxu0 0
  %456 = vmatprep.subr.bf16.mxu0 0
  %457 = vmatpush1.bf16.msra.mxu0 0
  %458 = vmatprep.subr.bf16.mxu0 0
  %459 = vmatpush1.bf16.msra.mxu0 0
  %460 = vmatprep.subr.bf16.mxu0 0
  %461 = vmatpush1.bf16.msra.mxu0 0
  %462 = vmatprep.subr.bf16.mxu0 0
  %463 = vmatpush1.bf16.msra.mxu0 0
  %464 = vmatprep.subr.bf16.mxu0 0
  %465 = vmatpush1.bf16.msra.mxu0 0
  %466 = vmatprep.subr.bf16.mxu0 0
  %467 = vmatpush1.bf16.msra.mxu0 0
  %468 = vmatprep.mubr.bf16.mxu0 0
  %469 = vmatmul.mubr.bf16.gmra.mrb[0].mxu0 %v418
  %v470 = vpop.f32.mrb[0].mxu0
  %v471 = vadd.f32 0.0, %v470
  %v472 = vpop.f32.mrb[0].mxu0
  %v473 = vpop.f32.mrb[0].mxu0
  %v474 = vadd.f32 0.0, %v473
  %v475 = vpop.f32.mrb[0].mxu0
  %476 = vmatprep.mubr.bf16.mxu0 0
  %477 = vmatmul.mubr.bf16.gmra.mrb[0].mxu0 %v421
  %v478 = vpop.f32.mrb[0].mxu0
  %v479 = vadd.f32 0.0, %v478
  %v480 = vpop.f32.mrb[0].mxu0
  %v481 = vpop.f32.mrb[0].mxu0
  %v482 = vadd.f32 0.0, %v481
  %v483 = vpop.f32.mrb[0].mxu0
  %484 = vmatprep.mubr.bf16.mxu0 0
  %485 = vmatmul.mubr.bf16.gmra.mrb[0].mxu0 %v424
  %v486 = vpop.f32.mrb[0].mxu0
  %v487 = vadd.f32 0.0, %v486
  %v488 = vpop.f32.mrb[0].mxu0
  %v489 = vpop.f32.mrb[0].mxu0
  %v490 = vadd.f32 0.0, %v489
  %v491 = vpop.f32.mrb[0].mxu0
  %492 = vmatprep.mubr.bf16.mxu0 0
  %493 = vmatmul.mubr.bf16.gmra.mrb[0].mxu0 %v427
  %v494 = vpop.f32.mrb[0].mxu0
  %v495 = vadd.f32 0.0, %v494
  %v496 = vpop.f32.mrb[0].mxu0
  %v497 = vpop.f32.mrb[0].mxu0
  %v498 = vadd.f32 0.0, %v497
  %v499 = vpop.f32.mrb[0].mxu0
  %500 = vmatprep.mubr.bf16.mxu0 0
  %501 = vmatmul.mubr.bf16.gmra.mrb[0].mxu0 %v430
  %v502 = vpop.f32.mrb[0].mxu0
  %v503 = vadd.f32 0.0, %v502
  %v504 = vpop.f32.mrb[0].mxu0
  %v505 = vpop.f32.mrb[0].mxu0
  %v506 = vpop.f32.mrb[0].mxu0
  %507 = vdwg.mxu0
  %508 = vrot.lane.b32.xlu0 %v157, 112
  %v509 = vpop.permute.xlu0 %508
  %510 = vrot.lane.b32.xlu0 %v158, 112
  %v511 = vpop.permute.xlu0 %510
  %512 = vrot.lane.b32.xlu0 %v159, 112
  %v513 = vpop.permute.xlu0 %512
  %514 = vrot.lane.b32.xlu0 %v160, 112
  %v515 = vpop.permute.xlu0 %514
  %516 = vrot.lane.b32.xlu0 %v161, 112
  %v517 = vpop.permute.xlu0 %516
  %518 = vrot.lane.b32.xlu0 %v157, 80
  %v519 = vpop.permute.xlu0 %518
  %520 = vrot.lane.b32.xlu0 %v158, 80
  %v521 = vpop.permute.xlu0 %520
  %522 = vrot.lane.b32.xlu0 %v159, 80
  %v523 = vpop.permute.xlu0 %522
  %524 = vrot.lane.b32.xlu0 %v160, 80
  %v525 = vpop.permute.xlu0 %524
  %526 = vrot.lane.b32.xlu0 %v161, 80
  %v527 = vpop.permute.xlu0 %526
  %v529 = vsel %vm177, %v509, 0
  %v532 = vsel %vm177, %v511, 0
  %v535 = vsel %vm177, %v513, 0
  %v538 = vsel %vm177, %v515, 0
  %v541 = vsel %vm177, %v517, 0
  %v544 = vsel %vm177, %v519, 0
  %v547 = vsel %vm177, %v521, 0
  %v550 = vsel %vm177, %v523, 0
  %v553 = vsel %vm177, %v525, 0
  %v556 = vsel %vm177, %v527, 0
  %558 = vmatprep.subr.bf16.mxu0 0
  %559 = vmatpush1.bf16.xpose.msra.mxu0 %v544
  %560 = vmatprep.subr.bf16.mxu0 0
  %561 = vmatpush1.bf16.xpose.msra.mxu0 %v547
  %562 = vmatprep.subr.bf16.mxu0 0
  %563 = vmatpush1.bf16.xpose.msra.mxu0 %v550
  %564 = vmatprep.subr.bf16.mxu0 0
  %565 = vmatpush1.bf16.xpose.msra.mxu0 %v553
  %566 = vmatprep.subr.bf16.mxu0 0
  %567 = vmatpush1.bf16.xpose.msra.mxu0 %v556
  %568 = vmatprep.subr.bf16.mxu0 0
  %569 = vmatpush1.bf16.xpose.msra.mxu0 0
  %570 = vmatprep.subr.bf16.mxu0 0
  %571 = vmatpush1.bf16.xpose.msra.mxu0 0
  %572 = vmatprep.subr.bf16.mxu0 0
  %573 = vmatpush1.bf16.xpose.msra.mxu0 0
  %574 = vmatprep.subr.bf16.mxu0 0
  %575 = vmatpush1.bf16.xpose.msra.mxu0 0
  %576 = vmatprep.subr.bf16.mxu0 0
  %577 = vmatpush1.bf16.xpose.msra.mxu0 0
  %578 = vmatprep.subr.bf16.mxu0 0
  %579 = vmatpush1.bf16.xpose.msra.mxu0 0
  %580 = vmatprep.subr.bf16.mxu0 0
  %581 = vmatpush1.bf16.xpose.msra.mxu0 0
  %582 = vmatprep.subr.bf16.mxu0 0
  %583 = vmatpush1.bf16.xpose.msra.mxu0 0
  %584 = vmatprep.subr.bf16.mxu0 0
  %585 = vmatpush1.bf16.xpose.msra.mxu0 0
  %586 = vmatprep.subr.bf16.mxu0 0
  %587 = vmatpush1.bf16.xpose.msra.mxu0 0
  %588 = vmatprep.subr.bf16.mxu0 0
  %589 = vmatpush1.bf16.xpose.msra.mxu0 0
  %590 = vmatprep.mubr.bf16.mxu0 0
  %591 = vmatmul.mubr.bf16.gmra.mrb[0].mxu0 %v529
  %v592 = vpop.f32.mrb[0].mxu0
  %v593 = vadd.f32 0.0, %v592
  %v594 = vpop.f32.mrb[0].mxu0
  %v595 = vpop.f32.mrb[0].mxu0
  %v596 = vadd.f32 0.0, %v595
  %v597 = vpop.f32.mrb[0].mxu0
  %598 = vmatprep.mubr.bf16.mxu0 0
  %599 = vmatmul.mubr.bf16.gmra.mrb[0].mxu0 %v532
  %v600 = vpop.f32.mrb[0].mxu0
  %v601 = vadd.f32 0.0, %v600
  %v602 = vpop.f32.mrb[0].mxu0
  %v603 = vpop.f32.mrb[0].mxu0
  %v604 = vadd.f32 0.0, %v603
  %v605 = vpop.f32.mrb[0].mxu0
  %606 = vmatprep.mubr.bf16.mxu0 0
  %607 = vmatmul.mubr.bf16.gmra.mrb[0].mxu0 %v535
  %v608 = vpop.f32.mrb[0].mxu0
  %v609 = vadd.f32 0.0, %v608
  %v610 = vpop.f32.mrb[0].mxu0
  %v611 = vpop.f32.mrb[0].mxu0
  %v612 = vadd.f32 0.0, %v611
  %v613 = vpop.f32.mrb[0].mxu0
  %614 = vmatprep.mubr.bf16.mxu0 0
  %615 = vmatmul.mubr.bf16.gmra.mrb[0].mxu0 %v538
  %v616 = vpop.f32.mrb[0].mxu0
  %v617 = vadd.f32 0.0, %v616
  %v618 = vpop.f32.mrb[0].mxu0
  %v619 = vpop.f32.mrb[0].mxu0
  %v620 = vadd.f32 0.0, %v619
  %v621 = vpop.f32.mrb[0].mxu0
  %622 = vmatprep.mubr.bf16.mxu0 0
  %623 = vmatmul.mubr.bf16.gmra.mrb[0].mxu0 %v541
  %v624 = vpop.f32.mrb[0].mxu0
  %v625 = vadd.f32 0.0, %v624
  %v626 = vpop.f32.mrb[0].mxu0
  %v627 = vpop.f32.mrb[0].mxu0
  %v628 = vpop.f32.mrb[0].mxu0
  %629 = vdwg.mxu0
  %v630 = vmul.f32 %v593, 0.25
  %v631 = vmul.f32 %v596, 0.25
  %v632 = vmul.f32 %v601, 0.25
  %v633 = vmul.f32 %v604, 0.25
  %v634 = vmul.f32 %v609, 0.25
  %v635 = vmul.f32 %v612, 0.25
  %v636 = vmul.f32 %v617, 0.25
  %v637 = vmul.f32 %v620, 0.25
  %v638 = vmul.f32 %v625, 0.25
  %v639 = vadd.f32 %v630, %v32
  %v640 = vadd.f32 %v631, %v33
  %v641 = vadd.f32 %v632, %v34
  %v642 = vadd.f32 %v633, %v35
  %v643 = vadd.f32 %v634, %v36
  %v644 = vadd.f32 %v635, %v37
  %v645 = vadd.f32 %v636, %v38
  %v646 = vadd.f32 %v637, %v39
  %v647 = vadd.f32 %v638, %v40
  %v648 = vsel %vm298, %v639, -inf
  %649 = vmax.xlane.f32.xlu0 %v648
  %v650 = vpop.xlane.xlu0 %649
  %v651 = vsel %vm298, %v640, -inf
  %652 = vmax.xlane.f32.xlu0 %v651
  %v653 = vpop.xlane.xlu0 %652
  %v654 = vsel %vm298, %v641, -inf
  %655 = vmax.xlane.f32.xlu0 %v654
  %v656 = vpop.xlane.xlu0 %655
  %v657 = vsel %vm298, %v642, -inf
  %658 = vmax.xlane.f32.xlu0 %v657
  %v659 = vpop.xlane.xlu0 %658
  %v660 = vsel %vm298, %v643, -inf
  %661 = vmax.xlane.f32.xlu0 %v660
  %v662 = vpop.xlane.xlu0 %661
  %v663 = vsel %vm298, %v644, -inf
  %664 = vmax.xlane.f32.xlu0 %v663
  %v665 = vpop.xlane.xlu0 %664
  %v666 = vsel %vm298, %v645, -inf
  %667 = vmax.xlane.f32.xlu0 %v666
  %v668 = vpop.xlane.xlu0 %667
  %v669 = vsel %vm298, %v646, -inf
  %670 = vmax.xlane.f32.xlu0 %v669
  %v671 = vpop.xlane.xlu0 %670
  %v672 = vsel %vm298, %v647, -inf
  %673 = vmax.xlane.f32.xlu0 %v672
  %v674 = vpop.xlane.xlu0 %673
  %v675 = vsub.f32 %v639, %v650
  %v676 = vsub.f32 %v640, %v653
  %v677 = vsub.f32 %v641, %v656
  %v678 = vsub.f32 %v642, %v659
  %v679 = vsub.f32 %v643, %v662
  %v680 = vsub.f32 %v644, %v665
  %v681 = vsub.f32 %v645, %v668
  %v682 = vsub.f32 %v646, %v671
  %v683 = vsub.f32 %v647, %v674
  %v684 = vmul.f32 %v675, 1.442695
  %v685 = vpow.pop %v684
  %v686 = vmul.f32 %v676, 1.442695
  %v687 = vpow.pop %v686
  %v688 = vmul.f32 %v677, 1.442695
  %v689 = vpow.pop %v688
  %v690 = vmul.f32 %v678, 1.442695
  %v691 = vpow.pop %v690
  %v692 = vmul.f32 %v679, 1.442695
  %v693 = vpow.pop %v692
  %v694 = vmul.f32 %v680, 1.442695
  %v695 = vpow.pop %v694
  %v696 = vmul.f32 %v681, 1.442695
  %v697 = vpow.pop %v696
  %v698 = vmul.f32 %v682, 1.442695
  %v699 = vpow.pop %v698
  %v700 = vmul.f32 %v683, 1.442695
  %v701 = vpow.pop %v700
  %v702 = vsel %vm298, %v685, 0.0
  %703 = vadd.xlane.f32.xlu0 %v702
  %v704 = vpop.xlane.xlu0 %703
  %v705 = vsel %vm298, %v687, 0.0
  %706 = vadd.xlane.f32.xlu0 %v705
  %v707 = vpop.xlane.xlu0 %706
  %v708 = vsel %vm298, %v689, 0.0
  %709 = vadd.xlane.f32.xlu0 %v708
  %v710 = vpop.xlane.xlu0 %709
  %v711 = vsel %vm298, %v691, 0.0
  %712 = vadd.xlane.f32.xlu0 %v711
  %v713 = vpop.xlane.xlu0 %712
  %v714 = vsel %vm298, %v693, 0.0
  %715 = vadd.xlane.f32.xlu0 %v714
  %v716 = vpop.xlane.xlu0 %715
  %v717 = vsel %vm298, %v695, 0.0
  %718 = vadd.xlane.f32.xlu0 %v717
  %v719 = vpop.xlane.xlu0 %718
  %v720 = vsel %vm298, %v697, 0.0
  %721 = vadd.xlane.f32.xlu0 %v720
  %v722 = vpop.xlane.xlu0 %721
  %v723 = vsel %vm298, %v699, 0.0
  %724 = vadd.xlane.f32.xlu0 %v723
  %v725 = vpop.xlane.xlu0 %724
  %v726 = vsel %vm298, %v701, 0.0
  %727 = vadd.xlane.f32.xlu0 %v726
  %v728 = vpop.xlane.xlu0 %727
  %v729 = vrcp.pop %v704
  %v730 = vrcp.pop %v707
  %v731 = vrcp.pop %v710
  %v732 = vrcp.pop %v713
  %v733 = vrcp.pop %v716
  %v734 = vrcp.pop %v719
  %v735 = vrcp.pop %v722
  %v736 = vrcp.pop %v725
  %v737 = vrcp.pop %v728
  %v738 = vmul.f32 %v685, %v729
  %v739 = vmul.f32 %v687, %v730
  %v740 = vmul.f32 %v689, %v731
  %v741 = vmul.f32 %v691, %v732
  %v742 = vmul.f32 %v693, %v733
  %v743 = vmul.f32 %v695, %v734
  %v744 = vmul.f32 %v697, %v735
  %v745 = vmul.f32 %v699, %v736
  %v746 = vmul.f32 %v701, %v737
  %v747 = vpack.c.bf16 %v739, %v738
  %v748 = vpack.c.bf16 %v741, %v740
  %v749 = vpack.c.bf16 %v743, %v742
  %v750 = vpack.c.bf16 %v745, %v744
  %v751 = vpack.c.bf16 %v746, %v746
  %752 = vrot.lane.b32.xlu0 %v157, 48
  %v753 = vpop.permute.xlu0 %752
  %754 = vrot.lane.b32.xlu0 %v158, 48
  %v755 = vpop.permute.xlu0 %754
  %756 = vrot.lane.b32.xlu0 %v159, 48
  %v757 = vpop.permute.xlu0 %756
  %758 = vrot.lane.b32.xlu0 %v160, 48
  %v759 = vpop.permute.xlu0 %758
  %760 = vrot.lane.b32.xlu0 %v161, 48
  %v761 = vpop.permute.xlu0 %760
  %v767 = vsel %vm298, %v747, 0
  %v770 = vsel %vm298, %v748, 0
  %v773 = vsel %vm298, %v749, 0
  %v776 = vsel %vm298, %v750, 0
  %v779 = vsel %vm298, %v751, 0
  %v782 = vsel %vm432, %v761, 0
  %784 = vmatprep.subr.bf16.mxu0 0
  %785 = vmatpush1.bf16.msra.mxu0 %v753
  %786 = vmatprep.subr.bf16.mxu0 0
  %787 = vmatpush1.bf16.msra.mxu0 %v755
  %788 = vmatprep.subr.bf16.mxu0 0
  %789 = vmatpush1.bf16.msra.mxu0 %v757
  %790 = vmatprep.subr.bf16.mxu0 0
  %791 = vmatpush1.bf16.msra.mxu0 %v759
  %792 = vmatprep.subr.bf16.mxu0 0
  %793 = vmatpush1.bf16.msra.mxu0 %v782
  %794 = vmatprep.subr.bf16.mxu0 0
  %795 = vmatpush1.bf16.msra.mxu0 0
  %796 = vmatprep.subr.bf16.mxu0 0
  %797 = vmatpush1.bf16.msra.mxu0 0
  %798 = vmatprep.subr.bf16.mxu0 0
  %799 = vmatpush1.bf16.msra.mxu0 0
  %800 = vmatprep.subr.bf16.mxu0 0
  %801 = vmatpush1.bf16.msra.mxu0 0
  %802 = vmatprep.subr.bf16.mxu0 0
  %803 = vmatpush1.bf16.msra.mxu0 0
  %804 = vmatprep.subr.bf16.mxu0 0
  %805 = vmatpush1.bf16.msra.mxu0 0
  %806 = vmatprep.subr.bf16.mxu0 0
  %807 = vmatpush1.bf16.msra.mxu0 0
  %808 = vmatprep.subr.bf16.mxu0 0
  %809 = vmatpush1.bf16.msra.mxu0 0
  %810 = vmatprep.subr.bf16.mxu0 0
  %811 = vmatpush1.bf16.msra.mxu0 0
  %812 = vmatprep.subr.bf16.mxu0 0
  %813 = vmatpush1.bf16.msra.mxu0 0
  %814 = vmatprep.subr.bf16.mxu0 0
  %815 = vmatpush1.bf16.msra.mxu0 0
  %816 = vmatprep.mubr.bf16.mxu0 0
  %817 = vmatmul.mubr.bf16.gmra.mrb[0].mxu0 %v767
  %v818 = vpop.f32.mrb[0].mxu0
  %v819 = vadd.f32 0.0, %v818
  %v820 = vpop.f32.mrb[0].mxu0
  %v821 = vpop.f32.mrb[0].mxu0
  %v822 = vadd.f32 0.0, %v821
  %v823 = vpop.f32.mrb[0].mxu0
  %824 = vmatprep.mubr.bf16.mxu0 0
  %825 = vmatmul.mubr.bf16.gmra.mrb[0].mxu0 %v770
  %v826 = vpop.f32.mrb[0].mxu0
  %v827 = vadd.f32 0.0, %v826
  %v828 = vpop.f32.mrb[0].mxu0
  %v829 = vpop.f32.mrb[0].mxu0
  %v830 = vadd.f32 0.0, %v829
  %v831 = vpop.f32.mrb[0].mxu0
  %832 = vmatprep.mubr.bf16.mxu0 0
  %833 = vmatmul.mubr.bf16.gmra.mrb[0].mxu0 %v773
  %v834 = vpop.f32.mrb[0].mxu0
  %v835 = vadd.f32 0.0, %v834
  %v836 = vpop.f32.mrb[0].mxu0
  %v837 = vpop.f32.mrb[0].mxu0
  %v838 = vadd.f32 0.0, %v837
  %v839 = vpop.f32.mrb[0].mxu0
  %840 = vmatprep.mubr.bf16.mxu0 0
  %841 = vmatmul.mubr.bf16.gmra.mrb[0].mxu0 %v776
  %v842 = vpop.f32.mrb[0].mxu0
  %v843 = vadd.f32 0.0, %v842
  %v844 = vpop.f32.mrb[0].mxu0
  %v845 = vpop.f32.mrb[0].mxu0
  %v846 = vadd.f32 0.0, %v845
  %v847 = vpop.f32.mrb[0].mxu0
  %848 = vmatprep.mubr.bf16.mxu0 0
  %849 = vmatmul.mubr.bf16.gmra.mrb[0].mxu0 %v779
  %v850 = vpop.f32.mrb[0].mxu0
  %v851 = vadd.f32 0.0, %v850
  %v852 = vpop.f32.mrb[0].mxu0
  %v853 = vpop.f32.mrb[0].mxu0
  %v854 = vpop.f32.mrb[0].mxu0
  %855 = vdwg.mxu0
  %865 = vrot.lane.b32.xlu0 %v819, 16
  %v866 = vpop.permute.xlu0 %865
  %867 = vrot.lane.b32.xlu0 %v822, 16
  %v868 = vpop.permute.xlu0 %867
  %869 = vrot.lane.b32.xlu0 %v827, 16
  %v870 = vpop.permute.xlu0 %869
  %871 = vrot.lane.b32.xlu0 %v830, 16
  %v872 = vpop.permute.xlu0 %871
  %873 = vrot.lane.b32.xlu0 %v835, 16
  %v874 = vpop.permute.xlu0 %873
  %875 = vrot.lane.b32.xlu0 %v838, 16
  %v876 = vpop.permute.xlu0 %875
  %877 = vrot.lane.b32.xlu0 %v843, 16
  %v878 = vpop.permute.xlu0 %877
  %879 = vrot.lane.b32.xlu0 %v846, 16
  %v880 = vpop.permute.xlu0 %879
  %881 = vrot.lane.b32.xlu0 %v851, 16
  %v882 = vpop.permute.xlu0 %881
  %v892 = vsel %vm177, %v471, %v866
  %v893 = vsel %vm177, %v474, %v868
  %v894 = vsel %vm177, %v479, %v870
  %v895 = vsel %vm177, %v482, %v872
  %v896 = vsel %vm177, %v487, %v874
  %v897 = vsel %vm177, %v490, %v876
  %v898 = vsel %vm177, %v495, %v878
  %v899 = vsel %vm177, %v498, %v880
  %v900 = vsel %vm177, %v503, %v882
  %v901 = vpack.c.bf16 %v893, %v892
  %v902 = vpack.c.bf16 %v895, %v894
  %v903 = vpack.c.bf16 %v897, %v896
  %v904 = vpack.c.bf16 %v899, %v898
  %v905 = vpack.c.bf16 %v900, %v900
  %v906 = vlaneseq
  %v907 = vshrl.u32 %v906, 7
  %v908 = vsub.s32 0, %v907
  %v909 = vrot.slane %v30, %v908
  %910 = vrot.lane.b32.xlu0 %v65, 32
  %v911 = vpop.permute.xlu0 %910
  %912 = vrot.lane.b32.xlu0 %v66, 32
  %v913 = vpop.permute.xlu0 %912
  %v917 = vsel %vm69, %v901, 0
  %v920 = vsel %vm69, %v902, 0
  %v923 = vsel %vm69, %v903, 0
  %v926 = vsel %vm69, %v904, 0
  %v929 = vsel %vm69, %v905, 0
  %931 = vmatprep.subr.bf16.mxu0 0
  %932 = vmatpush1.bf16.msra.mxu0 %v911
  %933 = vmatprep.subr.bf16.mxu0 0
  %934 = vmatpush1.bf16.msra.mxu0 %v913
  %935 = vmatprep.subr.bf16.mxu0 0
  %936 = vmatpush1.bf16.msra.mxu0 0
  %937 = vmatprep.subr.bf16.mxu0 0
  %938 = vmatpush1.bf16.msra.mxu0 0
  %939 = vmatprep.subr.bf16.mxu0 0
  %940 = vmatpush1.bf16.msra.mxu0 0
  %941 = vmatprep.subr.bf16.mxu0 0
  %942 = vmatpush1.bf16.msra.mxu0 0
  %943 = vmatprep.subr.bf16.mxu0 0
  %944 = vmatpush1.bf16.msra.mxu0 0
  %945 = vmatprep.subr.bf16.mxu0 0
  %946 = vmatpush1.bf16.msra.mxu0 0
  %947 = vmatprep.subr.bf16.mxu0 0
  %948 = vmatpush1.bf16.msra.mxu0 0
  %949 = vmatprep.subr.bf16.mxu0 0
  %950 = vmatpush1.bf16.msra.mxu0 0
  %951 = vmatprep.subr.bf16.mxu0 0
  %952 = vmatpush1.bf16.msra.mxu0 0
  %953 = vmatprep.subr.bf16.mxu0 0
  %954 = vmatpush1.bf16.msra.mxu0 0
  %955 = vmatprep.subr.bf16.mxu0 0
  %956 = vmatpush1.bf16.msra.mxu0 0
  %957 = vmatprep.subr.bf16.mxu0 0
  %958 = vmatpush1.bf16.msra.mxu0 0
  %959 = vmatprep.subr.bf16.mxu0 0
  %960 = vmatpush1.bf16.msra.mxu0 0
  %961 = vmatprep.subr.bf16.mxu0 0
  %962 = vmatpush1.bf16.msra.mxu0 0
  %963 = vmatprep.mubr.bf16.mxu0 0
  %964 = vmatmul.mubr.bf16.gmra.mrb[0].mxu0 %v917
  %v965 = vpop.f32.mrb[0].mxu0
  %v966 = vadd.f32 %v909, %v965
  %v967 = vpop.f32.mrb[0].mxu0
  %v968 = vpop.f32.mrb[0].mxu0
  %v969 = vadd.f32 %v909, %v968
  %v970 = vpop.f32.mrb[0].mxu0
  %971 = vmatprep.mubr.bf16.mxu0 0
  %972 = vmatmul.mubr.bf16.gmra.mrb[0].mxu0 %v920
  %v973 = vpop.f32.mrb[0].mxu0
  %v974 = vadd.f32 %v909, %v973
  %v975 = vpop.f32.mrb[0].mxu0
  %v976 = vpop.f32.mrb[0].mxu0
  %v977 = vadd.f32 %v909, %v976
  %v978 = vpop.f32.mrb[0].mxu0
  %979 = vmatprep.mubr.bf16.mxu0 0
  %980 = vmatmul.mubr.bf16.gmra.mrb[0].mxu0 %v923
  %v981 = vpop.f32.mrb[0].mxu0
  %v982 = vadd.f32 %v909, %v981
  %v983 = vpop.f32.mrb[0].mxu0
  %v984 = vpop.f32.mrb[0].mxu0
  %v985 = vadd.f32 %v909, %v984
  %v986 = vpop.f32.mrb[0].mxu0
  %987 = vmatprep.mubr.bf16.mxu0 0
  %988 = vmatmul.mubr.bf16.gmra.mrb[0].mxu0 %v926
  %v989 = vpop.f32.mrb[0].mxu0
  %v990 = vadd.f32 %v909, %v989
  %v991 = vpop.f32.mrb[0].mxu0
  %v992 = vpop.f32.mrb[0].mxu0
  %v993 = vadd.f32 %v909, %v992
  %v994 = vpop.f32.mrb[0].mxu0
  %995 = vmatprep.mubr.bf16.mxu0 0
  %996 = vmatmul.mubr.bf16.gmra.mrb[0].mxu0 %v929
  %v997 = vpop.f32.mrb[0].mxu0
  %v998 = vadd.f32 %v909, %v997
  %v999 = vpop.f32.mrb[0].mxu0
  %v1000 = vpop.f32.mrb[0].mxu0
  %v1001 = vpop.f32.mrb[0].mxu0
  %1002 = vdwg.mxu0
  %v1003 = vadd.f32 %v21, %v966
  %v1004 = vadd.f32 %v22, %v969
  %v1005 = vadd.f32 %v23, %v974
  %v1006 = vadd.f32 %v24, %v977
  %v1007 = vadd.f32 %v25, %v982
  %v1008 = vadd.f32 %v26, %v985
  %v1009 = vadd.f32 %v27, %v990
  %v1010 = vadd.f32 %v28, %v993
  %v1011 = vadd.f32 %v29, %v998
  %v1012 = vsel %vm69, %v1003, 0.0
  %1013 = vadd.xlane.f32.xlu0 %v1012
  %v1014 = vpop.xlane.xlu0 %1013
  %v1015 = vsel %vm69, %v1004, 0.0
  %1016 = vadd.xlane.f32.xlu0 %v1015
  %v1017 = vpop.xlane.xlu0 %1016
  %v1018 = vsel %vm69, %v1005, 0.0
  %1019 = vadd.xlane.f32.xlu0 %v1018
  %v1020 = vpop.xlane.xlu0 %1019
  %v1021 = vsel %vm69, %v1006, 0.0
  %1022 = vadd.xlane.f32.xlu0 %v1021
  %v1023 = vpop.xlane.xlu0 %1022
  %v1024 = vsel %vm69, %v1007, 0.0
  %1025 = vadd.xlane.f32.xlu0 %v1024
  %v1026 = vpop.xlane.xlu0 %1025
  %v1027 = vsel %vm69, %v1008, 0.0
  %1028 = vadd.xlane.f32.xlu0 %v1027
  %v1029 = vpop.xlane.xlu0 %1028
  %v1030 = vsel %vm69, %v1009, 0.0
  %1031 = vadd.xlane.f32.xlu0 %v1030
  %v1032 = vpop.xlane.xlu0 %1031
  %v1033 = vsel %vm69, %v1010, 0.0
  %1034 = vadd.xlane.f32.xlu0 %v1033
  %v1035 = vpop.xlane.xlu0 %1034
  %v1036 = vsel %vm69, %v1011, 0.0
  %1037 = vadd.xlane.f32.xlu0 %v1036
  %v1038 = vpop.xlane.xlu0 %1037
  %v1039 = vrcp.pop 32.0
  %v1040 = vmul.f32 %v1014, %v1039
  %v1041 = vmul.f32 %v1017, %v1039
  %v1042 = vmul.f32 %v1020, %v1039
  %v1043 = vmul.f32 %v1023, %v1039
  %v1044 = vmul.f32 %v1026, %v1039
  %v1045 = vmul.f32 %v1029, %v1039
  %v1046 = vmul.f32 %v1032, %v1039
  %v1047 = vmul.f32 %v1035, %v1039
  %v1048 = vmul.f32 %v1038, %v1039
  %v1049 = vsub.f32 %v1003, %v1040
  %v1050 = vsub.f32 %v1004, %v1041
  %v1051 = vsub.f32 %v1005, %v1042
  %v1052 = vsub.f32 %v1006, %v1043
  %v1053 = vsub.f32 %v1007, %v1044
  %v1054 = vsub.f32 %v1008, %v1045
  %v1055 = vsub.f32 %v1009, %v1046
  %v1056 = vsub.f32 %v1010, %v1047
  %v1057 = vsub.f32 %v1011, %v1048
  %v1058 = vmul.f32 %v1049, %v1049
  %v1059 = vmul.f32 %v1050, %v1050
  %v1060 = vmul.f32 %v1051, %v1051
  %v1061 = vmul.f32 %v1052, %v1052
  %v1062 = vmul.f32 %v1053, %v1053
  %v1063 = vmul.f32 %v1054, %v1054
  %v1064 = vmul.f32 %v1055, %v1055
  %v1065 = vmul.f32 %v1056, %v1056
  %v1066 = vmul.f32 %v1057, %v1057
  %v1067 = vsel %vm69, %v1058, 0.0
  %1068 = vadd.xlane.f32.xlu0 %v1067
  %v1069 = vpop.xlane.xlu0 %1068
  %v1070 = vsel %vm69, %v1059, 0.0
  %1071 = vadd.xlane.f32.xlu0 %v1070
  %v1072 = vpop.xlane.xlu0 %1071
  %v1073 = vsel %vm69, %v1060, 0.0
  %1074 = vadd.xlane.f32.xlu0 %v1073
  %v1075 = vpop.xlane.xlu0 %1074
  %v1076 = vsel %vm69, %v1061, 0.0
  %1077 = vadd.xlane.f32.xlu0 %v1076
  %v1078 = vpop.xlane.xlu0 %1077
  %v1079 = vsel %vm69, %v1062, 0.0
  %1080 = vadd.xlane.f32.xlu0 %v1079
  %v1081 = vpop.xlane.xlu0 %1080
  %v1082 = vsel %vm69, %v1063, 0.0
  %1083 = vadd.xlane.f32.xlu0 %v1082
  %v1084 = vpop.xlane.xlu0 %1083
  %v1085 = vsel %vm69, %v1064, 0.0
  %1086 = vadd.xlane.f32.xlu0 %v1085
  %v1087 = vpop.xlane.xlu0 %1086
  %v1088 = vsel %vm69, %v1065, 0.0
  %1089 = vadd.xlane.f32.xlu0 %v1088
  %v1090 = vpop.xlane.xlu0 %1089
  %v1091 = vsel %vm69, %v1066, 0.0
  %1092 = vadd.xlane.f32.xlu0 %v1091
  %v1093 = vpop.xlane.xlu0 %1092
  %v1094 = vmul.f32 %v1069, %v1039
  %v1095 = vmul.f32 %v1072, %v1039
  %v1096 = vmul.f32 %v1075, %v1039
  %v1097 = vmul.f32 %v1078, %v1039
  %v1098 = vmul.f32 %v1081, %v1039
  %v1099 = vmul.f32 %v1084, %v1039
  %v1100 = vmul.f32 %v1087, %v1039
  %v1101 = vmul.f32 %v1090, %v1039
  %v1102 = vmul.f32 %v1093, %v1039
  %v1103 = vadd.f32 %v1094, 1e-05
  %v1104 = vadd.f32 %v1095, 1e-05
  %v1105 = vadd.f32 %v1096, 1e-05
  %v1106 = vadd.f32 %v1097, 1e-05
  %v1107 = vadd.f32 %v1098, 1e-05
  %v1108 = vadd.f32 %v1099, 1e-05
  %v1109 = vadd.f32 %v1100, 1e-05
  %v1110 = vadd.f32 %v1101, 1e-05
  %v1111 = vadd.f32 %v1102, 1e-05
  %v1112 = vrsqrt.pop %v1103
  %v1113 = vrsqrt.pop %v1104
  %v1114 = vrsqrt.pop %v1105
  %v1115 = vrsqrt.pop %v1106
  %v1116 = vrsqrt.pop %v1107
  %v1117 = vrsqrt.pop %v1108
  %v1118 = vrsqrt.pop %v1109
  %v1119 = vrsqrt.pop %v1110
  %v1120 = vrsqrt.pop %v1111
  %v1121 = vmul.f32 %v1049, %v1112
  %v1122 = vmul.f32 %v1050, %v1113
  %v1123 = vmul.f32 %v1051, %v1114
  %v1124 = vmul.f32 %v1052, %v1115
  %v1125 = vmul.f32 %v1053, %v1116
  %v1126 = vmul.f32 %v1054, %v1117
  %v1127 = vmul.f32 %v1055, %v1118
  %v1128 = vmul.f32 %v1056, %v1119
  %v1129 = vmul.f32 %v1057, %v1120
  %v1130 = vlaneseq
  %v1131 = vshrl.u32 %v1130, 7
  %v1132 = vsub.s32 3, %v1131
  %v1133 = vrot.slane %v30, %v1132
  %v1134 = vmul.f32 %v1121, %v1133
  %v1135 = vmul.f32 %v1122, %v1133
  %v1136 = vmul.f32 %v1123, %v1133
  %v1137 = vmul.f32 %v1124, %v1133
  %v1138 = vmul.f32 %v1125, %v1133
  %v1139 = vmul.f32 %v1126, %v1133
  %v1140 = vmul.f32 %v1127, %v1133
  %v1141 = vmul.f32 %v1128, %v1133
  %v1142 = vmul.f32 %v1129, %v1133
  %v1143 = vlaneseq
  %v1144 = vshrl.u32 %v1143, 7
  %v1145 = vsub.s32 4, %v1144
  %v1146 = vrot.slane %v30, %v1145
  %v1147 = vadd.f32 %v1134, %v1146
  %v1148 = vadd.f32 %v1135, %v1146
  %v1149 = vadd.f32 %v1136, %v1146
  %v1150 = vadd.f32 %v1137, %v1146
  %v1151 = vadd.f32 %v1138, %v1146
  %v1152 = vadd.f32 %v1139, %v1146
  %v1153 = vadd.f32 %v1140, %v1146
  %v1154 = vadd.f32 %v1141, %v1146
  %v1155 = vadd.f32 %v1142, %v1146
  %v1156 = vpack.c.bf16 %v1148, %v1147
  %v1157 = vpack.c.bf16 %v1150, %v1149
  %v1158 = vpack.c.bf16 %v1152, %v1151
  %v1159 = vpack.c.bf16 %v1154, %v1153
  %v1160 = vpack.c.bf16 %v1155, %v1155
  %v1161 = vld [vmem:[%s2 + $0x4] sm:$0xf]
  %v1162 = vld [vmem:[%s2 + $0xc] sm:$0xf]
  %v1163 = vld [vmem:[%s2 + $0x14] sm:$0xf]
  %v1164 = vld [vmem:[%s2 + $0x1c] sm:$0xf]
  %v1165 = vlaneseq
  %v1166 = vshrl.u32 %v1165, 7
  %v1167 = vsub.s32 1, %v1166
  %v1168 = vrot.slane %v30, %v1167
  %v1173 = vunpack.c.l.b16 %v1161
  %v1174 = vunpack.c.l.b16 %v1162
  %v1175 = vunpack.c.l.b16 %v1163
  %v1176 = vunpack.c.l.b16 %v1164
  %v1177 = vpack.c.b16 %v1174, %v1173
  %v1178 = vpack.c.b16 %v1176, %v1175
  %v1182 = vsel %vm69, %v1156, 0
  %v1185 = vsel %vm69, %v1157, 0
  %v1188 = vsel %vm69, %v1158, 0
  %v1191 = vsel %vm69, %v1159, 0
  %v1194 = vsel %vm69, %v1160, 0
  %1196 = vmatprep.subr.bf16.mxu0 0
  %1197 = vmatpush1.bf16.msra.mxu0 %v1177
  %1198 = vmatprep.subr.bf16.mxu0 0
  %1199 = vmatpush1.bf16.msra.mxu0 %v1178
  %1200 = vmatprep.subr.bf16.mxu0 0
  %1201 = vmatpush1.bf16.msra.mxu0 0
  %1202 = vmatprep.subr.bf16.mxu0 0
  %1203 = vmatpush1.bf16.msra.mxu0 0
  %1204 = vmatprep.subr.bf16.mxu0 0
  %1205 = vmatpush1.bf16.msra.mxu0 0
  %1206 = vmatprep.subr.bf16.mxu0 0
  %1207 = vmatpush1.bf16.msra.mxu0 0
  %1208 = vmatprep.subr.bf16.mxu0 0
  %1209 = vmatpush1.bf16.msra.mxu0 0
  %1210 = vmatprep.subr.bf16.mxu0 0
  %1211 = vmatpush1.bf16.msra.mxu0 0
  %1212 = vmatprep.subr.bf16.mxu0 0
  %1213 = vmatpush1.bf16.msra.mxu0 0
  %1214 = vmatprep.subr.bf16.mxu0 0
  %1215 = vmatpush1.bf16.msra.mxu0 0
  %1216 = vmatprep.subr.bf16.mxu0 0
  %1217 = vmatpush1.bf16.msra.mxu0 0
  %1218 = vmatprep.subr.bf16.mxu0 0
  %1219 = vmatpush1.bf16.msra.mxu0 0
  %1220 = vmatprep.subr.bf16.mxu0 0
  %1221 = vmatpush1.bf16.msra.mxu0 0
  %1222 = vmatprep.subr.bf16.mxu0 0
  %1223 = vmatpush1.bf16.msra.mxu0 0
  %1224 = vmatprep.subr.bf16.mxu0 0
  %1225 = vmatpush1.bf16.msra.mxu0 0
  %1226 = vmatprep.subr.bf16.mxu0 0
  %1227 = vmatpush1.bf16.msra.mxu0 0
  %1228 = vmatprep.mubr.bf16.mxu0 0
  %1229 = vmatmul.mubr.bf16.gmra.mrb[0].mxu0 %v1182
  %v1230 = vpop.f32.mrb[0].mxu0
  %v1231 = vadd.f32 %v1168, %v1230
  %v1232 = vpop.f32.mrb[0].mxu0
  %v1233 = vpop.f32.mrb[0].mxu0
  %v1234 = vadd.f32 %v1168, %v1233
  %v1235 = vpop.f32.mrb[0].mxu0
  %1236 = vmatprep.mubr.bf16.mxu0 0
  %1237 = vmatmul.mubr.bf16.gmra.mrb[0].mxu0 %v1185
  %v1238 = vpop.f32.mrb[0].mxu0
  %v1239 = vadd.f32 %v1168, %v1238
  %v1240 = vpop.f32.mrb[0].mxu0
  %v1241 = vpop.f32.mrb[0].mxu0
  %v1242 = vadd.f32 %v1168, %v1241
  %v1243 = vpop.f32.mrb[0].mxu0
  %1244 = vmatprep.mubr.bf16.mxu0 0
  %1245 = vmatmul.mubr.bf16.gmra.mrb[0].mxu0 %v1188
  %v1246 = vpop.f32.mrb[0].mxu0
  %v1247 = vadd.f32 %v1168, %v1246
  %v1248 = vpop.f32.mrb[0].mxu0
  %v1249 = vpop.f32.mrb[0].mxu0
  %v1250 = vadd.f32 %v1168, %v1249
  %v1251 = vpop.f32.mrb[0].mxu0
  %1252 = vmatprep.mubr.bf16.mxu0 0
  %1253 = vmatmul.mubr.bf16.gmra.mrb[0].mxu0 %v1191
  %v1254 = vpop.f32.mrb[0].mxu0
  %v1255 = vadd.f32 %v1168, %v1254
  %v1256 = vpop.f32.mrb[0].mxu0
  %v1257 = vpop.f32.mrb[0].mxu0
  %v1258 = vadd.f32 %v1168, %v1257
  %v1259 = vpop.f32.mrb[0].mxu0
  %1260 = vmatprep.mubr.bf16.mxu0 0
  %1261 = vmatmul.mubr.bf16.gmra.mrb[0].mxu0 %v1194
  %v1262 = vpop.f32.mrb[0].mxu0
  %v1263 = vadd.f32 %v1168, %v1262
  %v1264 = vpop.f32.mrb[0].mxu0
  %v1265 = vpop.f32.mrb[0].mxu0
  %v1266 = vpop.f32.mrb[0].mxu0
  %1267 = vdwg.mxu0
  %v1268 = vmax.f32 %v1231, 0.0
  %v1269 = vmax.f32 %v1234, 0.0
  %v1270 = vmax.f32 %v1239, 0.0
  %v1271 = vmax.f32 %v1242, 0.0
  %v1272 = vmax.f32 %v1247, 0.0
  %v1273 = vmax.f32 %v1250, 0.0
  %v1274 = vmax.f32 %v1255, 0.0
  %v1275 = vmax.f32 %v1258, 0.0
  %v1276 = vmax.f32 %v1263, 0.0
  %v1277 = vpack.c.bf16 %v1269, %v1268
  %v1278 = vpack.c.bf16 %v1271, %v1270
  %v1279 = vpack.c.bf16 %v1273, %v1272
  %v1280 = vpack.c.bf16 %v1275, %v1274
  %v1281 = vpack.c.bf16 %v1276, %v1276
  %v1282 = vlaneseq
  %v1283 = vshrl.u32 %v1282, 7
  %v1284 = vsub.s32 2, %v1283
  %v1285 = vrot.slane %v30, %v1284
  %1286 = vrot.lane.b32.xlu0 %v1177, 96
  %v1287 = vpop.permute.xlu0 %1286
  %1288 = vrot.lane.b32.xlu0 %v1178, 96
  %v1289 = vpop.permute.xlu0 %1288
  %v1293 = vsel %vm69, %v1277, 0
  %v1296 = vsel %vm69, %v1278, 0
  %v1299 = vsel %vm69, %v1279, 0
  %v1302 = vsel %vm69, %v1280, 0
  %v1305 = vsel %vm69, %v1281, 0
  %1307 = vmatprep.subr.bf16.mxu0 0
  %1308 = vmatpush1.bf16.msra.mxu0 %v1287
  %1309 = vmatprep.subr.bf16.mxu0 0
  %1310 = vmatpush1.bf16.msra.mxu0 %v1289
  %1311 = vmatprep.subr.bf16.mxu0 0
  %1312 = vmatpush1.bf16.msra.mxu0 0
  %1313 = vmatprep.subr.bf16.mxu0 0
  %1314 = vmatpush1.bf16.msra.mxu0 0
  %1315 = vmatprep.subr.bf16.mxu0 0
  %1316 = vmatpush1.bf16.msra.mxu0 0
  %1317 = vmatprep.subr.bf16.mxu0 0
  %1318 = vmatpush1.bf16.msra.mxu0 0
  %1319 = vmatprep.subr.bf16.mxu0 0
  %1320 = vmatpush1.bf16.msra.mxu0 0
  %1321 = vmatprep.subr.bf16.mxu0 0
  %1322 = vmatpush1.bf16.msra.mxu0 0
  %1323 = vmatprep.subr.bf16.mxu0 0
  %1324 = vmatpush1.bf16.msra.mxu0 0
  %1325 = vmatprep.subr.bf16.mxu0 0
  %1326 = vmatpush1.bf16.msra.mxu0 0
  %1327 = vmatprep.subr.bf16.mxu0 0
  %1328 = vmatpush1.bf16.msra.mxu0 0
  %1329 = vmatprep.subr.bf16.mxu0 0
  %1330 = vmatpush1.bf16.msra.mxu0 0
  %1331 = vmatprep.subr.bf16.mxu0 0
  %1332 = vmatpush1.bf16.msra.mxu0 0
  %1333 = vmatprep.subr.bf16.mxu0 0
  %1334 = vmatpush1.bf16.msra.mxu0 0
  %1335 = vmatprep.subr.bf16.mxu0 0
  %1336 = vmatpush1.bf16.msra.mxu0 0
  %1337 = vmatprep.subr.bf16.mxu0 0
  %1338 = vmatpush1.bf16.msra.mxu0 0
  %1339 = vmatprep.mubr.bf16.mxu0 0
  %1340 = vmatmul.mubr.bf16.gmra.mrb[0].mxu0 %v1293
  %v1341 = vpop.f32.mrb[0].mxu0
  %v1342 = vadd.f32 %v1285, %v1341
  %v1343 = vpop.f32.mrb[0].mxu0
  %v1344 = vpop.f32.mrb[0].mxu0
  %v1345 = vadd.f32 %v1285, %v1344
  %v1346 = vpop.f32.mrb[0].mxu0
  %1347 = vmatprep.mubr.bf16.mxu0 0
  %1348 = vmatmul.mubr.bf16.gmra.mrb[0].mxu0 %v1296
  %v1349 = vpop.f32.mrb[0].mxu0
  %v1350 = vadd.f32 %v1285, %v1349
  %v1351 = vpop.f32.mrb[0].mxu0
  %v1352 = vpop.f32.mrb[0].mxu0
  %v1353 = vadd.f32 %v1285, %v1352
  %v1354 = vpop.f32.mrb[0].mxu0
  %1355 = vmatprep.mubr.bf16.mxu0 0
  %1356 = vmatmul.mubr.bf16.gmra.mrb[0].mxu0 %v1299
  %v1357 = vpop.f32.mrb[0].mxu0
  %v1358 = vadd.f32 %v1285, %v1357
  %v1359 = vpop.f32.mrb[0].mxu0
  %v1360 = vpop.f32.mrb[0].mxu0
  %v1361 = vadd.f32 %v1285, %v1360
  %v1362 = vpop.f32.mrb[0].mxu0
  %1363 = vmatprep.mubr.bf16.mxu0 0
  %1364 = vmatmul.mubr.bf16.gmra.mrb[0].mxu0 %v1302
  %v1365 = vpop.f32.mrb[0].mxu0
  %v1366 = vadd.f32 %v1285, %v1365
  %v1367 = vpop.f32.mrb[0].mxu0
  %v1368 = vpop.f32.mrb[0].mxu0
  %v1369 = vadd.f32 %v1285, %v1368
  %v1370 = vpop.f32.mrb[0].mxu0
  %1371 = vmatprep.mubr.bf16.mxu0 0
  %1372 = vmatmul.mubr.bf16.gmra.mrb[0].mxu0 %v1305
  %v1373 = vpop.f32.mrb[0].mxu0
  %v1374 = vadd.f32 %v1285, %v1373
  %v1375 = vpop.f32.mrb[0].mxu0
  %v1376 = vpop.f32.mrb[0].mxu0
  %v1377 = vpop.f32.mrb[0].mxu0
  %1378 = vdwg.mxu0
  %v1379 = vadd.f32 %v1147, %v1342
  %v1380 = vadd.f32 %v1148, %v1345
  %v1381 = vadd.f32 %v1149, %v1350
  %v1382 = vadd.f32 %v1150, %v1353
  %v1383 = vadd.f32 %v1151, %v1358
  %v1384 = vadd.f32 %v1152, %v1361
  %v1385 = vadd.f32 %v1153, %v1366
  %v1386 = vadd.f32 %v1154, %v1369
  %v1387 = vadd.f32 %v1155, %v1374
  %v1388 = vsel %vm69, %v1379, 0.0
  %1389 = vadd.xlane.f32.xlu0 %v1388
  %v1390 = vpop.xlane.xlu0 %1389
  %v1391 = vsel %vm69, %v1380, 0.0
  %1392 = vadd.xlane.f32.xlu0 %v1391
  %v1393 = vpop.xlane.xlu0 %1392
  %v1394 = vsel %vm69, %v1381, 0.0
  %1395 = vadd.xlane.f32.xlu0 %v1394
  %v1396 = vpop.xlane.xlu0 %1395
  %v1397 = vsel %vm69, %v1382, 0.0
  %1398 = vadd.xlane.f32.xlu0 %v1397
  %v1399 = vpop.xlane.xlu0 %1398
  %v1400 = vsel %vm69, %v1383, 0.0
  %1401 = vadd.xlane.f32.xlu0 %v1400
  %v1402 = vpop.xlane.xlu0 %1401
  %v1403 = vsel %vm69, %v1384, 0.0
  %1404 = vadd.xlane.f32.xlu0 %v1403
  %v1405 = vpop.xlane.xlu0 %1404
  %v1406 = vsel %vm69, %v1385, 0.0
  %1407 = vadd.xlane.f32.xlu0 %v1406
  %v1408 = vpop.xlane.xlu0 %1407
  %v1409 = vsel %vm69, %v1386, 0.0
  %1410 = vadd.xlane.f32.xlu0 %v1409
  %v1411 = vpop.xlane.xlu0 %1410
  %v1412 = vsel %vm69, %v1387, 0.0
  %1413 = vadd.xlane.f32.xlu0 %v1412
  %v1414 = vpop.xlane.xlu0 %1413
  %v1415 = vmul.f32 %v1390, %v1039
  %v1416 = vmul.f32 %v1393, %v1039
  %v1417 = vmul.f32 %v1396, %v1039
  %v1418 = vmul.f32 %v1399, %v1039
  %v1419 = vmul.f32 %v1402, %v1039
  %v1420 = vmul.f32 %v1405, %v1039
  %v1421 = vmul.f32 %v1408, %v1039
  %v1422 = vmul.f32 %v1411, %v1039
  %v1423 = vmul.f32 %v1414, %v1039
  %v1424 = vsub.f32 %v1379, %v1415
  %v1425 = vsub.f32 %v1380, %v1416
  %v1426 = vsub.f32 %v1381, %v1417
  %v1427 = vsub.f32 %v1382, %v1418
  %v1428 = vsub.f32 %v1383, %v1419
  %v1429 = vsub.f32 %v1384, %v1420
  %v1430 = vsub.f32 %v1385, %v1421
  %v1431 = vsub.f32 %v1386, %v1422
  %v1432 = vsub.f32 %v1387, %v1423
  %v1433 = vmul.f32 %v1424, %v1424
  %v1434 = vmul.f32 %v1425, %v1425
  %v1435 = vmul.f32 %v1426, %v1426
  %v1436 = vmul.f32 %v1427, %v1427
  %v1437 = vmul.f32 %v1428, %v1428
  %v1438 = vmul.f32 %v1429, %v1429
  %v1439 = vmul.f32 %v1430, %v1430
  %v1440 = vmul.f32 %v1431, %v1431
  %v1441 = vmul.f32 %v1432, %v1432
  %v1442 = vsel %vm69, %v1433, 0.0
  %1443 = vadd.xlane.f32.xlu0 %v1442
  %v1444 = vpop.xlane.xlu0 %1443
  %v1445 = vsel %vm69, %v1434, 0.0
  %1446 = vadd.xlane.f32.xlu0 %v1445
  %v1447 = vpop.xlane.xlu0 %1446
  %v1448 = vsel %vm69, %v1435, 0.0
  %1449 = vadd.xlane.f32.xlu0 %v1448
  %v1450 = vpop.xlane.xlu0 %1449
  %v1451 = vsel %vm69, %v1436, 0.0
  %1452 = vadd.xlane.f32.xlu0 %v1451
  %v1453 = vpop.xlane.xlu0 %1452
  %v1454 = vsel %vm69, %v1437, 0.0
  %1455 = vadd.xlane.f32.xlu0 %v1454
  %v1456 = vpop.xlane.xlu0 %1455
  %v1457 = vsel %vm69, %v1438, 0.0
  %1458 = vadd.xlane.f32.xlu0 %v1457
  %v1459 = vpop.xlane.xlu0 %1458
  %v1460 = vsel %vm69, %v1439, 0.0
  %1461 = vadd.xlane.f32.xlu0 %v1460
  %v1462 = vpop.xlane.xlu0 %1461
  %v1463 = vsel %vm69, %v1440, 0.0
  %1464 = vadd.xlane.f32.xlu0 %v1463
  %v1465 = vpop.xlane.xlu0 %1464
  %v1466 = vsel %vm69, %v1441, 0.0
  %1467 = vadd.xlane.f32.xlu0 %v1466
  %v1468 = vpop.xlane.xlu0 %1467
  %v1469 = vmul.f32 %v1444, %v1039
  %v1470 = vmul.f32 %v1447, %v1039
  %v1471 = vmul.f32 %v1450, %v1039
  %v1472 = vmul.f32 %v1453, %v1039
  %v1473 = vmul.f32 %v1456, %v1039
  %v1474 = vmul.f32 %v1459, %v1039
  %v1475 = vmul.f32 %v1462, %v1039
  %v1476 = vmul.f32 %v1465, %v1039
  %v1477 = vmul.f32 %v1468, %v1039
  %v1478 = vadd.f32 %v1469, 1e-05
  %v1479 = vadd.f32 %v1470, 1e-05
  %v1480 = vadd.f32 %v1471, 1e-05
  %v1481 = vadd.f32 %v1472, 1e-05
  %v1482 = vadd.f32 %v1473, 1e-05
  %v1483 = vadd.f32 %v1474, 1e-05
  %v1484 = vadd.f32 %v1475, 1e-05
  %v1485 = vadd.f32 %v1476, 1e-05
  %v1486 = vadd.f32 %v1477, 1e-05
  %v1487 = vrsqrt.pop %v1478
  %v1488 = vrsqrt.pop %v1479
  %v1489 = vrsqrt.pop %v1480
  %v1490 = vrsqrt.pop %v1481
  %v1491 = vrsqrt.pop %v1482
  %v1492 = vrsqrt.pop %v1483
  %v1493 = vrsqrt.pop %v1484
  %v1494 = vrsqrt.pop %v1485
  %v1495 = vrsqrt.pop %v1486
  %v1496 = vmul.f32 %v1424, %v1487
  %v1497 = vmul.f32 %v1425, %v1488
  %v1498 = vmul.f32 %v1426, %v1489
  %v1499 = vmul.f32 %v1427, %v1490
  %v1500 = vmul.f32 %v1428, %v1491
  %v1501 = vmul.f32 %v1429, %v1492
  %v1502 = vmul.f32 %v1430, %v1493
  %v1503 = vmul.f32 %v1431, %v1494
  %v1504 = vmul.f32 %v1432, %v1495
  %v1505 = vlaneseq
  %v1506 = vshrl.u32 %v1505, 7
  %v1507 = vsub.s32 5, %v1506
  %v1508 = vrot.slane %v30, %v1507
  %v1509 = vmul.f32 %v1496, %v1508
  %v1510 = vmul.f32 %v1497, %v1508
  %v1511 = vmul.f32 %v1498, %v1508
  %v1512 = vmul.f32 %v1499, %v1508
  %v1513 = vmul.f32 %v1500, %v1508
  %v1514 = vmul.f32 %v1501, %v1508
  %v1515 = vmul.f32 %v1502, %v1508
  %v1516 = vmul.f32 %v1503, %v1508
  %v1517 = vmul.f32 %v1504, %v1508
  %v1518 = vlaneseq
  %v1519 = vshrl.u32 %v1518, 7
  %v1520 = vsub.s32 6, %v1519
  %v1521 = vrot.slane %v30, %v1520
  %v1522 = vadd.f32 %v1509, %v1521
  %v1523 = vadd.f32 %v1510, %v1521
  %v1524 = vadd.f32 %v1511, %v1521
  %v1525 = vadd.f32 %v1512, %v1521
  %v1526 = vadd.f32 %v1513, %v1521
  %v1527 = vadd.f32 %v1514, %v1521
  %v1528 = vadd.f32 %v1515, %v1521
  %v1529 = vadd.f32 %v1516, %v1521
  %v1530 = vadd.f32 %v1517, %v1521
  %v1531 = vsel %vm69, %v1522, 0.0
  %1532 = vadd.xlane.f32.xlu0 %v1531
  %v1533 = vpop.xlane.xlu0 %1532
  %v1534 = vsel %vm69, %v1523, 0.0
  %1535 = vadd.xlane.f32.xlu0 %v1534
  %v1536 = vpop.xlane.xlu0 %1535
  %v1537 = vsel %vm69, %v1524, 0.0
  %1538 = vadd.xlane.f32.xlu0 %v1537
  %v1539 = vpop.xlane.xlu0 %1538
  %v1540 = vsel %vm69, %v1525, 0.0
  %1541 = vadd.xlane.f32.xlu0 %v1540
  %v1542 = vpop.xlane.xlu0 %1541
  %v1543 = vsel %vm69, %v1526, 0.0
  %1544 = vadd.xlane.f32.xlu0 %v1543
  %v1545 = vpop.xlane.xlu0 %1544
  %v1546 = vsel %vm69, %v1527, 0.0
  %1547 = vadd.xlane.f32.xlu0 %v1546
  %v1548 = vpop.xlane.xlu0 %1547
  %v1549 = vsel %vm69, %v1528, 0.0
  %1550 = vadd.xlane.f32.xlu0 %v1549
  %v1551 = vpop.xlane.xlu0 %1550
  %v1552 = vsel %vm69, %v1529, 0.0
  %1553 = vadd.xlane.f32.xlu0 %v1552
  %v1554 = vpop.xlane.xlu0 %1553
  %v1555 = vsel %vm69, %v1530, 0.0
  %1556 = vadd.xlane.f32.xlu0 %v1555
  %v1557 = vpop.xlane.xlu0 %1556
  %v1558 = vmul.f32 %v1533, %v1039
  %v1559 = vmul.f32 %v1536, %v1039
  %v1560 = vmul.f32 %v1539, %v1039
  %v1561 = vmul.f32 %v1542, %v1039
  %v1562 = vmul.f32 %v1545, %v1039
  %v1563 = vmul.f32 %v1548, %v1039
  %v1564 = vmul.f32 %v1551, %v1039
  %v1565 = vmul.f32 %v1554, %v1039
  %v1566 = vmul.f32 %v1557, %v1039
  %v1567 = vsub.f32 %v1522, %v1558
  %v1568 = vsub.f32 %v1523, %v1559
  %v1569 = vsub.f32 %v1524, %v1560
  %v1570 = vsub.f32 %v1525, %v1561
  %v1571 = vsub.f32 %v1526, %v1562
  %v1572 = vsub.f32 %v1527, %v1563
  %v1573 = vsub.f32 %v1528, %v1564
  %v1574 = vsub.f32 %v1529, %v1565
  %v1575 = vsub.f32 %v1530, %v1566
  %v1576 = vmul.f32 %v1567, %v1567
  %v1577 = vmul.f32 %v1568, %v1568
  %v1578 = vmul.f32 %v1569, %v1569
  %v1579 = vmul.f32 %v1570, %v1570
  %v1580 = vmul.f32 %v1571, %v1571
  %v1581 = vmul.f32 %v1572, %v1572
  %v1582 = vmul.f32 %v1573, %v1573
  %v1583 = vmul.f32 %v1574, %v1574
  %v1584 = vmul.f32 %v1575, %v1575
  %v1585 = vsel %vm69, %v1576, 0.0
  %1586 = vadd.xlane.f32.xlu0 %v1585
  %v1587 = vpop.xlane.xlu0 %1586
  %v1588 = vsel %vm69, %v1577, 0.0
  %1589 = vadd.xlane.f32.xlu0 %v1588
  %v1590 = vpop.xlane.xlu0 %1589
  %v1591 = vsel %vm69, %v1578, 0.0
  %1592 = vadd.xlane.f32.xlu0 %v1591
  %v1593 = vpop.xlane.xlu0 %1592
  %v1594 = vsel %vm69, %v1579, 0.0
  %1595 = vadd.xlane.f32.xlu0 %v1594
  %v1596 = vpop.xlane.xlu0 %1595
  %v1597 = vsel %vm69, %v1580, 0.0
  %1598 = vadd.xlane.f32.xlu0 %v1597
  %v1599 = vpop.xlane.xlu0 %1598
  %v1600 = vsel %vm69, %v1581, 0.0
  %1601 = vadd.xlane.f32.xlu0 %v1600
  %v1602 = vpop.xlane.xlu0 %1601
  %v1603 = vsel %vm69, %v1582, 0.0
  %1604 = vadd.xlane.f32.xlu0 %v1603
  %v1605 = vpop.xlane.xlu0 %1604
  %v1606 = vsel %vm69, %v1583, 0.0
  %1607 = vadd.xlane.f32.xlu0 %v1606
  %v1608 = vpop.xlane.xlu0 %1607
  %v1609 = vsel %vm69, %v1584, 0.0
  %1610 = vadd.xlane.f32.xlu0 %v1609
  %v1611 = vpop.xlane.xlu0 %1610
  %v1612 = vmul.f32 %v1587, %v1039
  %v1613 = vmul.f32 %v1590, %v1039
  %v1614 = vmul.f32 %v1593, %v1039
  %v1615 = vmul.f32 %v1596, %v1039
  %v1616 = vmul.f32 %v1599, %v1039
  %v1617 = vmul.f32 %v1602, %v1039
  %v1618 = vmul.f32 %v1605, %v1039
  %v1619 = vmul.f32 %v1608, %v1039
  %v1620 = vmul.f32 %v1611, %v1039
  %v1621 = vadd.f32 %v1612, 1e-05
  %v1622 = vadd.f32 %v1613, 1e-05
  %v1623 = vadd.f32 %v1614, 1e-05
  %v1624 = vadd.f32 %v1615, 1e-05
  %v1625 = vadd.f32 %v1616, 1e-05
  %v1626 = vadd.f32 %v1617, 1e-05
  %v1627 = vadd.f32 %v1618, 1e-05
  %v1628 = vadd.f32 %v1619, 1e-05
  %v1629 = vadd.f32 %v1620, 1e-05
  %v1630 = vrsqrt.pop %v1621
  %v1631 = vrsqrt.pop %v1622
  %v1632 = vrsqrt.pop %v1623
  %v1633 = vrsqrt.pop %v1624
  %v1634 = vrsqrt.pop %v1625
  %v1635 = vrsqrt.pop %v1626
  %v1636 = vrsqrt.pop %v1627
  %v1637 = vrsqrt.pop %v1628
  %v1638 = vrsqrt.pop %v1629
  %v1639 = vmul.f32 %v1567, %v1630
  %v1640 = vmul.f32 %v1568, %v1631
  %v1641 = vmul.f32 %v1569, %v1632
  %v1642 = vmul.f32 %v1570, %v1633
  %v1643 = vmul.f32 %v1571, %v1634
  %v1644 = vmul.f32 %v1572, %v1635
  %v1645 = vmul.f32 %v1573, %v1636
  %v1646 = vmul.f32 %v1574, %v1637
  %v1647 = vmul.f32 %v1575, %v1638
  %v1648 = vlaneseq
  %v1649 = vshrl.u32 %v1648, 7
  %v1650 = vsub.s32 7, %v1649
  %v1651 = vrot.slane %v30, %v1650
  %v1652 = vmul.f32 %v1639, %v1651
  %v1653 = vmul.f32 %v1640, %v1651
  %v1654 = vmul.f32 %v1641, %v1651
  %v1655 = vmul.f32 %v1642, %v1651
  %v1656 = vmul.f32 %v1643, %v1651
  %v1657 = vmul.f32 %v1644, %v1651
  %v1658 = vmul.f32 %v1645, %v1651
  %v1659 = vmul.f32 %v1646, %v1651
  %v1660 = vmul.f32 %v1647, %v1651
  %v1661 = vlaneseq
  %v1662 = vshrl.u32 %v1661, 7
  %v1663 = vsub.s32 0, %v1662
  %v1664 = vrot.slane %v31, %v1663
  %v1665 = vadd.f32 %v1652, %v1664
  %v1666 = vadd.f32 %v1653, %v1664
  %v1667 = vadd.f32 %v1654, %v1664
  %v1668 = vadd.f32 %v1655, %v1664
  %v1669 = vadd.f32 %v1656, %v1664
  %v1670 = vadd.f32 %v1657, %v1664
  %v1671 = vadd.f32 %v1658, %v1664
  %v1672 = vadd.f32 %v1659, %v1664
  %v1673 = vadd.f32 %v1660, %v1664
  %1674 = vst.msk [vmem:[%s5] sm:$0xff] %vm69, %v1665
  %1675 = vst.msk [vmem:[%s5 + $0x8] sm:$0xff] %vm69, %v1666
  %1676 = vst.msk [vmem:[%s5 + $0x10] sm:$0xff] %vm69, %v1667
  %1677 = vst.msk [vmem:[%s5 + $0x18] sm:$0xff] %vm69, %v1668
  %1678 = vst.msk [vmem:[%s5 + $0x20] sm:$0xff] %vm69, %v1669
  %1679 = vst.msk [vmem:[%s5 + $0x28] sm:$0xff] %vm69, %v1670
  %1680 = vst.msk [vmem:[%s5 + $0x30] sm:$0xff] %vm69, %v1671
  %1681 = vst.msk [vmem:[%s5 + $0x38] sm:$0xff] %vm69, %v1672
  %1682 = vst.msk [vmem:[%s5 + $0x40] sm:$0xff] %vm69, %v1673
  // Predicated region
  $region22: #{model_forward.16} parent=0 // pred_check
    _
  $region23: #{model_forward.16} parent=0 // pred_check_branch
    %1684 = sbr.rel (0) target = $region25
  $region24: #{model_forward.16} parent=0 // pred_region
    _
  $region25: #{model_forward.16} parent=0 // pred_fallthru
    _
  // Predicated region
  $region26: #{model_forward.16} parent=0 // pred_check
    _
  $region27: #{model_forward.16} parent=0 // pred_check_branch
    %1686 = sbr.rel (0) target = $region29
  $region28: #{model_forward.16} parent=0 // pred_region
    _
  $region29: #{model_forward.16} parent=0 // pred_fallthru
    _

</llo_original>
